<compile_context>
chip_gen: v7x
topology: tpu7x:2x2x1
jax: 0.10.0
libtpu: 0.0.40
codegen_flags: <defaults>
</compile_context>

<pallas_src>
import numpy as np

import jax
import jax.numpy as jnp
from jax.experimental import pallas as pl
from jax.experimental.pallas import tpu as pltpu


BLOCK_B = 8  # images per grid step (multiple of 8 -> aligned fc1 row blocks)


# ------------------------------ fused kernel ------------------------------

def _net_kernel(x_ref,
                be1_ref, bo1_ref, se1_ref, so1_ref, brow1_ref,
                be2_ref, bo2_ref, se2_ref, so2_ref, brow2_ref,
                w1_ref, b1_ref, w2_ref, b2_ref, w3_ref, b3_ref,
                o_ref):
    """Whole forward pass for one batch tile of BLOCK_B images.

    x_ref   : (B*32, 128) f32   channel-last input slab (image b = rows b*32..)
    be*/bo* : (5, 128, 128) bf16 banded conv weights (even / odd W columns)
    se*/so* : (rows_out, rows_acc) bf16 0/1 selectors for the H max-pool
    brow*   : (1, 128) f32       conv bias tiled over pooled width
    w1      : (5, 128, 128) bf16 fc1 weights split per conv2 pooled row
    w2, w3  : (128, 128) bf16    fc2 / fc3 weights
    b1..b3  : (1, 128) f32       fc biases
    o_ref   : (B, 128) f32       logits (cols >= 10 are zero padding)
    """
    f32 = jnp.float32
    bf16 = jnp.bfloat16
    bsz = o_ref.shape[0]

    def conv_pool(x, be_ref, bo_ref, se_ref, so_ref, brow_ref):
        # x: (bsz*H_in, 128), image b occupies rows [b*H_in, (b+1)*H_in).
        k = be_ref.shape[0]
        m = se_ref.shape[1]                      # bsz*H_in - (k-1) valid rows
        acc_e = jnp.zeros((m, 128), f32)
        acc_o = jnp.zeros((m, 128), f32)
        for dy in range(k):                      # static unroll (5)
            xs = x[dy:dy + m, :].astype(bf16)
            acc_e = acc_e + jnp.dot(xs, be_ref[dy], preferred_element_type=f32)
            acc_o = acc_o + jnp.dot(xs, bo_ref[dy], preferred_element_type=f32)
        t = jnp.maximum(acc_e, acc_o).astype(bf16)            # pool along W
        p = jnp.maximum(                                      # pool along H
            jnp.dot(se_ref[...], t, preferred_element_type=f32),
            jnp.dot(so_ref[...], t, preferred_element_type=f32))
        return jnp.maximum(p + brow_ref[...], 0.0)            # bias + ReLU

    x = x_ref[...]                                            # (bsz*32, 128)
    a1 = conv_pool(x, be1_ref, bo1_ref, se1_ref, so1_ref, brow1_ref)   # (bsz*14, 128)
    a2 = conv_pool(a1, be2_ref, bo2_ref, se2_ref, so2_ref, brow2_ref)  # (5*bsz, 128)

    # fc1: conv2's pooled rows were emitted h-major (row h*bsz + b), so the
    # per-h blocks are contiguous, 8-aligned slices -> 5 small matmuls.
    a2 = a2.astype(bf16)
    acc = jnp.zeros((bsz, 128), f32)
    for h in range(5):
        acc = acc + jnp.dot(a2[h * bsz:(h + 1) * bsz, :], w1_ref[h],
                            preferred_element_type=f32)
    y = jnp.maximum(acc + b1_ref[...], 0.0).astype(bf16)
    y = jnp.maximum(jnp.dot(y, w2_ref[...], preferred_element_type=f32)
                    + b2_ref[...], 0.0).astype(bf16)
    y = jnp.dot(y, w3_ref[...], preferred_element_type=f32) + b3_ref[...]
    o_ref[...] = y.astype(o_ref.dtype)


# ----------------------- one-time weight repacking (host) -----------------------

def _banded_weights(w, w_in, parity):
    """Torch conv weight (Cout, Cin, K, K) -> (K, 128, 128) bf16 banded matrices.

    Band dy maps channel-last input columns (x_w*Cin + ci) to the conv output
    columns of the given W parity (even/odd), laid out pooled-W-major
    (j*Cout + co).  Summing x[rows shifted by dy] @ band[dy] over dy yields the
    conv outputs; both dims are zero-padded to 128 lanes."""
    cout, cin, k, _ = w.shape
    wo = w_in - k + 1
    assert wo % 2 == 0, "2x2/2 pooling assumes even conv output width"
    wp = wo // 2
    w_np = np.asarray(w, np.float32)
    band = np.zeros((k, 128, 128), np.float32)
    for dy in range(k):
        for dx in range(k):
            blk = w_np[:, :, dy, dx].T                      # (Cin, Cout)
            for j in range(wp):
                r = (2 * j + parity + dx) * cin
                c = j * cout
                band[dy, r:r + cin, c:c + cout] = blk
    return jnp.asarray(band, jnp.bfloat16)


def _pool_selectors(bb, h_in, k, h_major):
    """0/1 selectors implementing the H direction of the 2x2/2 max pool on the
    batch-merged conv accumulator rows (image b at rows [b*h_in, ...))."""
    ho = h_in - k + 1
    assert ho % 2 == 0, "2x2/2 pooling assumes even conv output height"
    hp = ho // 2
    m = bb * h_in - (k - 1)
    se = np.zeros((bb * hp, m), np.float32)
    so = np.zeros((bb * hp, m), np.float32)
    for b in range(bb):
        for j in range(hp):
            r = j * bb + b if h_major else b * hp + j
            se[r, b * h_in + 2 * j] = 1.0
            so[r, b * h_in + 2 * j + 1] = 1.0
    return jnp.asarray(se, jnp.bfloat16), jnp.asarray(so, jnp.bfloat16)


def _bias_row(bias, wp):
    b_np = np.asarray(bias, np.float32)
    row = np.zeros((1, 128), np.float32)
    row[0, :wp * b_np.shape[0]] = np.tile(b_np, wp)
    return jnp.asarray(row)


def _pad2(a, rows, cols=128):
    a_np = np.asarray(a, np.float32)
    out = np.zeros((rows, cols), np.float32)
    out[:a_np.shape[0], :a_np.shape[1]] = a_np
    return out


def prepare_params(p, block_b=BLOCK_B):
    """Repack torch-layout params into the layouts the fused kernel consumes."""
    assert block_b % 8 == 0, "block_b must be a multiple of 8"

    se1, so1 = _pool_selectors(block_b, h_in=32, k=5, h_major=False)  # (B*14, B*32-4)
    se2, so2 = _pool_selectors(block_b, h_in=14, k=5, h_major=True)   # (5*B, B*14-4)

    # fc1 with torch's view(-1, 16*5*5) permutation folded in, split into the
    # 5 pooled-row blocks of conv2's output (input feature = row h, col w*16+c).
    w1 = np.asarray(p["fc1_w"], np.float32).reshape(120, 16, 5, 5)    # (n, c, h, w)
    w1s = np.zeros((5, 128, 128), np.float32)
    for h in range(5):
        blk = np.transpose(w1[:, :, h, :], (2, 1, 0)).reshape(80, 120)  # (w*16+c, n)
        w1s[h, :80, :120] = blk

    return {
        "be1": _banded_weights(p["conv1_w"], 32, 0),
        "bo1": _banded_weights(p["conv1_w"], 32, 1),
        "se1": se1, "so1": so1,
        "brow1": _bias_row(p["conv1_b"], 14),
        "be2": _banded_weights(p["conv2_w"], 14, 0),
        "bo2": _banded_weights(p["conv2_w"], 14, 1),
        "se2": se2, "so2": so2,
        "brow2": _bias_row(p["conv2_b"], 5),
        "w1": jnp.asarray(w1s, jnp.bfloat16),
        "b1": jnp.asarray(_pad2(np.asarray(p["fc1_b"], np.float32).reshape(1, 120), 1)),
        "w2": jnp.asarray(_pad2(np.asarray(p["fc2_w"], np.float32).T, 128), jnp.bfloat16),
        "b2": jnp.asarray(_pad2(np.asarray(p["fc2_b"], np.float32).reshape(1, 84), 1)),
        "w3": jnp.asarray(_pad2(np.asarray(p["fc3_w"], np.float32).T, 128), jnp.bfloat16),
        "b3": jnp.asarray(_pad2(np.asarray(p["fc3_b"], np.float32).reshape(1, 10), 1)),
    }


# ------------------------------- forward pass -------------------------------

def net_forward(x, prep):
    n = x.shape[0]
    bsz = prep["se2"].shape[0] // 5                     # images per grid step
    n_pad = ((n + bsz - 1) // bsz) * bsz

    # NCHW -> channel-last (h, w*3 + c) slab, lanes padded 96 -> 128, batch
    # padded to a multiple of bsz, images stacked along the sublane dim.
    y = jnp.transpose(x, (0, 2, 3, 1)).reshape(n, 32, 96)
    y = jnp.pad(y, ((0, n_pad - n), (0, 0), (0, 32)))
    y = y.reshape(n_pad * 32, 128)

    w = prep
    c2 = lambda i: (0, 0)
    c3 = lambda i: (0, 0, 0)
    full2 = lambda a: pl.BlockSpec(a.shape, c2)
    full3 = lambda a: pl.BlockSpec(a.shape, c3)

    logits = pl.pallas_call(
        _net_kernel,
        out_shape=jax.ShapeDtypeStruct((n_pad, 128), jnp.float32),
        grid=(n_pad // bsz,),
        in_specs=[
            pl.BlockSpec((bsz * 32, 128), lambda i: (i, 0)),
            full3(w["be1"]), full3(w["bo1"]),
            full2(w["se1"]), full2(w["so1"]), full2(w["brow1"]),
            full3(w["be2"]), full3(w["bo2"]),
            full2(w["se2"]), full2(w["so2"]), full2(w["brow2"]),
            full3(w["w1"]), full2(w["b1"]),
            full2(w["w2"]), full2(w["b2"]),
            full2(w["w3"]), full2(w["b3"]),
        ],
        out_specs=pl.BlockSpec((bsz, 128), lambda i: (i, 0)),
        compiler_params=pltpu.CompilerParams(
            dimension_semantics=("parallel",)),      # megacore split on v7x
    )(y, w["be1"], w["bo1"], w["se1"], w["so1"], w["brow1"],
      w["be2"], w["bo2"], w["se2"], w["so2"], w["brow2"],
      w["w1"], w["b1"], w["w2"], w["b2"], w["w3"], w["b3"])
    return logits[:n, :10]


def net_forward_ref(x, p):
    """Pure-JAX reference of the same forward pass (sanity check)."""
    def conv(xx, w, b):
        y = jax.lax.conv_general_dilated(
            xx, w, (1, 1), "VALID", dimension_numbers=("NCHW", "OIHW", "NCHW"))
        return jax.nn.relu(y + b[None, :, None, None])

    def pool(xx):
        return jax.lax.reduce_window(xx, -jnp.inf, jax.lax.max,
                                     (1, 1, 2, 2), (1, 1, 2, 2), "VALID")

    y = pool(conv(x, p["conv1_w"], p["conv1_b"]))
    y = pool(conv(y, p["conv2_w"], p["conv2_b"]))
    y = y.reshape(y.shape[0], -1)
    y = jax.nn.relu(y @ p["fc1_w"].T + p["fc1_b"])
    y = jax.nn.relu(y @ p["fc2_w"].T + p["fc2_b"])
    return y @ p["fc3_w"].T + p["fc3_b"]


def init_params(key):
    ks = jax.random.split(key, 10)

    def rnd(k, shape, scale):
        return (scale * jax.random.normal(k, shape)).astype(jnp.float32)

    return {
        "conv1_w": rnd(ks[0], (6, 3, 5, 5), 0.10),
        "conv1_b": rnd(ks[1], (6,), 0.10),
        "conv2_w": rnd(ks[2], (16, 6, 5, 5), 0.10),
        "conv2_b": rnd(ks[3], (16,), 0.10),
        "fc1_w": rnd(ks[4], (120, 400), 0.05),   # torch Linear: (out, in)
        "fc1_b": rnd(ks[5], (120,), 0.05),
        "fc2_w": rnd(ks[6], (84, 120), 0.05),
        "fc2_b": rnd(ks[7], (84,), 0.05),
        "fc3_w": rnd(ks[8], (10, 84), 0.05),
        "fc3_b": rnd(ks[9], (10,), 0.05),
    }


if __name__ == "__main__":
    x = jax.random.normal(jax.random.PRNGKey(0), (2, 3, 32, 32), dtype=jnp.float32)
    params = init_params(jax.random.PRNGKey(42))
    prep = prepare_params(params)            # one-time host-side weight repack

    fwd = jax.jit(net_forward)
    out = jax.block_until_ready(fwd(x, prep))
    assert out.shape == (2, 10) and out.dtype == jnp.float32

    ref = jax.block_until_ready(net_forward_ref(x, params))
    assert jnp.allclose(out, ref, atol=2.5e-2, rtol=2.5e-2), "mismatch vs reference"

    print("KERNEL_OK")
</pallas_src>

<mosaic_0001>
module attributes {stable_mosaic.version = 11 : i64} {
  func.func @_net_kernel(%arg0: i32, %arg1: memref<256x128xf32, #tpu.memory_space<vmem>>, %arg2: memref<5x128x128xbf16, #tpu.memory_space<vmem>>, %arg3: memref<5x128x128xbf16, #tpu.memory_space<vmem>>, %arg4: memref<112x252xbf16, #tpu.memory_space<vmem>>, %arg5: memref<112x252xbf16, #tpu.memory_space<vmem>>, %arg6: memref<1x128xf32, #tpu.memory_space<vmem>>, %arg7: memref<5x128x128xbf16, #tpu.memory_space<vmem>>, %arg8: memref<5x128x128xbf16, #tpu.memory_space<vmem>>, %arg9: memref<40x108xbf16, #tpu.memory_space<vmem>>, %arg10: memref<40x108xbf16, #tpu.memory_space<vmem>>, %arg11: memref<1x128xf32, #tpu.memory_space<vmem>>, %arg12: memref<5x128x128xbf16, #tpu.memory_space<vmem>>, %arg13: memref<1x128xf32, #tpu.memory_space<vmem>>, %arg14: memref<128x128xbf16, #tpu.memory_space<vmem>>, %arg15: memref<1x128xf32, #tpu.memory_space<vmem>>, %arg16: memref<128x128xbf16, #tpu.memory_space<vmem>>, %arg17: memref<1x128xf32, #tpu.memory_space<vmem>>, %arg18: memref<8x128xf32, #tpu.memory_space<vmem>>) attributes {dimension_semantics = [#tpu.dimension_semantics<parallel>], iteration_bounds = array<i64: 1>, scalar_prefetch = 0 : i64, scratch_operands = 0 : i64, tpu.core_type = #tpu.core_type<tc>, window_params = [{transform_indices = @transform_0, window_bounds = array<i64: 256, 128>}, {pipeline_mode = #tpu.pipeline_mode<synchronous>, transform_indices = @transform_1, window_bounds = array<i64: 5, 128, 128>}, {pipeline_mode = #tpu.pipeline_mode<synchronous>, transform_indices = @transform_2, window_bounds = array<i64: 5, 128, 128>}, {pipeline_mode = #tpu.pipeline_mode<synchronous>, transform_indices = @transform_3, window_bounds = array<i64: 112, 252>}, {pipeline_mode = #tpu.pipeline_mode<synchronous>, transform_indices = @transform_4, window_bounds = array<i64: 112, 252>}, {pipeline_mode = #tpu.pipeline_mode<synchronous>, transform_indices = @transform_5, window_bounds = array<i64: 1, 128>}, {pipeline_mode = #tpu.pipeline_mode<synchronous>, transform_indices = @transform_6, window_bounds = array<i64: 5, 128, 128>}, {pipeline_mode = #tpu.pipeline_mode<synchronous>, transform_indices = @transform_7, window_bounds = array<i64: 5, 128, 128>}, {pipeline_mode = #tpu.pipeline_mode<synchronous>, transform_indices = @transform_8, window_bounds = array<i64: 40, 108>}, {pipeline_mode = #tpu.pipeline_mode<synchronous>, transform_indices = @transform_9, window_bounds = array<i64: 40, 108>}, {pipeline_mode = #tpu.pipeline_mode<synchronous>, transform_indices = @transform_10, window_bounds = array<i64: 1, 128>}, {pipeline_mode = #tpu.pipeline_mode<synchronous>, transform_indices = @transform_11, window_bounds = array<i64: 5, 128, 128>}, {pipeline_mode = #tpu.pipeline_mode<synchronous>, transform_indices = @transform_12, window_bounds = array<i64: 1, 128>}, {pipeline_mode = #tpu.pipeline_mode<synchronous>, transform_indices = @transform_13, window_bounds = array<i64: 128, 128>}, {pipeline_mode = #tpu.pipeline_mode<synchronous>, transform_indices = @transform_14, window_bounds = array<i64: 1, 128>}, {pipeline_mode = #tpu.pipeline_mode<synchronous>, transform_indices = @transform_15, window_bounds = array<i64: 128, 128>}, {pipeline_mode = #tpu.pipeline_mode<synchronous>, transform_indices = @transform_16, window_bounds = array<i64: 1, 128>}, {transform_indices = @transform_17, window_bounds = array<i64: 8, 128>}]} {
    %c0 = arith.constant 0 : index
    %c0_0 = arith.constant 0 : index
    %0 = vector.load %arg1[%c0, %c0_0] : memref<256x128xf32, #tpu.memory_space<vmem>>, vector<256x128xf32>
    %cst = arith.constant 0.000000e+00 : f32
    %1 = vector.broadcast %cst : f32 to vector<252x128xf32>
    %cst_1 = arith.constant 0.000000e+00 : f32
    %2 = vector.broadcast %cst_1 : f32 to vector<252x128xf32>
    %3 = vector.extract_strided_slice %0 {offsets = [0, 0], sizes = [252, 128], strides = [1, 1]} : vector<256x128xf32> to vector<252x128xf32>
    %4 = arith.truncf %3 : vector<252x128xf32> to vector<252x128xbf16>
    %c0_2 = arith.constant 0 : index
    %c0_3 = arith.constant 0 : index
    %c0_4 = arith.constant 0 : index
    %5 = vector.load %arg2[%c0_2, %c0_3, %c0_4] : memref<5x128x128xbf16, #tpu.memory_space<vmem>>, vector<1x128x128xbf16>
    %6 = vector.shape_cast %5 : vector<1x128x128xbf16> to vector<128x128xbf16>
    %cst_5 = arith.constant dense<0.000000e+00> : vector<252x128xf32>
    %7 = tpu.matmul %4, %6, %cst_5 {dimension_numbers = #tpu.dot_dimension_numbers<[1], [0], [0], [1], [0, 0, 1, 1], [], []>} : vector<252x128xbf16>, vector<128x128xbf16>, vector<252x128xf32> -> vector<252x128xf32>
    %8 = arith.addf %1, %7 : vector<252x128xf32>
    %c0_6 = arith.constant 0 : index
    %c0_7 = arith.constant 0 : index
    %c0_8 = arith.constant 0 : index
    %9 = vector.load %arg3[%c0_6, %c0_7, %c0_8] : memref<5x128x128xbf16, #tpu.memory_space<vmem>>, vector<1x128x128xbf16>
    %10 = vector.shape_cast %9 : vector<1x128x128xbf16> to vector<128x128xbf16>
    %cst_9 = arith.constant dense<0.000000e+00> : vector<252x128xf32>
    %11 = tpu.matmul %4, %10, %cst_9 {dimension_numbers = #tpu.dot_dimension_numbers<[1], [0], [0], [1], [0, 0, 1, 1], [], []>} : vector<252x128xbf16>, vector<128x128xbf16>, vector<252x128xf32> -> vector<252x128xf32>
    %12 = arith.addf %2, %11 : vector<252x128xf32>
    %13 = vector.extract_strided_slice %0 {offsets = [1, 0], sizes = [252, 128], strides = [1, 1]} : vector<256x128xf32> to vector<252x128xf32>
    %14 = arith.truncf %13 : vector<252x128xf32> to vector<252x128xbf16>
    %c1 = arith.constant 1 : index
    %c0_10 = arith.constant 0 : index
    %c0_11 = arith.constant 0 : index
    %15 = vector.load %arg2[%c1, %c0_10, %c0_11] : memref<5x128x128xbf16, #tpu.memory_space<vmem>>, vector<1x128x128xbf16>
    %16 = vector.shape_cast %15 : vector<1x128x128xbf16> to vector<128x128xbf16>
    %cst_12 = arith.constant dense<0.000000e+00> : vector<252x128xf32>
    %17 = tpu.matmul %14, %16, %cst_12 {dimension_numbers = #tpu.dot_dimension_numbers<[1], [0], [0], [1], [0, 0, 1, 1], [], []>} : vector<252x128xbf16>, vector<128x128xbf16>, vector<252x128xf32> -> vector<252x128xf32>
    %18 = arith.addf %8, %17 : vector<252x128xf32>
    %c1_13 = arith.constant 1 : index
    %c0_14 = arith.constant 0 : index
    %c0_15 = arith.constant 0 : index
    %19 = vector.load %arg3[%c1_13, %c0_14, %c0_15] : memref<5x128x128xbf16, #tpu.memory_space<vmem>>, vector<1x128x128xbf16>
    %20 = vector.shape_cast %19 : vector<1x128x128xbf16> to vector<128x128xbf16>
    %cst_16 = arith.constant dense<0.000000e+00> : vector<252x128xf32>
    %21 = tpu.matmul %14, %20, %cst_16 {dimension_numbers = #tpu.dot_dimension_numbers<[1], [0], [0], [1], [0, 0, 1, 1], [], []>} : vector<252x128xbf16>, vector<128x128xbf16>, vector<252x128xf32> -> vector<252x128xf32>
    %22 = arith.addf %12, %21 : vector<252x128xf32>
    %23 = vector.extract_strided_slice %0 {offsets = [2, 0], sizes = [252, 128], strides = [1, 1]} : vector<256x128xf32> to vector<252x128xf32>
    %24 = arith.truncf %23 : vector<252x128xf32> to vector<252x128xbf16>
    %c2 = arith.constant 2 : index
    %c0_17 = arith.constant 0 : index
    %c0_18 = arith.constant 0 : index
    %25 = vector.load %arg2[%c2, %c0_17, %c0_18] : memref<5x128x128xbf16, #tpu.memory_space<vmem>>, vector<1x128x128xbf16>
    %26 = vector.shape_cast %25 : vector<1x128x128xbf16> to vector<128x128xbf16>
    %cst_19 = arith.constant dense<0.000000e+00> : vector<252x128xf32>
    %27 = tpu.matmul %24, %26, %cst_19 {dimension_numbers = #tpu.dot_dimension_numbers<[1], [0], [0], [1], [0, 0, 1, 1], [], []>} : vector<252x128xbf16>, vector<128x128xbf16>, vector<252x128xf32> -> vector<252x128xf32>
    %28 = arith.addf %18, %27 : vector<252x128xf32>
    %c2_20 = arith.constant 2 : index
    %c0_21 = arith.constant 0 : index
    %c0_22 = arith.constant 0 : index
    %29 = vector.load %arg3[%c2_20, %c0_21, %c0_22] : memref<5x128x128xbf16, #tpu.memory_space<vmem>>, vector<1x128x128xbf16>
    %30 = vector.shape_cast %29 : vector<1x128x128xbf16> to vector<128x128xbf16>
    %cst_23 = arith.constant dense<0.000000e+00> : vector<252x128xf32>
    %31 = tpu.matmul %24, %30, %cst_23 {dimension_numbers = #tpu.dot_dimension_numbers<[1], [0], [0], [1], [0, 0, 1, 1], [], []>} : vector<252x128xbf16>, vector<128x128xbf16>, vector<252x128xf32> -> vector<252x128xf32>
    %32 = arith.addf %22, %31 : vector<252x128xf32>
    %33 = vector.extract_strided_slice %0 {offsets = [3, 0], sizes = [252, 128], strides = [1, 1]} : vector<256x128xf32> to vector<252x128xf32>
    %34 = arith.truncf %33 : vector<252x128xf32> to vector<252x128xbf16>
    %c3 = arith.constant 3 : index
    %c0_24 = arith.constant 0 : index
    %c0_25 = arith.constant 0 : index
    %35 = vector.load %arg2[%c3, %c0_24, %c0_25] : memref<5x128x128xbf16, #tpu.memory_space<vmem>>, vector<1x128x128xbf16>
    %36 = vector.shape_cast %35 : vector<1x128x128xbf16> to vector<128x128xbf16>
    %cst_26 = arith.constant dense<0.000000e+00> : vector<252x128xf32>
    %37 = tpu.matmul %34, %36, %cst_26 {dimension_numbers = #tpu.dot_dimension_numbers<[1], [0], [0], [1], [0, 0, 1, 1], [], []>} : vector<252x128xbf16>, vector<128x128xbf16>, vector<252x128xf32> -> vector<252x128xf32>
    %38 = arith.addf %28, %37 : vector<252x128xf32>
    %c3_27 = arith.constant 3 : index
    %c0_28 = arith.constant 0 : index
    %c0_29 = arith.constant 0 : index
    %39 = vector.load %arg3[%c3_27, %c0_28, %c0_29] : memref<5x128x128xbf16, #tpu.memory_space<vmem>>, vector<1x128x128xbf16>
    %40 = vector.shape_cast %39 : vector<1x128x128xbf16> to vector<128x128xbf16>
    %cst_30 = arith.constant dense<0.000000e+00> : vector<252x128xf32>
    %41 = tpu.matmul %34, %40, %cst_30 {dimension_numbers = #tpu.dot_dimension_numbers<[1], [0], [0], [1], [0, 0, 1, 1], [], []>} : vector<252x128xbf16>, vector<128x128xbf16>, vector<252x128xf32> -> vector<252x128xf32>
    %42 = arith.addf %32, %41 : vector<252x128xf32>
    %43 = vector.extract_strided_slice %0 {offsets = [4, 0], sizes = [252, 128], strides = [1, 1]} : vector<256x128xf32> to vector<252x128xf32>
    %44 = arith.truncf %43 : vector<252x128xf32> to vector<252x128xbf16>
    %c4 = arith.constant 4 : index
    %c0_31 = arith.constant 0 : index
    %c0_32 = arith.constant 0 : index
    %45 = vector.load %arg2[%c4, %c0_31, %c0_32] : memref<5x128x128xbf16, #tpu.memory_space<vmem>>, vector<1x128x128xbf16>
    %46 = vector.shape_cast %45 : vector<1x128x128xbf16> to vector<128x128xbf16>
    %cst_33 = arith.constant dense<0.000000e+00> : vector<252x128xf32>
    %47 = tpu.matmul %44, %46, %cst_33 {dimension_numbers = #tpu.dot_dimension_numbers<[1], [0], [0], [1], [0, 0, 1, 1], [], []>} : vector<252x128xbf16>, vector<128x128xbf16>, vector<252x128xf32> -> vector<252x128xf32>
    %48 = arith.addf %38, %47 : vector<252x128xf32>
    %c4_34 = arith.constant 4 : index
    %c0_35 = arith.constant 0 : index
    %c0_36 = arith.constant 0 : index
    %49 = vector.load %arg3[%c4_34, %c0_35, %c0_36] : memref<5x128x128xbf16, #tpu.memory_space<vmem>>, vector<1x128x128xbf16>
    %50 = vector.shape_cast %49 : vector<1x128x128xbf16> to vector<128x128xbf16>
    %cst_37 = arith.constant dense<0.000000e+00> : vector<252x128xf32>
    %51 = tpu.matmul %44, %50, %cst_37 {dimension_numbers = #tpu.dot_dimension_numbers<[1], [0], [0], [1], [0, 0, 1, 1], [], []>} : vector<252x128xbf16>, vector<128x128xbf16>, vector<252x128xf32> -> vector<252x128xf32>
    %52 = arith.addf %42, %51 : vector<252x128xf32>
    %53 = arith.maximumf %48, %52 : vector<252x128xf32>
    %54 = arith.truncf %53 : vector<252x128xf32> to vector<252x128xbf16>
    %c0_38 = arith.constant 0 : index
    %c0_39 = arith.constant 0 : index
    %55 = vector.load %arg4[%c0_38, %c0_39] : memref<112x252xbf16, #tpu.memory_space<vmem>>, vector<112x252xbf16>
    %cst_40 = arith.constant dense<0.000000e+00> : vector<112x128xf32>
    %56 = tpu.matmul %55, %54, %cst_40 {dimension_numbers = #tpu.dot_dimension_numbers<[1], [0], [0], [1], [0, 0, 1, 1], [], []>} : vector<112x252xbf16>, vector<252x128xbf16>, vector<112x128xf32> -> vector<112x128xf32>
    %c0_41 = arith.constant 0 : index
    %c0_42 = arith.constant 0 : index
    %57 = vector.load %arg5[%c0_41, %c0_42] : memref<112x252xbf16, #tpu.memory_space<vmem>>, vector<112x252xbf16>
    %cst_43 = arith.constant dense<0.000000e+00> : vector<112x128xf32>
    %58 = tpu.matmul %57, %54, %cst_43 {dimension_numbers = #tpu.dot_dimension_numbers<[1], [0], [0], [1], [0, 0, 1, 1], [], []>} : vector<112x252xbf16>, vector<252x128xbf16>, vector<112x128xf32> -> vector<112x128xf32>
    %59 = arith.maximumf %56, %58 : vector<112x128xf32>
    %c0_44 = arith.constant 0 : index
    %c0_45 = arith.constant 0 : index
    %60 = vector.load %arg6[%c0_44, %c0_45] : memref<1x128xf32, #tpu.memory_space<vmem>>, vector<1x128xf32>
    %61 = vector.broadcast %60 : vector<1x128xf32> to vector<112x128xf32>
    %62 = arith.addf %59, %61 : vector<112x128xf32>
    %cst_46 = arith.constant 0.000000e+00 : f32
    %63 = vector.broadcast %cst_46 : f32 to vector<112x128xf32>
    %64 = arith.maximumf %62, %63 : vector<112x128xf32>
    %cst_47 = arith.constant 0.000000e+00 : f32
    %65 = vector.broadcast %cst_47 : f32 to vector<108x128xf32>
    %cst_48 = arith.constant 0.000000e+00 : f32
    %66 = vector.broadcast %cst_48 : f32 to vector<108x128xf32>
    %67 = vector.extract_strided_slice %64 {offsets = [0, 0], sizes = [108, 128], strides = [1, 1]} : vector<112x128xf32> to vector<108x128xf32>
    %68 = arith.truncf %67 : vector<108x128xf32> to vector<108x128xbf16>
    %c0_49 = arith.constant 0 : index
    %c0_50 = arith.constant 0 : index
    %c0_51 = arith.constant 0 : index
    %69 = vector.load %arg7[%c0_49, %c0_50, %c0_51] : memref<5x128x128xbf16, #tpu.memory_space<vmem>>, vector<1x128x128xbf16>
    %70 = vector.shape_cast %69 : vector<1x128x128xbf16> to vector<128x128xbf16>
    %cst_52 = arith.constant dense<0.000000e+00> : vector<108x128xf32>
    %71 = tpu.matmul %68, %70, %cst_52 {dimension_numbers = #tpu.dot_dimension_numbers<[1], [0], [0], [1], [0, 0, 1, 1], [], []>} : vector<108x128xbf16>, vector<128x128xbf16>, vector<108x128xf32> -> vector<108x128xf32>
    %72 = arith.addf %65, %71 : vector<108x128xf32>
    %c0_53 = arith.constant 0 : index
    %c0_54 = arith.constant 0 : index
    %c0_55 = arith.constant 0 : index
    %73 = vector.load %arg8[%c0_53, %c0_54, %c0_55] : memref<5x128x128xbf16, #tpu.memory_space<vmem>>, vector<1x128x128xbf16>
    %74 = vector.shape_cast %73 : vector<1x128x128xbf16> to vector<128x128xbf16>
    %cst_56 = arith.constant dense<0.000000e+00> : vector<108x128xf32>
    %75 = tpu.matmul %68, %74, %cst_56 {dimension_numbers = #tpu.dot_dimension_numbers<[1], [0], [0], [1], [0, 0, 1, 1], [], []>} : vector<108x128xbf16>, vector<128x128xbf16>, vector<108x128xf32> -> vector<108x128xf32>
    %76 = arith.addf %66, %75 : vector<108x128xf32>
    %77 = vector.extract_strided_slice %64 {offsets = [1, 0], sizes = [108, 128], strides = [1, 1]} : vector<112x128xf32> to vector<108x128xf32>
    %78 = arith.truncf %77 : vector<108x128xf32> to vector<108x128xbf16>
    %c1_57 = arith.constant 1 : index
    %c0_58 = arith.constant 0 : index
    %c0_59 = arith.constant 0 : index
    %79 = vector.load %arg7[%c1_57, %c0_58, %c0_59] : memref<5x128x128xbf16, #tpu.memory_space<vmem>>, vector<1x128x128xbf16>
    %80 = vector.shape_cast %79 : vector<1x128x128xbf16> to vector<128x128xbf16>
    %cst_60 = arith.constant dense<0.000000e+00> : vector<108x128xf32>
    %81 = tpu.matmul %78, %80, %cst_60 {dimension_numbers = #tpu.dot_dimension_numbers<[1], [0], [0], [1], [0, 0, 1, 1], [], []>} : vector<108x128xbf16>, vector<128x128xbf16>, vector<108x128xf32> -> vector<108x128xf32>
    %82 = arith.addf %72, %81 : vector<108x128xf32>
    %c1_61 = arith.constant 1 : index
    %c0_62 = arith.constant 0 : index
    %c0_63 = arith.constant 0 : index
    %83 = vector.load %arg8[%c1_61, %c0_62, %c0_63] : memref<5x128x128xbf16, #tpu.memory_space<vmem>>, vector<1x128x128xbf16>
    %84 = vector.shape_cast %83 : vector<1x128x128xbf16> to vector<128x128xbf16>
    %cst_64 = arith.constant dense<0.000000e+00> : vector<108x128xf32>
    %85 = tpu.matmul %78, %84, %cst_64 {dimension_numbers = #tpu.dot_dimension_numbers<[1], [0], [0], [1], [0, 0, 1, 1], [], []>} : vector<108x128xbf16>, vector<128x128xbf16>, vector<108x128xf32> -> vector<108x128xf32>
    %86 = arith.addf %76, %85 : vector<108x128xf32>
    %87 = vector.extract_strided_slice %64 {offsets = [2, 0], sizes = [108, 128], strides = [1, 1]} : vector<112x128xf32> to vector<108x128xf32>
    %88 = arith.truncf %87 : vector<108x128xf32> to vector<108x128xbf16>
    %c2_65 = arith.constant 2 : index
    %c0_66 = arith.constant 0 : index
    %c0_67 = arith.constant 0 : index
    %89 = vector.load %arg7[%c2_65, %c0_66, %c0_67] : memref<5x128x128xbf16, #tpu.memory_space<vmem>>, vector<1x128x128xbf16>
    %90 = vector.shape_cast %89 : vector<1x128x128xbf16> to vector<128x128xbf16>
    %cst_68 = arith.constant dense<0.000000e+00> : vector<108x128xf32>
    %91 = tpu.matmul %88, %90, %cst_68 {dimension_numbers = #tpu.dot_dimension_numbers<[1], [0], [0], [1], [0, 0, 1, 1], [], []>} : vector<108x128xbf16>, vector<128x128xbf16>, vector<108x128xf32> -> vector<108x128xf32>
    %92 = arith.addf %82, %91 : vector<108x128xf32>
    %c2_69 = arith.constant 2 : index
    %c0_70 = arith.constant 0 : index
    %c0_71 = arith.constant 0 : index
    %93 = vector.load %arg8[%c2_69, %c0_70, %c0_71] : memref<5x128x128xbf16, #tpu.memory_space<vmem>>, vector<1x128x128xbf16>
    %94 = vector.shape_cast %93 : vector<1x128x128xbf16> to vector<128x128xbf16>
    %cst_72 = arith.constant dense<0.000000e+00> : vector<108x128xf32>
    %95 = tpu.matmul %88, %94, %cst_72 {dimension_numbers = #tpu.dot_dimension_numbers<[1], [0], [0], [1], [0, 0, 1, 1], [], []>} : vector<108x128xbf16>, vector<128x128xbf16>, vector<108x128xf32> -> vector<108x128xf32>
    %96 = arith.addf %86, %95 : vector<108x128xf32>
    %97 = vector.extract_strided_slice %64 {offsets = [3, 0], sizes = [108, 128], strides = [1, 1]} : vector<112x128xf32> to vector<108x128xf32>
    %98 = arith.truncf %97 : vector<108x128xf32> to vector<108x128xbf16>
    %c3_73 = arith.constant 3 : index
    %c0_74 = arith.constant 0 : index
    %c0_75 = arith.constant 0 : index
    %99 = vector.load %arg7[%c3_73, %c0_74, %c0_75] : memref<5x128x128xbf16, #tpu.memory_space<vmem>>, vector<1x128x128xbf16>
    %100 = vector.shape_cast %99 : vector<1x128x128xbf16> to vector<128x128xbf16>
    %cst_76 = arith.constant dense<0.000000e+00> : vector<108x128xf32>
    %101 = tpu.matmul %98, %100, %cst_76 {dimension_numbers = #tpu.dot_dimension_numbers<[1], [0], [0], [1], [0, 0, 1, 1], [], []>} : vector<108x128xbf16>, vector<128x128xbf16>, vector<108x128xf32> -> vector<108x128xf32>
    %102 = arith.addf %92, %101 : vector<108x128xf32>
    %c3_77 = arith.constant 3 : index
    %c0_78 = arith.constant 0 : index
    %c0_79 = arith.constant 0 : index
    %103 = vector.load %arg8[%c3_77, %c0_78, %c0_79] : memref<5x128x128xbf16, #tpu.memory_space<vmem>>, vector<1x128x128xbf16>
    %104 = vector.shape_cast %103 : vector<1x128x128xbf16> to vector<128x128xbf16>
    %cst_80 = arith.constant dense<0.000000e+00> : vector<108x128xf32>
    %105 = tpu.matmul %98, %104, %cst_80 {dimension_numbers = #tpu.dot_dimension_numbers<[1], [0], [0], [1], [0, 0, 1, 1], [], []>} : vector<108x128xbf16>, vector<128x128xbf16>, vector<108x128xf32> -> vector<108x128xf32>
    %106 = arith.addf %96, %105 : vector<108x128xf32>
    %107 = vector.extract_strided_slice %64 {offsets = [4, 0], sizes = [108, 128], strides = [1, 1]} : vector<112x128xf32> to vector<108x128xf32>
    %108 = arith.truncf %107 : vector<108x128xf32> to vector<108x128xbf16>
    %c4_81 = arith.constant 4 : index
    %c0_82 = arith.constant 0 : index
    %c0_83 = arith.constant 0 : index
    %109 = vector.load %arg7[%c4_81, %c0_82, %c0_83] : memref<5x128x128xbf16, #tpu.memory_space<vmem>>, vector<1x128x128xbf16>
    %110 = vector.shape_cast %109 : vector<1x128x128xbf16> to vector<128x128xbf16>
    %cst_84 = arith.constant dense<0.000000e+00> : vector<108x128xf32>
    %111 = tpu.matmul %108, %110, %cst_84 {dimension_numbers = #tpu.dot_dimension_numbers<[1], [0], [0], [1], [0, 0, 1, 1], [], []>} : vector<108x128xbf16>, vector<128x128xbf16>, vector<108x128xf32> -> vector<108x128xf32>
    %112 = arith.addf %102, %111 : vector<108x128xf32>
    %c4_85 = arith.constant 4 : index
    %c0_86 = arith.constant 0 : index
    %c0_87 = arith.constant 0 : index
    %113 = vector.load %arg8[%c4_85, %c0_86, %c0_87] : memref<5x128x128xbf16, #tpu.memory_space<vmem>>, vector<1x128x128xbf16>
    %114 = vector.shape_cast %113 : vector<1x128x128xbf16> to vector<128x128xbf16>
    %cst_88 = arith.constant dense<0.000000e+00> : vector<108x128xf32>
    %115 = tpu.matmul %108, %114, %cst_88 {dimension_numbers = #tpu.dot_dimension_numbers<[1], [0], [0], [1], [0, 0, 1, 1], [], []>} : vector<108x128xbf16>, vector<128x128xbf16>, vector<108x128xf32> -> vector<108x128xf32>
    %116 = arith.addf %106, %115 : vector<108x128xf32>
    %117 = arith.maximumf %112, %116 : vector<108x128xf32>
    %118 = arith.truncf %117 : vector<108x128xf32> to vector<108x128xbf16>
    %c0_89 = arith.constant 0 : index
    %c0_90 = arith.constant 0 : index
    %119 = vector.load %arg9[%c0_89, %c0_90] : memref<40x108xbf16, #tpu.memory_space<vmem>>, vector<40x108xbf16>
    %cst_91 = arith.constant dense<0.000000e+00> : vector<40x128xf32>
    %120 = tpu.matmul %119, %118, %cst_91 {dimension_numbers = #tpu.dot_dimension_numbers<[1], [0], [0], [1], [0, 0, 1, 1], [], []>} : vector<40x108xbf16>, vector<108x128xbf16>, vector<40x128xf32> -> vector<40x128xf32>
    %c0_92 = arith.constant 0 : index
    %c0_93 = arith.constant 0 : index
    %121 = vector.load %arg10[%c0_92, %c0_93] : memref<40x108xbf16, #tpu.memory_space<vmem>>, vector<40x108xbf16>
    %cst_94 = arith.constant dense<0.000000e+00> : vector<40x128xf32>
    %122 = tpu.matmul %121, %118, %cst_94 {dimension_numbers = #tpu.dot_dimension_numbers<[1], [0], [0], [1], [0, 0, 1, 1], [], []>} : vector<40x108xbf16>, vector<108x128xbf16>, vector<40x128xf32> -> vector<40x128xf32>
    %123 = arith.maximumf %120, %122 : vector<40x128xf32>
    %c0_95 = arith.constant 0 : index
    %c0_96 = arith.constant 0 : index
    %124 = vector.load %arg11[%c0_95, %c0_96] : memref<1x128xf32, #tpu.memory_space<vmem>>, vector<1x128xf32>
    %125 = vector.broadcast %124 : vector<1x128xf32> to vector<40x128xf32>
    %126 = arith.addf %123, %125 : vector<40x128xf32>
    %cst_97 = arith.constant 0.000000e+00 : f32
    %127 = vector.broadcast %cst_97 : f32 to vector<40x128xf32>
    %128 = arith.maximumf %126, %127 : vector<40x128xf32>
    %129 = arith.truncf %128 : vector<40x128xf32> to vector<40x128xbf16>
    %cst_98 = arith.constant 0.000000e+00 : f32
    %130 = vector.broadcast %cst_98 : f32 to vector<8x128xf32>
    %131 = vector.extract_strided_slice %129 {offsets = [0, 0], sizes = [8, 128], strides = [1, 1]} : vector<40x128xbf16> to vector<8x128xbf16>
    %c0_99 = arith.constant 0 : index
    %c0_100 = arith.constant 0 : index
    %c0_101 = arith.constant 0 : index
    %132 = vector.load %arg12[%c0_99, %c0_100, %c0_101] : memref<5x128x128xbf16, #tpu.memory_space<vmem>>, vector<1x128x128xbf16>
    %133 = vector.shape_cast %132 : vector<1x128x128xbf16> to vector<128x128xbf16>
    %cst_102 = arith.constant dense<0.000000e+00> : vector<8x128xf32>
    %134 = tpu.matmul %131, %133, %cst_102 {dimension_numbers = #tpu.dot_dimension_numbers<[1], [0], [0], [1], [0, 0, 1, 1], [], []>} : vector<8x128xbf16>, vector<128x128xbf16>, vector<8x128xf32> -> vector<8x128xf32>
    %135 = arith.addf %130, %134 : vector<8x128xf32>
    %136 = vector.extract_strided_slice %129 {offsets = [8, 0], sizes = [8, 128], strides = [1, 1]} : vector<40x128xbf16> to vector<8x128xbf16>
    %c1_103 = arith.constant 1 : index
    %c0_104 = arith.constant 0 : index
    %c0_105 = arith.constant 0 : index
    %137 = vector.load %arg12[%c1_103, %c0_104, %c0_105] : memref<5x128x128xbf16, #tpu.memory_space<vmem>>, vector<1x128x128xbf16>
    %138 = vector.shape_cast %137 : vector<1x128x128xbf16> to vector<128x128xbf16>
    %cst_106 = arith.constant dense<0.000000e+00> : vector<8x128xf32>
    %139 = tpu.matmul %136, %138, %cst_106 {dimension_numbers = #tpu.dot_dimension_numbers<[1], [0], [0], [1], [0, 0, 1, 1], [], []>} : vector<8x128xbf16>, vector<128x128xbf16>, vector<8x128xf32> -> vector<8x128xf32>
    %140 = arith.addf %135, %139 : vector<8x128xf32>
    %141 = vector.extract_strided_slice %129 {offsets = [16, 0], sizes = [8, 128], strides = [1, 1]} : vector<40x128xbf16> to vector<8x128xbf16>
    %c2_107 = arith.constant 2 : index
    %c0_108 = arith.constant 0 : index
    %c0_109 = arith.constant 0 : index
    %142 = vector.load %arg12[%c2_107, %c0_108, %c0_109] : memref<5x128x128xbf16, #tpu.memory_space<vmem>>, vector<1x128x128xbf16>
    %143 = vector.shape_cast %142 : vector<1x128x128xbf16> to vector<128x128xbf16>
    %cst_110 = arith.constant dense<0.000000e+00> : vector<8x128xf32>
    %144 = tpu.matmul %141, %143, %cst_110 {dimension_numbers = #tpu.dot_dimension_numbers<[1], [0], [0], [1], [0, 0, 1, 1], [], []>} : vector<8x128xbf16>, vector<128x128xbf16>, vector<8x128xf32> -> vector<8x128xf32>
    %145 = arith.addf %140, %144 : vector<8x128xf32>
    %146 = vector.extract_strided_slice %129 {offsets = [24, 0], sizes = [8, 128], strides = [1, 1]} : vector<40x128xbf16> to vector<8x128xbf16>
    %c3_111 = arith.constant 3 : index
    %c0_112 = arith.constant 0 : index
    %c0_113 = arith.constant 0 : index
    %147 = vector.load %arg12[%c3_111, %c0_112, %c0_113] : memref<5x128x128xbf16, #tpu.memory_space<vmem>>, vector<1x128x128xbf16>
    %148 = vector.shape_cast %147 : vector<1x128x128xbf16> to vector<128x128xbf16>
    %cst_114 = arith.constant dense<0.000000e+00> : vector<8x128xf32>
    %149 = tpu.matmul %146, %148, %cst_114 {dimension_numbers = #tpu.dot_dimension_numbers<[1], [0], [0], [1], [0, 0, 1, 1], [], []>} : vector<8x128xbf16>, vector<128x128xbf16>, vector<8x128xf32> -> vector<8x128xf32>
    %150 = arith.addf %145, %149 : vector<8x128xf32>
    %151 = vector.extract_strided_slice %129 {offsets = [32, 0], sizes = [8, 128], strides = [1, 1]} : vector<40x128xbf16> to vector<8x128xbf16>
    %c4_115 = arith.constant 4 : index
    %c0_116 = arith.constant 0 : index
    %c0_117 = arith.constant 0 : index
    %152 = vector.load %arg12[%c4_115, %c0_116, %c0_117] : memref<5x128x128xbf16, #tpu.memory_space<vmem>>, vector<1x128x128xbf16>
    %153 = vector.shape_cast %152 : vector<1x128x128xbf16> to vector<128x128xbf16>
    %cst_118 = arith.constant dense<0.000000e+00> : vector<8x128xf32>
    %154 = tpu.matmul %151, %153, %cst_118 {dimension_numbers = #tpu.dot_dimension_numbers<[1], [0], [0], [1], [0, 0, 1, 1], [], []>} : vector<8x128xbf16>, vector<128x128xbf16>, vector<8x128xf32> -> vector<8x128xf32>
    %155 = arith.addf %150, %154 : vector<8x128xf32>
    %c0_119 = arith.constant 0 : index
    %c0_120 = arith.constant 0 : index
    %156 = vector.load %arg13[%c0_119, %c0_120] : memref<1x128xf32, #tpu.memory_space<vmem>>, vector<1x128xf32>
    %157 = vector.broadcast %156 : vector<1x128xf32> to vector<8x128xf32>
    %158 = arith.addf %155, %157 : vector<8x128xf32>
    %cst_121 = arith.constant 0.000000e+00 : f32
    %159 = vector.broadcast %cst_121 : f32 to vector<8x128xf32>
    %160 = arith.maximumf %158, %159 : vector<8x128xf32>
    %161 = arith.truncf %160 : vector<8x128xf32> to vector<8x128xbf16>
    %c0_122 = arith.constant 0 : index
    %c0_123 = arith.constant 0 : index
    %162 = vector.load %arg14[%c0_122, %c0_123] : memref<128x128xbf16, #tpu.memory_space<vmem>>, vector<128x128xbf16>
    %cst_124 = arith.constant dense<0.000000e+00> : vector<8x128xf32>
    %163 = tpu.matmul %161, %162, %cst_124 {dimension_numbers = #tpu.dot_dimension_numbers<[1], [0], [0], [1], [0, 0, 1, 1], [], []>} : vector<8x128xbf16>, vector<128x128xbf16>, vector<8x128xf32> -> vector<8x128xf32>
    %c0_125 = arith.constant 0 : index
    %c0_126 = arith.constant 0 : index
    %164 = vector.load %arg15[%c0_125, %c0_126] : memref<1x128xf32, #tpu.memory_space<vmem>>, vector<1x128xf32>
    %165 = vector.broadcast %164 : vector<1x128xf32> to vector<8x128xf32>
    %166 = arith.addf %163, %165 : vector<8x128xf32>
    %cst_127 = arith.constant 0.000000e+00 : f32
    %167 = vector.broadcast %cst_127 : f32 to vector<8x128xf32>
    %168 = arith.maximumf %166, %167 : vector<8x128xf32>
    %169 = arith.truncf %168 : vector<8x128xf32> to vector<8x128xbf16>
    %c0_128 = arith.constant 0 : index
    %c0_129 = arith.constant 0 : index
    %170 = vector.load %arg16[%c0_128, %c0_129] : memref<128x128xbf16, #tpu.memory_space<vmem>>, vector<128x128xbf16>
    %cst_130 = arith.constant dense<0.000000e+00> : vector<8x128xf32>
    %171 = tpu.matmul %169, %170, %cst_130 {dimension_numbers = #tpu.dot_dimension_numbers<[1], [0], [0], [1], [0, 0, 1, 1], [], []>} : vector<8x128xbf16>, vector<128x128xbf16>, vector<8x128xf32> -> vector<8x128xf32>
    %c0_131 = arith.constant 0 : index
    %c0_132 = arith.constant 0 : index
    %172 = vector.load %arg17[%c0_131, %c0_132] : memref<1x128xf32, #tpu.memory_space<vmem>>, vector<1x128xf32>
    %173 = vector.broadcast %172 : vector<1x128xf32> to vector<8x128xf32>
    %174 = arith.addf %171, %173 : vector<8x128xf32>
    %c0_133 = arith.constant 0 : index
    %c0_134 = arith.constant 0 : index
    %175 = vector.load %arg18[%c0_133, %c0_134] : memref<8x128xf32, #tpu.memory_space<vmem>>, vector<8x128xf32>
    tpu.vector_store %arg18[%c0_133, %c0_134], %174 {strides = array<i32>} : memref<8x128xf32, #tpu.memory_space<vmem>>, vector<8x128xf32>,
    return
  }
  func.func @transform_0(%arg0: i32) -> (i32, i32) {
    %c0_i32 = arith.constant 0 : i32
    %c0_i32_0 = arith.constant 0 : i32
    return %arg0, %c0_i32 : i32, i32
  }
  func.func @transform_1(%arg0: i32) -> (i32, i32, i32) {
    %c0_i32 = arith.constant 0 : i32
    %c0_i32_0 = arith.constant 0 : i32
    %c0_i32_1 = arith.constant 0 : i32
    %c0_i32_2 = arith.constant 0 : i32
    return %c0_i32, %c0_i32_0, %c0_i32_1 : i32, i32, i32
  }
  func.func @transform_2(%arg0: i32) -> (i32, i32, i32) {
    %c0_i32 = arith.constant 0 : i32
    %c0_i32_0 = arith.constant 0 : i32
    %c0_i32_1 = arith.constant 0 : i32
    %c0_i32_2 = arith.constant 0 : i32
    return %c0_i32, %c0_i32_0, %c0_i32_1 : i32, i32, i32
  }
  func.func @transform_3(%arg0: i32) -> (i32, i32) {
    %c0_i32 = arith.constant 0 : i32
    %c0_i32_0 = arith.constant 0 : i32
    %c0_i32_1 = arith.constant 0 : i32
    return %c0_i32, %c0_i32_0 : i32, i32
  }
  func.func @transform_4(%arg0: i32) -> (i32, i32) {
    %c0_i32 = arith.constant 0 : i32
    %c0_i32_0 = arith.constant 0 : i32
    %c0_i32_1 = arith.constant 0 : i32
    return %c0_i32, %c0_i32_0 : i32, i32
  }
  func.func @transform_5(%arg0: i32) -> (i32, i32) {
    %c0_i32 = arith.constant 0 : i32
    %c0_i32_0 = arith.constant 0 : i32
    %c0_i32_1 = arith.constant 0 : i32
    return %c0_i32, %c0_i32_0 : i32, i32
  }
  func.func @transform_6(%arg0: i32) -> (i32, i32, i32) {
    %c0_i32 = arith.constant 0 : i32
    %c0_i32_0 = arith.constant 0 : i32
    %c0_i32_1 = arith.constant 0 : i32
    %c0_i32_2 = arith.constant 0 : i32
    return %c0_i32, %c0_i32_0, %c0_i32_1 : i32, i32, i32
  }
  func.func @transform_7(%arg0: i32) -> (i32, i32, i32) {
    %c0_i32 = arith.constant 0 : i32
    %c0_i32_0 = arith.constant 0 : i32
    %c0_i32_1 = arith.constant 0 : i32
    %c0_i32_2 = arith.constant 0 : i32
    return %c0_i32, %c0_i32_0, %c0_i32_1 : i32, i32, i32
  }
  func.func @transform_8(%arg0: i32) -> (i32, i32) {
    %c0_i32 = arith.constant 0 : i32
    %c0_i32_0 = arith.constant 0 : i32
    %c0_i32_1 = arith.constant 0 : i32
    return %c0_i32, %c0_i32_0 : i32, i32
  }
  func.func @transform_9(%arg0: i32) -> (i32, i32) {
    %c0_i32 = arith.constant 0 : i32
    %c0_i32_0 = arith.constant 0 : i32
    %c0_i32_1 = arith.constant 0 : i32
    return %c0_i32, %c0_i32_0 : i32, i32
  }
  func.func @transform_10(%arg0: i32) -> (i32, i32) {
    %c0_i32 = arith.constant 0 : i32
    %c0_i32_0 = arith.constant 0 : i32
    %c0_i32_1 = arith.constant 0 : i32
    return %c0_i32, %c0_i32_0 : i32, i32
  }
  func.func @transform_11(%arg0: i32) -> (i32, i32, i32) {
    %c0_i32 = arith.constant 0 : i32
    %c0_i32_0 = arith.constant 0 : i32
    %c0_i32_1 = arith.constant 0 : i32
    %c0_i32_2 = arith.constant 0 : i32
    return %c0_i32, %c0_i32_0, %c0_i32_1 : i32, i32, i32
  }
  func.func @transform_12(%arg0: i32) -> (i32, i32) {
    %c0_i32 = arith.constant 0 : i32
    %c0_i32_0 = arith.constant 0 : i32
    %c0_i32_1 = arith.constant 0 : i32
    return %c0_i32, %c0_i32_0 : i32, i32
  }
  func.func @transform_13(%arg0: i32) -> (i32, i32) {
    %c0_i32 = arith.constant 0 : i32
    %c0_i32_0 = arith.constant 0 : i32
    %c0_i32_1 = arith.constant 0 : i32
    return %c0_i32, %c0_i32_0 : i32, i32
  }
  func.func @transform_14(%arg0: i32) -> (i32, i32) {
    %c0_i32 = arith.constant 0 : i32
    %c0_i32_0 = arith.constant 0 : i32
    %c0_i32_1 = arith.constant 0 : i32
    return %c0_i32, %c0_i32_0 : i32, i32
  }
  func.func @transform_15(%arg0: i32) -> (i32, i32) {
    %c0_i32 = arith.constant 0 : i32
    %c0_i32_0 = arith.constant 0 : i32
    %c0_i32_1 = arith.constant 0 : i32
    return %c0_i32, %c0_i32_0 : i32, i32
  }
  func.func @transform_16(%arg0: i32) -> (i32, i32) {
    %c0_i32 = arith.constant 0 : i32
    %c0_i32_0 = arith.constant 0 : i32
    %c0_i32_1 = arith.constant 0 : i32
    return %c0_i32, %c0_i32_0 : i32, i32
  }
  func.func @transform_17(%arg0: i32) -> (i32, i32) {
    %c0_i32 = arith.constant 0 : i32
    %c0_i32_0 = arith.constant 0 : i32
    return %arg0, %c0_i32 : i32, i32
  }
}

</mosaic_0001>

<llo_original>
// kernel: net_forward.1
$region0: #{net_forward.1}
  #allocation0 [shape = 'u32[]', space=smem, size = 0x4, offset = 0x4, fixed_abs, tag = 'smem constant byte address 0x4 - core index']
  #allocation1 [shape = 'u32[144,128]{1,0:T(1,128)}', space=vmem, size = 0x12000, scoped, tag = 'internal scratch']
  %s0 = inlined_call_operand.vmem [shape: f32[256,128], index: 0, kind: input, shape index: {}]
  %s1 = inlined_call_operand.vmem [shape: bf16[5,128,128], index: 1, kind: input, shape index: {}]
  %s2 = inlined_call_operand.vmem [shape: bf16[5,128,128], index: 2, kind: input, shape index: {}]
  %s3 = inlined_call_operand.hbm [shape: bf16[112,252], index: 3, kind: input, shape index: {}]
  %s4 = inlined_call_operand.hbm [shape: bf16[112,252], index: 4, kind: input, shape index: {}]
  %s5 = inlined_call_operand.vmem [shape: f32[1,128], index: 5, kind: input, shape index: {}]
  %s6 = inlined_call_operand.vmem [shape: bf16[5,128,128], index: 6, kind: input, shape index: {}]
  %s7 = inlined_call_operand.hbm [shape: bf16[5,128,128], index: 7, kind: input, shape index: {}]
  %s8 = inlined_call_operand.hbm [shape: bf16[40,108], index: 8, kind: input, shape index: {}]
  %s9 = inlined_call_operand.hbm [shape: bf16[40,108], index: 9, kind: input, shape index: {}]
  %s10 = inlined_call_operand.hbm [shape: f32[1,128], index: 10, kind: input, shape index: {}]
  %s11 = inlined_call_operand.hbm [shape: bf16[5,128,128], index: 11, kind: input, shape index: {}]
  %s12 = inlined_call_operand.hbm [shape: f32[1,128], index: 12, kind: input, shape index: {}]
  %s13 = inlined_call_operand.vmem [shape: bf16[128,128], index: 13, kind: input, shape index: {}]
  %s14 = inlined_call_operand.hbm [shape: f32[1,128], index: 14, kind: input, shape index: {}]
  %s15 = inlined_call_operand.hbm [shape: bf16[128,128], index: 15, kind: input, shape index: {}]
  %s16 = inlined_call_operand.hbm [shape: f32[1,128], index: 16, kind: input, shape index: {}]
  %s17 = inlined_call_operand.vmem [shape: f32[8,128], index: 17, kind: output, shape index: {}]
  %s18 = sld [smem:[#allocation0]]
  $region122: #{net_forward.1} parent=0
    _
  %s20 = ssub.s32 1, %s18
  %s21 = scalar_select 0, %s20, %s18
  $region1: #{net_forward.1} parent=0
    #allocation2 [shape = 'u8[57344]{0}', space=vmem, size = 0xe000, scoped, tag = 'input window, operand 3, single buffered']
    #allocation3 [shape = 's32[1]{0}', space=sflag, size = 0x4, scoped, tag = 'scoped memory for net_forward.1']
    #allocation4 [shape = 'u8[57344]{0}', space=vmem, size = 0xe000, scoped, tag = 'input window, operand 4, single buffered']
    #allocation5 [shape = 's32[1]{0}', space=sflag, size = 0x4, scoped, tag = 'scoped memory for net_forward.1']
    #allocation6 [shape = 'u8[163840]{0}', space=vmem, size = 0x28000, scoped, tag = 'input window, operand 7, single buffered']
    #allocation7 [shape = 'u8[10240]{0}', space=vmem, size = 0x2800, scoped, tag = 'input window, operand 8, single buffered']
    #allocation8 [shape = 's32[1]{0}', space=sflag, size = 0x4, scoped, tag = 'scoped memory for net_forward.1']
    #allocation9 [shape = 'u8[10240]{0}', space=vmem, size = 0x2800, scoped, tag = 'input window, operand 9, single buffered']
    #allocation10 [shape = 'u8[512]{0}', space=vmem, size = 0x400, scoped, tag = 'input window, operand 10, single buffered']
    #allocation11 [shape = 's32[1]{0}', space=sflag, size = 0x4, scoped, tag = 'scoped memory for net_forward.1']
    #allocation12 [shape = 'u8[163840]{0}', space=vmem, size = 0x28000, scoped, tag = 'input window, operand 11, single buffered']
    #allocation13 [shape = 'u8[512]{0}', space=vmem, size = 0x400, scoped, tag = 'input window, operand 12, single buffered']
    #allocation14 [shape = 's32[1]{0}', space=sflag, size = 0x4, scoped, tag = 'scoped memory for net_forward.1']
    #allocation15 [shape = 'u8[512]{0}', space=vmem, size = 0x400, scoped, tag = 'input window, operand 14, single buffered']
    #allocation16 [shape = 'u8[32768]{0}', space=vmem, size = 0x8000, scoped, tag = 'input window, operand 15, single buffered']
    #allocation17 [shape = 's32[1]{0}', space=sflag, size = 0x4, scoped, tag = 'scoped memory for net_forward.1']
    #allocation18 [shape = 'u8[512]{0}', space=vmem, size = 0x400, scoped, tag = 'input window, operand 16, single buffered']
    %22 = vsyncpa [#allocation3], 0
    %23 = vsyncpa [#allocation5], 0
    %24 = vsyncpa [#allocation8], 0
    %25 = vsyncpa [#allocation11], 0
    %26 = vsyncpa [#allocation14], 0
    %27 = vsyncpa [#allocation17], 0
    // Predicated region
    $region2: #{net_forward.1} parent=1 // pred_check
      _
    $region3: #{net_forward.1} parent=1 // pred_check_branch
      %29 = sbr.rel (0) target = $region5
    $region4: #{net_forward.1} parent=1 // pred_region
      _
    $region5: #{net_forward.1} parent=1 // pred_fallthru
      _
    // Predicated region
    $region6: #{net_forward.1} parent=1 // pred_check
      _
    $region7: #{net_forward.1} parent=1 // pred_check_branch
      %31 = sbr.rel (0) target = $region9
    $region8: #{net_forward.1} parent=1 // pred_region
      _
    $region9: #{net_forward.1} parent=1 // pred_fallthru
      _
    // Predicated region
    $region10: #{net_forward.1} parent=1 // pred_check
      _
    $region11: #{net_forward.1} parent=1 // pred_check_branch
      %33 = sbr.rel (0) target = $region13
    $region12: #{net_forward.1} parent=1 // pred_region
      _
    $region13: #{net_forward.1} parent=1 // pred_fallthru
      _
    // Predicated region
    $region14: #{net_forward.1} parent=1 // pred_check
      _
    $region15: #{net_forward.1} parent=1 // pred_check_branch
      %35 = sbr.rel (0) target = $region17
    $region16: #{net_forward.1} parent=1 // pred_region
      %s37 = ssub.s32 1792, 1792
      %38 = vsyncadd [#allocation3], %s37
      %s39 = sshll.u32 [#allocation2], 4
      %s40 = int_to_ptr.vmem [resolvable:$true] %s39
      %45 = dma.hbm_to_vmem [thread:$0]  %s3, 1792, %s40, [#allocation3], 128, 128, 8
    $region17: #{net_forward.1} parent=1 // pred_fallthru
      _
    // Predicated region
    $region18: #{net_forward.1} parent=1 // pred_check
      _
    $region19: #{net_forward.1} parent=1 // pred_check_branch
      %47 = sbr.rel (0) target = $region21
    $region20: #{net_forward.1} parent=1 // pred_region
      %s49 = ssub.s32 1792, 1792
      %50 = vsyncadd [#allocation5], %s49
      %s51 = sshll.u32 [#allocation4], 4
      %s52 = int_to_ptr.vmem [resolvable:$true] %s51
      %57 = dma.hbm_to_vmem [thread:$0]  %s4, 1792, %s52, [#allocation5], 128, 128, 8
    $region21: #{net_forward.1} parent=1 // pred_fallthru
      _
    // Predicated region
    $region22: #{net_forward.1} parent=1 // pred_check
      _
    $region23: #{net_forward.1} parent=1 // pred_check_branch
      %59 = sbr.rel (0) target = $region25
    $region24: #{net_forward.1} parent=1 // pred_region
      _
    $region25: #{net_forward.1} parent=1 // pred_fallthru
      _
    // Predicated region
    $region26: #{net_forward.1} parent=1 // pred_check
      _
    $region27: #{net_forward.1} parent=1 // pred_check_branch
      %61 = sbr.rel (0) target = $region29
    $region28: #{net_forward.1} parent=1 // pred_region
      _
    $region29: #{net_forward.1} parent=1 // pred_fallthru
      _
    // Predicated region
    $region30: #{net_forward.1} parent=1 // pred_check
      _
    $region31: #{net_forward.1} parent=1 // pred_check_branch
      %63 = sbr.rel (0) target = $region33
    $region32: #{net_forward.1} parent=1 // pred_region
      %s65 = ssub.s32 5120, 5120
      %66 = vsyncadd [#allocation5], %s65
      %s67 = sshll.u32 [#allocation6], 4
      %s68 = int_to_ptr.vmem [resolvable:$true] %s67
      %73 = dma.hbm_to_vmem [thread:$0]  %s7, 5120, %s68, [#allocation5], 64, 64, 4
    $region33: #{net_forward.1} parent=1 // pred_fallthru
      _
    // Predicated region
    $region34: #{net_forward.1} parent=1 // pred_check
      _
    $region35: #{net_forward.1} parent=1 // pred_check_branch
      %75 = sbr.rel (0) target = $region37
    $region36: #{net_forward.1} parent=1 // pred_region
      %s77 = ssub.s32 320, 320
      %78 = vsyncadd [#allocation8], %s77
      %s79 = sshll.u32 [#allocation7], 4
      %s80 = int_to_ptr.vmem [resolvable:$true] %s79
      %85 = dma.hbm_to_vmem [thread:$0]  %s8, 320, %s80, [#allocation8], 64, 64, 4
    $region37: #{net_forward.1} parent=1 // pred_fallthru
      _
    // Predicated region
    $region38: #{net_forward.1} parent=1 // pred_check
      _
    $region39: #{net_forward.1} parent=1 // pred_check_branch
      %87 = sbr.rel (0) target = $region41
    $region40: #{net_forward.1} parent=1 // pred_region
      %s89 = ssub.s32 320, 320
      %90 = vsyncadd [#allocation8], %s89
      %s91 = sshll.u32 [#allocation9], 4
      %s92 = int_to_ptr.vmem [resolvable:$true] %s91
      %97 = dma.hbm_to_vmem [thread:$0]  %s9, 320, %s92, [#allocation8], 64, 64, 4
    $region41: #{net_forward.1} parent=1 // pred_fallthru
      _
    // Predicated region
    $region42: #{net_forward.1} parent=1 // pred_check
      _
    $region43: #{net_forward.1} parent=1 // pred_check_branch
      %99 = sbr.rel (0) target = $region45
    $region44: #{net_forward.1} parent=1 // pred_region
      %s101 = ssub.s32 16, 16
      %102 = vsyncadd [#allocation11], %s101
      %s104 = sshll.u32 [#allocation10], 4
      %s105 = int_to_ptr.vmem [resolvable:$true] %s104
      %107 = dma.hbm_to_vmem [thread:$0]  %s10, 16, %s105, [#allocation11]
    $region45: #{net_forward.1} parent=1 // pred_fallthru
      _
    // Predicated region
    $region46: #{net_forward.1} parent=1 // pred_check
      _
    $region47: #{net_forward.1} parent=1 // pred_check_branch
      %109 = sbr.rel (0) target = $region49
    $region48: #{net_forward.1} parent=1 // pred_region
      %s111 = ssub.s32 5120, 5120
      %112 = vsyncadd [#allocation11], %s111
      %s113 = sshll.u32 [#allocation12], 4
      %s114 = int_to_ptr.vmem [resolvable:$true] %s113
      %119 = dma.hbm_to_vmem [thread:$0]  %s11, 5120, %s114, [#allocation11], 64, 64, 4
    $region49: #{net_forward.1} parent=1 // pred_fallthru
      _
    // Predicated region
    $region50: #{net_forward.1} parent=1 // pred_check
      _
    $region51: #{net_forward.1} parent=1 // pred_check_branch
      %121 = sbr.rel (0) target = $region53
    $region52: #{net_forward.1} parent=1 // pred_region
      %s123 = ssub.s32 16, 16
      %124 = vsyncadd [#allocation14], %s123
      %s126 = sshll.u32 [#allocation13], 4
      %s127 = int_to_ptr.vmem [resolvable:$true] %s126
      %129 = dma.hbm_to_vmem [thread:$0]  %s12, 16, %s127, [#allocation14]
    $region53: #{net_forward.1} parent=1 // pred_fallthru
      _
    // Predicated region
    $region54: #{net_forward.1} parent=1 // pred_check
      _
    $region55: #{net_forward.1} parent=1 // pred_check_branch
      %131 = sbr.rel (0) target = $region57
    $region56: #{net_forward.1} parent=1 // pred_region
      _
    $region57: #{net_forward.1} parent=1 // pred_fallthru
      _
    // Predicated region
    $region58: #{net_forward.1} parent=1 // pred_check
      _
    $region59: #{net_forward.1} parent=1 // pred_check_branch
      %133 = sbr.rel (0) target = $region61
    $region60: #{net_forward.1} parent=1 // pred_region
      %s135 = ssub.s32 16, 16
      %136 = vsyncadd [#allocation14], %s135
      %s138 = sshll.u32 [#allocation15], 4
      %s139 = int_to_ptr.vmem [resolvable:$true] %s138
      %141 = dma.hbm_to_vmem [thread:$0]  %s14, 16, %s139, [#allocation14]
    $region61: #{net_forward.1} parent=1 // pred_fallthru
      _
    // Predicated region
    $region62: #{net_forward.1} parent=1 // pred_check
      _
    $region63: #{net_forward.1} parent=1 // pred_check_branch
      %143 = sbr.rel (0) target = $region65
    $region64: #{net_forward.1} parent=1 // pred_region
      %s145 = ssub.s32 1024, 1024
      %146 = vsyncadd [#allocation17], %s145
      %s147 = sshll.u32 [#allocation16], 4
      %s148 = int_to_ptr.vmem [resolvable:$true] %s147
      %153 = dma.hbm_to_vmem [thread:$0]  %s15, 1024, %s148, [#allocation17], 64, 64, 4
    $region65: #{net_forward.1} parent=1 // pred_fallthru
      _
    // Predicated region
    $region66: #{net_forward.1} parent=1 // pred_check
      _
    $region67: #{net_forward.1} parent=1 // pred_check_branch
      %155 = sbr.rel (0) target = $region69
    $region68: #{net_forward.1} parent=1 // pred_region
      %s157 = ssub.s32 16, 16
      %158 = vsyncadd [#allocation17], %s157
      %s160 = sshll.u32 [#allocation18], 4
      %s161 = int_to_ptr.vmem [resolvable:$true] %s160
      %163 = dma.hbm_to_vmem [thread:$0]  %s16, 16, %s161, [#allocation17]
    $region69: #{net_forward.1} parent=1 // pred_fallthru
      _
    // Predicated region
    $region70: #{net_forward.1} parent=1 // pred_check
      _
    $region71: #{net_forward.1} parent=1 // pred_check_branch
      %165 = sbr.rel (0) target = $region73
    $region72: #{net_forward.1} parent=1 // pred_region
      %166 = dma.done [#allocation3], 1792
    $region73: #{net_forward.1} parent=1 // pred_fallthru
      _
    // Predicated region
    $region74: #{net_forward.1} parent=1 // pred_check
      _
    $region75: #{net_forward.1} parent=1 // pred_check_branch
      %168 = sbr.rel (0) target = $region77
    $region76: #{net_forward.1} parent=1 // pred_region
      %169 = dma.done [#allocation5], 1792
    $region77: #{net_forward.1} parent=1 // pred_fallthru
      _
    // Predicated region
    $region78: #{net_forward.1} parent=1 // pred_check
      _
    $region79: #{net_forward.1} parent=1 // pred_check_branch
      %171 = sbr.rel (0) target = $region81
    $region80: #{net_forward.1} parent=1 // pred_region
      %172 = dma.done [#allocation5], 5120
    $region81: #{net_forward.1} parent=1 // pred_fallthru
      _
    // Predicated region
    $region82: #{net_forward.1} parent=1 // pred_check
      _
    $region83: #{net_forward.1} parent=1 // pred_check_branch
      %174 = sbr.rel (0) target = $region85
    $region84: #{net_forward.1} parent=1 // pred_region
      %175 = dma.done [#allocation8], 320
    $region85: #{net_forward.1} parent=1 // pred_fallthru
      _
    // Predicated region
    $region86: #{net_forward.1} parent=1 // pred_check
      _
    $region87: #{net_forward.1} parent=1 // pred_check_branch
      %177 = sbr.rel (0) target = $region89
    $region88: #{net_forward.1} parent=1 // pred_region
      %178 = dma.done [#allocation8], 320
    $region89: #{net_forward.1} parent=1 // pred_fallthru
      _
    // Predicated region
    $region90: #{net_forward.1} parent=1 // pred_check
      _
    $region91: #{net_forward.1} parent=1 // pred_check_branch
      %180 = sbr.rel (0) target = $region93
    $region92: #{net_forward.1} parent=1 // pred_region
      %181 = dma.done [#allocation11], 16
    $region93: #{net_forward.1} parent=1 // pred_fallthru
      _
    // Predicated region
    $region94: #{net_forward.1} parent=1 // pred_check
      _
    $region95: #{net_forward.1} parent=1 // pred_check_branch
      %183 = sbr.rel (0) target = $region97
    $region96: #{net_forward.1} parent=1 // pred_region
      %184 = dma.done [#allocation11], 5120
    $region97: #{net_forward.1} parent=1 // pred_fallthru
      _
    // Predicated region
    $region98: #{net_forward.1} parent=1 // pred_check
      _
    $region99: #{net_forward.1} parent=1 // pred_check_branch
      %186 = sbr.rel (0) target = $region101
    $region100: #{net_forward.1} parent=1 // pred_region
      %187 = dma.done [#allocation14], 16
    $region101: #{net_forward.1} parent=1 // pred_fallthru
      _
    // Predicated region
    $region102: #{net_forward.1} parent=1 // pred_check
      _
    $region103: #{net_forward.1} parent=1 // pred_check_branch
      %189 = sbr.rel (0) target = $region105
    $region104: #{net_forward.1} parent=1 // pred_region
      %190 = dma.done [#allocation14], 16
    $region105: #{net_forward.1} parent=1 // pred_fallthru
      _
    // Predicated region
    $region106: #{net_forward.1} parent=1 // pred_check
      _
    $region107: #{net_forward.1} parent=1 // pred_check_branch
      %192 = sbr.rel (0) target = $region109
    $region108: #{net_forward.1} parent=1 // pred_region
      %193 = dma.done [#allocation17], 1024
    $region109: #{net_forward.1} parent=1 // pred_fallthru
      _
    // Predicated region
    $region110: #{net_forward.1} parent=1 // pred_check
      _
    $region111: #{net_forward.1} parent=1 // pred_check_branch
      %195 = sbr.rel (0) target = $region113
    $region112: #{net_forward.1} parent=1 // pred_region
      %196 = dma.done [#allocation17], 16
    $region113: #{net_forward.1} parent=1 // pred_fallthru
      _
    %v198 = vld [vmem:[%s0] sm:$0xff]
    %v199 = vld [vmem:[%s0 + $0x8] sm:$0xff]
    %v200 = vld [vmem:[%s0 + $0x10] sm:$0xff]
    %v201 = vld [vmem:[%s0 + $0x18] sm:$0xff]
    %v202 = vld [vmem:[%s0 + $0x20] sm:$0xff]
    %v203 = vld [vmem:[%s0 + $0x28] sm:$0xff]
    %v204 = vld [vmem:[%s0 + $0x30] sm:$0xff]
    %v205 = vld [vmem:[%s0 + $0x38] sm:$0xff]
    %v206 = vld [vmem:[%s0 + $0x40] sm:$0xff]
    %v207 = vld [vmem:[%s0 + $0x48] sm:$0xff]
    %v208 = vld [vmem:[%s0 + $0x50] sm:$0xff]
    %v209 = vld [vmem:[%s0 + $0x58] sm:$0xff]
    %v210 = vld [vmem:[%s0 + $0x60] sm:$0xff]
    %v211 = vld [vmem:[%s0 + $0x68] sm:$0xff]
    %v212 = vld [vmem:[%s0 + $0x70] sm:$0xff]
    %v213 = vld [vmem:[%s0 + $0x78] sm:$0xff]
    %v214 = vld [vmem:[%s0 + $0x80] sm:$0xff]
    %v215 = vld [vmem:[%s0 + $0x88] sm:$0xff]
    %v216 = vld [vmem:[%s0 + $0x90] sm:$0xff]
    %v217 = vld [vmem:[%s0 + $0x98] sm:$0xff]
    %v218 = vld [vmem:[%s0 + $0xa0] sm:$0xff]
    %v219 = vld [vmem:[%s0 + $0xa8] sm:$0xff]
    %v220 = vld [vmem:[%s0 + $0xb0] sm:$0xff]
    %v221 = vld [vmem:[%s0 + $0xb8] sm:$0xff]
    %v222 = vld [vmem:[%s0 + $0xc0] sm:$0xff]
    %v223 = vld [vmem:[%s0 + $0xc8] sm:$0xff]
    %v224 = vld [vmem:[%s0 + $0xd0] sm:$0xff]
    %v225 = vld [vmem:[%s0 + $0xd8] sm:$0xff]
    %v226 = vld [vmem:[%s0 + $0xe0] sm:$0xff]
    %v227 = vld [vmem:[%s0 + $0xe8] sm:$0xff]
    %v228 = vld [vmem:[%s0 + $0xf0] sm:$0xff]
    %v229 = vld [vmem:[%s0 + $0xf8] sm:$0xff]
    %v230 = vpack.c.bf16 %v199, %v198
    %v231 = vpack.c.bf16 %v201, %v200
    %v232 = vpack.c.bf16 %v203, %v202
    %v233 = vpack.c.bf16 %v205, %v204
    %v234 = vpack.c.bf16 %v207, %v206
    %v235 = vpack.c.bf16 %v209, %v208
    %v236 = vpack.c.bf16 %v211, %v210
    %v237 = vpack.c.bf16 %v213, %v212
    %v238 = vpack.c.bf16 %v215, %v214
    %v239 = vpack.c.bf16 %v217, %v216
    %v240 = vpack.c.bf16 %v219, %v218
    %v241 = vpack.c.bf16 %v221, %v220
    %v242 = vpack.c.bf16 %v223, %v222
    %v243 = vpack.c.bf16 %v225, %v224
    %v244 = vpack.c.bf16 %v227, %v226
    %v245 = vpack.c.bf16 %v229, %v228
    %v246 = vld [vmem:[%s1] sm:$0xf]
    %v247 = vld [vmem:[%s1 + $0x4] sm:$0xf]
    %v248 = vld [vmem:[%s1 + $0x8] sm:$0xf]
    %v249 = vld [vmem:[%s1 + $0xc] sm:$0xf]
    %v250 = vld [vmem:[%s1 + $0x10] sm:$0xf]
    %v251 = vld [vmem:[%s1 + $0x14] sm:$0xf]
    %v252 = vld [vmem:[%s1 + $0x18] sm:$0xf]
    %v253 = vld [vmem:[%s1 + $0x1c] sm:$0xf]
    %v254 = vld [vmem:[%s1 + $0x20] sm:$0xf]
    %v255 = vld [vmem:[%s1 + $0x24] sm:$0xf]
    %v256 = vld [vmem:[%s1 + $0x28] sm:$0xf]
    %v257 = vld [vmem:[%s1 + $0x2c] sm:$0xf]
    %v258 = vld [vmem:[%s1 + $0x30] sm:$0xf]
    %v259 = vld [vmem:[%s1 + $0x34] sm:$0xf]
    %v260 = vld [vmem:[%s1 + $0x38] sm:$0xf]
    %v261 = vld [vmem:[%s1 + $0x3c] sm:$0xf]
    %v262 = vld [vmem:[%s2] sm:$0xf]
    %v263 = vld [vmem:[%s2 + $0x4] sm:$0xf]
    %v264 = vld [vmem:[%s2 + $0x8] sm:$0xf]
    %v265 = vld [vmem:[%s2 + $0xc] sm:$0xf]
    %v266 = vld [vmem:[%s2 + $0x10] sm:$0xf]
    %v267 = vld [vmem:[%s2 + $0x14] sm:$0xf]
    %v268 = vld [vmem:[%s2 + $0x18] sm:$0xf]
    %v269 = vld [vmem:[%s2 + $0x1c] sm:$0xf]
    %v270 = vld [vmem:[%s2 + $0x20] sm:$0xf]
    %v271 = vld [vmem:[%s2 + $0x24] sm:$0xf]
    %v272 = vld [vmem:[%s2 + $0x28] sm:$0xf]
    %v273 = vld [vmem:[%s2 + $0x2c] sm:$0xf]
    %v274 = vld [vmem:[%s2 + $0x30] sm:$0xf]
    %v275 = vld [vmem:[%s2 + $0x34] sm:$0xf]
    %v276 = vld [vmem:[%s2 + $0x38] sm:$0xf]
    %v277 = vld [vmem:[%s2 + $0x3c] sm:$0xf]
    %s278 = scalar_lea.vmem %s1, 64
    %v279 = vld [vmem:[%s278] sm:$0xf]
    %v280 = vld [vmem:[%s278 + $0x4] sm:$0xf]
    %v281 = vld [vmem:[%s278 + $0x8] sm:$0xf]
    %v282 = vld [vmem:[%s278 + $0xc] sm:$0xf]
    %v283 = vld [vmem:[%s278 + $0x10] sm:$0xf]
    %v284 = vld [vmem:[%s278 + $0x14] sm:$0xf]
    %v285 = vld [vmem:[%s278 + $0x18] sm:$0xf]
    %v286 = vld [vmem:[%s278 + $0x1c] sm:$0xf]
    %v287 = vld [vmem:[%s278 + $0x20] sm:$0xf]
    %v288 = vld [vmem:[%s278 + $0x24] sm:$0xf]
    %v289 = vld [vmem:[%s278 + $0x28] sm:$0xf]
    %v290 = vld [vmem:[%s278 + $0x2c] sm:$0xf]
    %v291 = vld [vmem:[%s278 + $0x30] sm:$0xf]
    %v292 = vld [vmem:[%s278 + $0x34] sm:$0xf]
    %v293 = vld [vmem:[%s278 + $0x38] sm:$0xf]
    %v294 = vld [vmem:[%s278 + $0x3c] sm:$0xf]
    %vm295 = vsmask.f32 7424
    %v297 = vshrl.u32 %v230, 16
    %v299 = vshll.u32 %v230, 16
    %v301 = vrot.slane %v299, 1
    %v302 = vor.u32 %v297, %v301
    %v304 = vshll.u32 %v231, 16
    %v306 = vrot.slane %v304, 1
    %v307 = vsel %vm295, %v302, %v306
    %v308 = vshrl.u32 %v231, 16
    %v310 = vor.u32 %v308, %v306
    %v312 = vshll.u32 %v232, 16
    %v314 = vrot.slane %v312, 1
    %v315 = vsel %vm295, %v310, %v314
    %v316 = vshrl.u32 %v232, 16
    %v318 = vor.u32 %v316, %v314
    %v320 = vshll.u32 %v233, 16
    %v322 = vrot.slane %v320, 1
    %v323 = vsel %vm295, %v318, %v322
    %v324 = vshrl.u32 %v233, 16
    %v326 = vor.u32 %v324, %v322
    %v328 = vshll.u32 %v234, 16
    %v330 = vrot.slane %v328, 1
    %v331 = vsel %vm295, %v326, %v330
    %v332 = vshrl.u32 %v234, 16
    %v334 = vor.u32 %v332, %v330
    %v336 = vshll.u32 %v235, 16
    %v338 = vrot.slane %v336, 1
    %v339 = vsel %vm295, %v334, %v338
    %v340 = vshrl.u32 %v235, 16
    %v342 = vor.u32 %v340, %v338
    %v344 = vshll.u32 %v236, 16
    %v346 = vrot.slane %v344, 1
    %v347 = vsel %vm295, %v342, %v346
    %v348 = vshrl.u32 %v236, 16
    %v350 = vor.u32 %v348, %v346
    %v352 = vshll.u32 %v237, 16
    %v354 = vrot.slane %v352, 1
    %v355 = vsel %vm295, %v350, %v354
    %v356 = vshrl.u32 %v237, 16
    %v358 = vor.u32 %v356, %v354
    %v360 = vshll.u32 %v238, 16
    %v362 = vrot.slane %v360, 1
    %v363 = vsel %vm295, %v358, %v362
    %v364 = vshrl.u32 %v238, 16
    %v366 = vor.u32 %v364, %v362
    %v368 = vshll.u32 %v239, 16
    %v370 = vrot.slane %v368, 1
    %v371 = vsel %vm295, %v366, %v370
    %v372 = vshrl.u32 %v239, 16
    %v374 = vor.u32 %v372, %v370
    %v376 = vshll.u32 %v240, 16
    %v378 = vrot.slane %v376, 1
    %v379 = vsel %vm295, %v374, %v378
    %v380 = vshrl.u32 %v240, 16
    %v382 = vor.u32 %v380, %v378
    %v384 = vshll.u32 %v241, 16
    %v386 = vrot.slane %v384, 1
    %v387 = vsel %vm295, %v382, %v386
    %v388 = vshrl.u32 %v241, 16
    %v390 = vor.u32 %v388, %v386
    %v392 = vshll.u32 %v242, 16
    %v394 = vrot.slane %v392, 1
    %v395 = vsel %vm295, %v390, %v394
    %v396 = vshrl.u32 %v242, 16
    %v398 = vor.u32 %v396, %v394
    %v400 = vshll.u32 %v243, 16
    %v402 = vrot.slane %v400, 1
    %v403 = vsel %vm295, %v398, %v402
    %v404 = vshrl.u32 %v243, 16
    %v406 = vor.u32 %v404, %v402
    %v408 = vshll.u32 %v244, 16
    %v410 = vrot.slane %v408, 1
    %v411 = vsel %vm295, %v406, %v410
    %v412 = vshrl.u32 %v244, 16
    %v414 = vor.u32 %v412, %v410
    %v416 = vshll.u32 %v245, 16
    %v418 = vrot.slane %v416, 1
    %v419 = vsel %vm295, %v414, %v418
    %v420 = vshrl.u32 %v245, 16
    %v422 = vor.u32 %v420, %v418
    %v455 = vunpack.c.l.b16 %v279
    %v456 = vunpack.c.l.b16 %v280
    %v457 = vunpack.c.l.b16 %v281
    %v458 = vunpack.c.l.b16 %v282
    %v459 = vunpack.c.l.b16 %v283
    %v460 = vunpack.c.l.b16 %v284
    %v461 = vunpack.c.l.b16 %v285
    %v462 = vunpack.c.l.b16 %v286
    %v463 = vunpack.c.l.b16 %v287
    %v464 = vunpack.c.l.b16 %v288
    %v465 = vunpack.c.l.b16 %v289
    %v466 = vunpack.c.l.b16 %v290
    %v467 = vunpack.c.l.b16 %v291
    %v468 = vunpack.c.l.b16 %v292
    %v469 = vunpack.c.l.b16 %v293
    %v470 = vunpack.c.l.b16 %v294
    %v471 = vpack.c.b16 %v456, %v455
    %v472 = vpack.c.b16 %v458, %v457
    %v473 = vpack.c.b16 %v460, %v459
    %v474 = vpack.c.b16 %v462, %v461
    %v475 = vpack.c.b16 %v464, %v463
    %v476 = vpack.c.b16 %v466, %v465
    %v477 = vpack.c.b16 %v468, %v467
    %v478 = vpack.c.b16 %v470, %v469
    %487 = vmatprep.subr.bf16.mxu0 0
    %488 = vmatpush1.bf16.msra.mxu0 %v471
    %489 = vmatprep.subr.bf16.mxu0 0
    %490 = vmatpush1.bf16.msra.mxu0 %v472
    %491 = vmatprep.subr.bf16.mxu0 0
    %492 = vmatpush1.bf16.msra.mxu0 %v473
    %493 = vmatprep.subr.bf16.mxu0 0
    %494 = vmatpush1.bf16.msra.mxu0 %v474
    %495 = vmatprep.subr.bf16.mxu0 0
    %496 = vmatpush1.bf16.msra.mxu0 %v475
    %497 = vmatprep.subr.bf16.mxu0 0
    %498 = vmatpush1.bf16.msra.mxu0 %v476
    %499 = vmatprep.subr.bf16.mxu0 0
    %500 = vmatpush1.bf16.msra.mxu0 %v477
    %501 = vmatprep.subr.bf16.mxu0 0
    %502 = vmatpush1.bf16.msra.mxu0 %v478
    %503 = vmatprep.subr.bf16.mxu0 0
    %504 = vmatpush1.bf16.msra.mxu0 0
    %505 = vmatprep.subr.bf16.mxu0 0
    %506 = vmatpush1.bf16.msra.mxu0 0
    %507 = vmatprep.subr.bf16.mxu0 0
    %508 = vmatpush1.bf16.msra.mxu0 0
    %509 = vmatprep.subr.bf16.mxu0 0
    %510 = vmatpush1.bf16.msra.mxu0 0
    %511 = vmatprep.subr.bf16.mxu0 0
    %512 = vmatpush1.bf16.msra.mxu0 0
    %513 = vmatprep.subr.bf16.mxu0 0
    %514 = vmatpush1.bf16.msra.mxu0 0
    %515 = vmatprep.subr.bf16.mxu0 0
    %516 = vmatpush1.bf16.msra.mxu0 0
    %517 = vmatprep.subr.bf16.mxu0 0
    %518 = vmatpush1.bf16.msra.mxu0 0
    %519 = vmatprep.mubr.bf16.mxu0 0
    %520 = vmatmul.mubr.bf16.gmra.mrb[0].mxu0 %v307
    %v521 = vpop.f32.mrb[0].mxu0
    %v522 = vadd.f32 0.0, %v521
    %v523 = vpop.f32.mrb[0].mxu0
    %v524 = vpop.f32.mrb[0].mxu0
    %v525 = vadd.f32 0.0, %v524
    %v526 = vpop.f32.mrb[0].mxu0
    %527 = vmatprep.mubr.bf16.mxu0 0
    %528 = vmatmul.mubr.bf16.gmra.mrb[0].mxu0 %v315
    %v529 = vpop.f32.mrb[0].mxu0
    %v530 = vadd.f32 0.0, %v529
    %v531 = vpop.f32.mrb[0].mxu0
    %v532 = vpop.f32.mrb[0].mxu0
    %v533 = vadd.f32 0.0, %v532
    %v534 = vpop.f32.mrb[0].mxu0
    %535 = vmatprep.mubr.bf16.mxu0 0
    %536 = vmatmul.mubr.bf16.gmra.mrb[0].mxu0 %v323
    %v537 = vpop.f32.mrb[0].mxu0
    %v538 = vadd.f32 0.0, %v537
    %v539 = vpop.f32.mrb[0].mxu0
    %v540 = vpop.f32.mrb[0].mxu0
    %v541 = vadd.f32 0.0, %v540
    %v542 = vpop.f32.mrb[0].mxu0
    %543 = vmatprep.mubr.bf16.mxu0 0
    %544 = vmatmul.mubr.bf16.gmra.mrb[0].mxu0 %v331
    %v545 = vpop.f32.mrb[0].mxu0
    %v546 = vadd.f32 0.0, %v545
    %v547 = vpop.f32.mrb[0].mxu0
    %v548 = vpop.f32.mrb[0].mxu0
    %v549 = vadd.f32 0.0, %v548
    %v550 = vpop.f32.mrb[0].mxu0
    %551 = vmatprep.mubr.bf16.mxu0 0
    %552 = vmatmul.mubr.bf16.gmra.mrb[0].mxu0 %v339
    %v553 = vpop.f32.mrb[0].mxu0
    %v554 = vadd.f32 0.0, %v553
    %v555 = vpop.f32.mrb[0].mxu0
    %v556 = vpop.f32.mrb[0].mxu0
    %v557 = vadd.f32 0.0, %v556
    %v558 = vpop.f32.mrb[0].mxu0
    %559 = vmatprep.mubr.bf16.mxu0 0
    %560 = vmatmul.mubr.bf16.gmra.mrb[0].mxu0 %v347
    %v561 = vpop.f32.mrb[0].mxu0
    %v562 = vadd.f32 0.0, %v561
    %v563 = vpop.f32.mrb[0].mxu0
    %v564 = vpop.f32.mrb[0].mxu0
    %v565 = vadd.f32 0.0, %v564
    %v566 = vpop.f32.mrb[0].mxu0
    %567 = vmatprep.mubr.bf16.mxu0 0
    %568 = vmatmul.mubr.bf16.gmra.mrb[0].mxu0 %v355
    %v569 = vpop.f32.mrb[0].mxu0
    %v570 = vadd.f32 0.0, %v569
    %v571 = vpop.f32.mrb[0].mxu0
    %v572 = vpop.f32.mrb[0].mxu0
    %v573 = vadd.f32 0.0, %v572
    %v574 = vpop.f32.mrb[0].mxu0
    %575 = vmatprep.mubr.bf16.mxu0 0
    %576 = vmatmul.mubr.bf16.gmra.mrb[0].mxu0 %v363
    %v577 = vpop.f32.mrb[0].mxu0
    %v578 = vadd.f32 0.0, %v577
    %v579 = vpop.f32.mrb[0].mxu0
    %v580 = vpop.f32.mrb[0].mxu0
    %v581 = vadd.f32 0.0, %v580
    %v582 = vpop.f32.mrb[0].mxu0
    %583 = vmatprep.mubr.bf16.mxu0 0
    %584 = vmatmul.mubr.bf16.gmra.mrb[0].mxu0 %v371
    %v585 = vpop.f32.mrb[0].mxu0
    %v586 = vadd.f32 0.0, %v585
    %v587 = vpop.f32.mrb[0].mxu0
    %v588 = vpop.f32.mrb[0].mxu0
    %v589 = vadd.f32 0.0, %v588
    %v590 = vpop.f32.mrb[0].mxu0
    %591 = vmatprep.mubr.bf16.mxu0 0
    %592 = vmatmul.mubr.bf16.gmra.mrb[0].mxu0 %v379
    %v593 = vpop.f32.mrb[0].mxu0
    %v594 = vadd.f32 0.0, %v593
    %v595 = vpop.f32.mrb[0].mxu0
    %v596 = vpop.f32.mrb[0].mxu0
    %v597 = vadd.f32 0.0, %v596
    %v598 = vpop.f32.mrb[0].mxu0
    %599 = vmatprep.mubr.bf16.mxu0 0
    %600 = vmatmul.mubr.bf16.gmra.mrb[0].mxu0 %v387
    %v601 = vpop.f32.mrb[0].mxu0
    %v602 = vadd.f32 0.0, %v601
    %v603 = vpop.f32.mrb[0].mxu0
    %v604 = vpop.f32.mrb[0].mxu0
    %v605 = vadd.f32 0.0, %v604
    %v606 = vpop.f32.mrb[0].mxu0
    %607 = vmatprep.mubr.bf16.mxu0 0
    %608 = vmatmul.mubr.bf16.gmra.mrb[0].mxu0 %v395
    %v609 = vpop.f32.mrb[0].mxu0
    %v610 = vadd.f32 0.0, %v609
    %v611 = vpop.f32.mrb[0].mxu0
    %v612 = vpop.f32.mrb[0].mxu0
    %v613 = vadd.f32 0.0, %v612
    %v614 = vpop.f32.mrb[0].mxu0
    %615 = vmatprep.mubr.bf16.mxu0 0
    %616 = vmatmul.mubr.bf16.gmra.mrb[0].mxu0 %v403
    %v617 = vpop.f32.mrb[0].mxu0
    %v618 = vadd.f32 0.0, %v617
    %v619 = vpop.f32.mrb[0].mxu0
    %v620 = vpop.f32.mrb[0].mxu0
    %v621 = vadd.f32 0.0, %v620
    %v622 = vpop.f32.mrb[0].mxu0
    %623 = vmatprep.mubr.bf16.mxu0 0
    %624 = vmatmul.mubr.bf16.gmra.mrb[0].mxu0 %v411
    %v625 = vpop.f32.mrb[0].mxu0
    %v626 = vadd.f32 0.0, %v625
    %v627 = vpop.f32.mrb[0].mxu0
    %v628 = vpop.f32.mrb[0].mxu0
    %v629 = vadd.f32 0.0, %v628
    %v630 = vpop.f32.mrb[0].mxu0
    %631 = vmatprep.mubr.bf16.mxu0 0
    %632 = vmatmul.mubr.bf16.gmra.mrb[0].mxu0 %v419
    %v633 = vpop.f32.mrb[0].mxu0
    %v634 = vadd.f32 0.0, %v633
    %v635 = vpop.f32.mrb[0].mxu0
    %v636 = vpop.f32.mrb[0].mxu0
    %v637 = vadd.f32 0.0, %v636
    %v638 = vpop.f32.mrb[0].mxu0
    %639 = vmatprep.mubr.bf16.mxu0 0
    %640 = vmatmul.mubr.bf16.gmra.mrb[0].mxu0 %v422
    %v641 = vpop.f32.mrb[0].mxu0
    %v642 = vadd.f32 0.0, %v641
    %v643 = vpop.f32.mrb[0].mxu0
    %v644 = vpop.f32.mrb[0].mxu0
    %v645 = vadd.f32 0.0, %v644
    %v646 = vpop.f32.mrb[0].mxu0
    %647 = vdwg.mxu0
    %v664 = vunpack.c.l.b16 %v246
    %v665 = vunpack.c.l.b16 %v247
    %v666 = vunpack.c.l.b16 %v248
    %v667 = vunpack.c.l.b16 %v249
    %v668 = vunpack.c.l.b16 %v250
    %v669 = vunpack.c.l.b16 %v251
    %v670 = vunpack.c.l.b16 %v252
    %v671 = vunpack.c.l.b16 %v253
    %v672 = vunpack.c.l.b16 %v254
    %v673 = vunpack.c.l.b16 %v255
    %v674 = vunpack.c.l.b16 %v256
    %v675 = vunpack.c.l.b16 %v257
    %v676 = vunpack.c.l.b16 %v258
    %v677 = vunpack.c.l.b16 %v259
    %v678 = vunpack.c.l.b16 %v260
    %v679 = vunpack.c.l.b16 %v261
    %v680 = vpack.c.b16 %v665, %v664
    %v681 = vpack.c.b16 %v667, %v666
    %v682 = vpack.c.b16 %v669, %v668
    %v683 = vpack.c.b16 %v671, %v670
    %v684 = vpack.c.b16 %v673, %v672
    %v685 = vpack.c.b16 %v675, %v674
    %v686 = vpack.c.b16 %v677, %v676
    %v687 = vpack.c.b16 %v679, %v678
    %696 = vmatprep.subr.bf16.mxu0 0
    %697 = vmatpush1.bf16.msra.mxu0 %v680
    %698 = vmatprep.subr.bf16.mxu0 0
    %699 = vmatpush1.bf16.msra.mxu0 %v681
    %700 = vmatprep.subr.bf16.mxu0 0
    %701 = vmatpush1.bf16.msra.mxu0 %v682
    %702 = vmatprep.subr.bf16.mxu0 0
    %703 = vmatpush1.bf16.msra.mxu0 %v683
    %704 = vmatprep.subr.bf16.mxu0 0
    %705 = vmatpush1.bf16.msra.mxu0 %v684
    %706 = vmatprep.subr.bf16.mxu0 0
    %707 = vmatpush1.bf16.msra.mxu0 %v685
    %708 = vmatprep.subr.bf16.mxu0 0
    %709 = vmatpush1.bf16.msra.mxu0 %v686
    %710 = vmatprep.subr.bf16.mxu0 0
    %711 = vmatpush1.bf16.msra.mxu0 %v687
    %712 = vmatprep.subr.bf16.mxu0 0
    %713 = vmatpush1.bf16.msra.mxu0 0
    %714 = vmatprep.subr.bf16.mxu0 0
    %715 = vmatpush1.bf16.msra.mxu0 0
    %716 = vmatprep.subr.bf16.mxu0 0
    %717 = vmatpush1.bf16.msra.mxu0 0
    %718 = vmatprep.subr.bf16.mxu0 0
    %719 = vmatpush1.bf16.msra.mxu0 0
    %720 = vmatprep.subr.bf16.mxu0 0
    %721 = vmatpush1.bf16.msra.mxu0 0
    %722 = vmatprep.subr.bf16.mxu0 0
    %723 = vmatpush1.bf16.msra.mxu0 0
    %724 = vmatprep.subr.bf16.mxu0 0
    %725 = vmatpush1.bf16.msra.mxu0 0
    %726 = vmatprep.subr.bf16.mxu0 0
    %727 = vmatpush1.bf16.msra.mxu0 0
    %728 = vmatprep.mubr.bf16.mxu0 0
    %729 = vmatmul.mubr.bf16.gmra.mrb[0].mxu0 %v230
    %v730 = vpop.f32.mrb[0].mxu0
    %v731 = vadd.f32 %v522, %v730
    %v732 = vpop.f32.mrb[0].mxu0
    %v733 = vpop.f32.mrb[0].mxu0
    %v734 = vadd.f32 %v525, %v733
    %v735 = vpop.f32.mrb[0].mxu0
    %736 = vmatprep.mubr.bf16.mxu0 0
    %737 = vmatmul.mubr.bf16.gmra.mrb[0].mxu0 %v231
    %v738 = vpop.f32.mrb[0].mxu0
    %v739 = vadd.f32 %v530, %v738
    %v740 = vpop.f32.mrb[0].mxu0
    %v741 = vpop.f32.mrb[0].mxu0
    %v742 = vadd.f32 %v533, %v741
    %v743 = vpop.f32.mrb[0].mxu0
    %744 = vmatprep.mubr.bf16.mxu0 0
    %745 = vmatmul.mubr.bf16.gmra.mrb[0].mxu0 %v232
    %v746 = vpop.f32.mrb[0].mxu0
    %v747 = vadd.f32 %v538, %v746
    %v748 = vpop.f32.mrb[0].mxu0
    %v749 = vpop.f32.mrb[0].mxu0
    %v750 = vadd.f32 %v541, %v749
    %v751 = vpop.f32.mrb[0].mxu0
    %752 = vmatprep.mubr.bf16.mxu0 0
    %753 = vmatmul.mubr.bf16.gmra.mrb[0].mxu0 %v233
    %v754 = vpop.f32.mrb[0].mxu0
    %v755 = vadd.f32 %v546, %v754
    %v756 = vpop.f32.mrb[0].mxu0
    %v757 = vpop.f32.mrb[0].mxu0
    %v758 = vadd.f32 %v549, %v757
    %v759 = vpop.f32.mrb[0].mxu0
    %760 = vmatprep.mubr.bf16.mxu0 0
    %761 = vmatmul.mubr.bf16.gmra.mrb[0].mxu0 %v234
    %v762 = vpop.f32.mrb[0].mxu0
    %v763 = vadd.f32 %v554, %v762
    %v764 = vpop.f32.mrb[0].mxu0
    %v765 = vpop.f32.mrb[0].mxu0
    %v766 = vadd.f32 %v557, %v765
    %v767 = vpop.f32.mrb[0].mxu0
    %768 = vmatprep.mubr.bf16.mxu0 0
    %769 = vmatmul.mubr.bf16.gmra.mrb[0].mxu0 %v235
    %v770 = vpop.f32.mrb[0].mxu0
    %v771 = vadd.f32 %v562, %v770
    %v772 = vpop.f32.mrb[0].mxu0
    %v773 = vpop.f32.mrb[0].mxu0
    %v774 = vadd.f32 %v565, %v773
    %v775 = vpop.f32.mrb[0].mxu0
    %776 = vmatprep.mubr.bf16.mxu0 0
    %777 = vmatmul.mubr.bf16.gmra.mrb[0].mxu0 %v236
    %v778 = vpop.f32.mrb[0].mxu0
    %v779 = vadd.f32 %v570, %v778
    %v780 = vpop.f32.mrb[0].mxu0
    %v781 = vpop.f32.mrb[0].mxu0
    %v782 = vadd.f32 %v573, %v781
    %v783 = vpop.f32.mrb[0].mxu0
    %784 = vmatprep.mubr.bf16.mxu0 0
    %785 = vmatmul.mubr.bf16.gmra.mrb[0].mxu0 %v237
    %v786 = vpop.f32.mrb[0].mxu0
    %v787 = vadd.f32 %v578, %v786
    %v788 = vpop.f32.mrb[0].mxu0
    %v789 = vpop.f32.mrb[0].mxu0
    %v790 = vadd.f32 %v581, %v789
    %v791 = vpop.f32.mrb[0].mxu0
    %792 = vmatprep.mubr.bf16.mxu0 0
    %793 = vmatmul.mubr.bf16.gmra.mrb[0].mxu0 %v238
    %v794 = vpop.f32.mrb[0].mxu0
    %v795 = vadd.f32 %v586, %v794
    %v796 = vpop.f32.mrb[0].mxu0
    %v797 = vpop.f32.mrb[0].mxu0
    %v798 = vadd.f32 %v589, %v797
    %v799 = vpop.f32.mrb[0].mxu0
    %800 = vmatprep.mubr.bf16.mxu0 0
    %801 = vmatmul.mubr.bf16.gmra.mrb[0].mxu0 %v239
    %v802 = vpop.f32.mrb[0].mxu0
    %v803 = vadd.f32 %v594, %v802
    %v804 = vpop.f32.mrb[0].mxu0
    %v805 = vpop.f32.mrb[0].mxu0
    %v806 = vadd.f32 %v597, %v805
    %v807 = vpop.f32.mrb[0].mxu0
    %808 = vmatprep.mubr.bf16.mxu0 0
    %809 = vmatmul.mubr.bf16.gmra.mrb[0].mxu0 %v240
    %v810 = vpop.f32.mrb[0].mxu0
    %v811 = vadd.f32 %v602, %v810
    %v812 = vpop.f32.mrb[0].mxu0
    %v813 = vpop.f32.mrb[0].mxu0
    %v814 = vadd.f32 %v605, %v813
    %v815 = vpop.f32.mrb[0].mxu0
    %816 = vmatprep.mubr.bf16.mxu0 0
    %817 = vmatmul.mubr.bf16.gmra.mrb[0].mxu0 %v241
    %v818 = vpop.f32.mrb[0].mxu0
    %v819 = vadd.f32 %v610, %v818
    %v820 = vpop.f32.mrb[0].mxu0
    %v821 = vpop.f32.mrb[0].mxu0
    %v822 = vadd.f32 %v613, %v821
    %v823 = vpop.f32.mrb[0].mxu0
    %824 = vmatprep.mubr.bf16.mxu0 0
    %825 = vmatmul.mubr.bf16.gmra.mrb[0].mxu0 %v242
    %v826 = vpop.f32.mrb[0].mxu0
    %v827 = vadd.f32 %v618, %v826
    %v828 = vpop.f32.mrb[0].mxu0
    %v829 = vpop.f32.mrb[0].mxu0
    %v830 = vadd.f32 %v621, %v829
    %v831 = vpop.f32.mrb[0].mxu0
    %832 = vmatprep.mubr.bf16.mxu0 0
    %833 = vmatmul.mubr.bf16.gmra.mrb[0].mxu0 %v243
    %v834 = vpop.f32.mrb[0].mxu0
    %v835 = vadd.f32 %v626, %v834
    %v836 = vpop.f32.mrb[0].mxu0
    %v837 = vpop.f32.mrb[0].mxu0
    %v838 = vadd.f32 %v629, %v837
    %v839 = vpop.f32.mrb[0].mxu0
    %840 = vmatprep.mubr.bf16.mxu0 0
    %841 = vmatmul.mubr.bf16.gmra.mrb[0].mxu0 %v244
    %v842 = vpop.f32.mrb[0].mxu0
    %v843 = vadd.f32 %v634, %v842
    %v844 = vpop.f32.mrb[0].mxu0
    %v845 = vpop.f32.mrb[0].mxu0
    %v846 = vadd.f32 %v637, %v845
    %v847 = vpop.f32.mrb[0].mxu0
    %848 = vmatprep.mubr.bf16.mxu0 0
    %849 = vmatmul.mubr.bf16.gmra.mrb[0].mxu0 %v245
    %v850 = vpop.f32.mrb[0].mxu0
    %v851 = vadd.f32 %v642, %v850
    %v852 = vpop.f32.mrb[0].mxu0
    %v853 = vpop.f32.mrb[0].mxu0
    %v854 = vadd.f32 %v645, %v853
    %v855 = vpop.f32.mrb[0].mxu0
    %856 = vdwg.mxu0
    %s857 = scalar_lea.vmem %s2, 64
    %v858 = vld [vmem:[%s857] sm:$0xf]
    %v859 = vld [vmem:[%s857 + $0x4] sm:$0xf]
    %v860 = vld [vmem:[%s857 + $0x8] sm:$0xf]
    %v861 = vld [vmem:[%s857 + $0xc] sm:$0xf]
    %v862 = vld [vmem:[%s857 + $0x10] sm:$0xf]
    %v863 = vld [vmem:[%s857 + $0x14] sm:$0xf]
    %v864 = vld [vmem:[%s857 + $0x18] sm:$0xf]
    %v865 = vld [vmem:[%s857 + $0x1c] sm:$0xf]
    %v866 = vld [vmem:[%s857 + $0x20] sm:$0xf]
    %v867 = vld [vmem:[%s857 + $0x24] sm:$0xf]
    %v868 = vld [vmem:[%s857 + $0x28] sm:$0xf]
    %v869 = vld [vmem:[%s857 + $0x2c] sm:$0xf]
    %v870 = vld [vmem:[%s857 + $0x30] sm:$0xf]
    %v871 = vld [vmem:[%s857 + $0x34] sm:$0xf]
    %v872 = vld [vmem:[%s857 + $0x38] sm:$0xf]
    %v873 = vld [vmem:[%s857 + $0x3c] sm:$0xf]
    %v890 = vunpack.c.l.b16 %v858
    %v891 = vunpack.c.l.b16 %v859
    %v892 = vunpack.c.l.b16 %v860
    %v893 = vunpack.c.l.b16 %v861
    %v894 = vunpack.c.l.b16 %v862
    %v895 = vunpack.c.l.b16 %v863
    %v896 = vunpack.c.l.b16 %v864
    %v897 = vunpack.c.l.b16 %v865
    %v898 = vunpack.c.l.b16 %v866
    %v899 = vunpack.c.l.b16 %v867
    %v900 = vunpack.c.l.b16 %v868
    %v901 = vunpack.c.l.b16 %v869
    %v902 = vunpack.c.l.b16 %v870
    %v903 = vunpack.c.l.b16 %v871
    %v904 = vunpack.c.l.b16 %v872
    %v905 = vunpack.c.l.b16 %v873
    %v906 = vpack.c.b16 %v891, %v890
    %v907 = vpack.c.b16 %v893, %v892
    %v908 = vpack.c.b16 %v895, %v894
    %v909 = vpack.c.b16 %v897, %v896
    %v910 = vpack.c.b16 %v899, %v898
    %v911 = vpack.c.b16 %v901, %v900
    %v912 = vpack.c.b16 %v903, %v902
    %v913 = vpack.c.b16 %v905, %v904
    %922 = vmatprep.subr.bf16.mxu0 0
    %923 = vmatpush1.bf16.msra.mxu0 %v906
    %924 = vmatprep.subr.bf16.mxu0 0
    %925 = vmatpush1.bf16.msra.mxu0 %v907
    %926 = vmatprep.subr.bf16.mxu0 0
    %927 = vmatpush1.bf16.msra.mxu0 %v908
    %928 = vmatprep.subr.bf16.mxu0 0
    %929 = vmatpush1.bf16.msra.mxu0 %v909
    %930 = vmatprep.subr.bf16.mxu0 0
    %931 = vmatpush1.bf16.msra.mxu0 %v910
    %932 = vmatprep.subr.bf16.mxu0 0
    %933 = vmatpush1.bf16.msra.mxu0 %v911
    %934 = vmatprep.subr.bf16.mxu0 0
    %935 = vmatpush1.bf16.msra.mxu0 %v912
    %936 = vmatprep.subr.bf16.mxu0 0
    %937 = vmatpush1.bf16.msra.mxu0 %v913
    %938 = vmatprep.subr.bf16.mxu0 0
    %939 = vmatpush1.bf16.msra.mxu0 0
    %940 = vmatprep.subr.bf16.mxu0 0
    %941 = vmatpush1.bf16.msra.mxu0 0
    %942 = vmatprep.subr.bf16.mxu0 0
    %943 = vmatpush1.bf16.msra.mxu0 0
    %944 = vmatprep.subr.bf16.mxu0 0
    %945 = vmatpush1.bf16.msra.mxu0 0
    %946 = vmatprep.subr.bf16.mxu0 0
    %947 = vmatpush1.bf16.msra.mxu0 0
    %948 = vmatprep.subr.bf16.mxu0 0
    %949 = vmatpush1.bf16.msra.mxu0 0
    %950 = vmatprep.subr.bf16.mxu0 0
    %951 = vmatpush1.bf16.msra.mxu0 0
    %952 = vmatprep.subr.bf16.mxu0 0
    %953 = vmatpush1.bf16.msra.mxu0 0
    %954 = vmatprep.mubr.bf16.mxu0 0
    %955 = vmatmul.mubr.bf16.gmra.mrb[0].mxu0 %v307
    %v956 = vpop.f32.mrb[0].mxu0
    %v957 = vadd.f32 0.0, %v956
    %v958 = vpop.f32.mrb[0].mxu0
    %v959 = vpop.f32.mrb[0].mxu0
    %v960 = vadd.f32 0.0, %v959
    %v961 = vpop.f32.mrb[0].mxu0
    %962 = vmatprep.mubr.bf16.mxu0 0
    %963 = vmatmul.mubr.bf16.gmra.mrb[0].mxu0 %v315
    %v964 = vpop.f32.mrb[0].mxu0
    %v965 = vadd.f32 0.0, %v964
    %v966 = vpop.f32.mrb[0].mxu0
    %v967 = vpop.f32.mrb[0].mxu0
    %v968 = vadd.f32 0.0, %v967
    %v969 = vpop.f32.mrb[0].mxu0
    %970 = vmatprep.mubr.bf16.mxu0 0
    %971 = vmatmul.mubr.bf16.gmra.mrb[0].mxu0 %v323
    %v972 = vpop.f32.mrb[0].mxu0
    %v973 = vadd.f32 0.0, %v972
    %v974 = vpop.f32.mrb[0].mxu0
    %v975 = vpop.f32.mrb[0].mxu0
    %v976 = vadd.f32 0.0, %v975
    %v977 = vpop.f32.mrb[0].mxu0
    %978 = vmatprep.mubr.bf16.mxu0 0
    %979 = vmatmul.mubr.bf16.gmra.mrb[0].mxu0 %v331
    %v980 = vpop.f32.mrb[0].mxu0
    %v981 = vadd.f32 0.0, %v980
    %v982 = vpop.f32.mrb[0].mxu0
    %v983 = vpop.f32.mrb[0].mxu0
    %v984 = vadd.f32 0.0, %v983
    %v985 = vpop.f32.mrb[0].mxu0
    %986 = vmatprep.mubr.bf16.mxu0 0
    %987 = vmatmul.mubr.bf16.gmra.mrb[0].mxu0 %v339
    %v988 = vpop.f32.mrb[0].mxu0
    %v989 = vadd.f32 0.0, %v988
    %v990 = vpop.f32.mrb[0].mxu0
    %v991 = vpop.f32.mrb[0].mxu0
    %v992 = vadd.f32 0.0, %v991
    %v993 = vpop.f32.mrb[0].mxu0
    %994 = vmatprep.mubr.bf16.mxu0 0
    %995 = vmatmul.mubr.bf16.gmra.mrb[0].mxu0 %v347
    %v996 = vpop.f32.mrb[0].mxu0
    %v997 = vadd.f32 0.0, %v996
    %v998 = vpop.f32.mrb[0].mxu0
    %v999 = vpop.f32.mrb[0].mxu0
    %v1000 = vadd.f32 0.0, %v999
    %v1001 = vpop.f32.mrb[0].mxu0
    %1002 = vmatprep.mubr.bf16.mxu0 0
    %1003 = vmatmul.mubr.bf16.gmra.mrb[0].mxu0 %v355
    %v1004 = vpop.f32.mrb[0].mxu0
    %v1005 = vadd.f32 0.0, %v1004
    %v1006 = vpop.f32.mrb[0].mxu0
    %v1007 = vpop.f32.mrb[0].mxu0
    %v1008 = vadd.f32 0.0, %v1007
    %v1009 = vpop.f32.mrb[0].mxu0
    %1010 = vmatprep.mubr.bf16.mxu0 0
    %1011 = vmatmul.mubr.bf16.gmra.mrb[0].mxu0 %v363
    %v1012 = vpop.f32.mrb[0].mxu0
    %v1013 = vadd.f32 0.0, %v1012
    %v1014 = vpop.f32.mrb[0].mxu0
    %v1015 = vpop.f32.mrb[0].mxu0
    %v1016 = vadd.f32 0.0, %v1015
    %v1017 = vpop.f32.mrb[0].mxu0
    %1018 = vmatprep.mubr.bf16.mxu0 0
    %1019 = vmatmul.mubr.bf16.gmra.mrb[0].mxu0 %v371
    %v1020 = vpop.f32.mrb[0].mxu0
    %v1021 = vadd.f32 0.0, %v1020
    %v1022 = vpop.f32.mrb[0].mxu0
    %v1023 = vpop.f32.mrb[0].mxu0
    %v1024 = vadd.f32 0.0, %v1023
    %v1025 = vpop.f32.mrb[0].mxu0
    %1026 = vmatprep.mubr.bf16.mxu0 0
    %1027 = vmatmul.mubr.bf16.gmra.mrb[0].mxu0 %v379
    %v1028 = vpop.f32.mrb[0].mxu0
    %v1029 = vadd.f32 0.0, %v1028
    %v1030 = vpop.f32.mrb[0].mxu0
    %v1031 = vpop.f32.mrb[0].mxu0
    %v1032 = vadd.f32 0.0, %v1031
    %v1033 = vpop.f32.mrb[0].mxu0
    %1034 = vmatprep.mubr.bf16.mxu0 0
    %1035 = vmatmul.mubr.bf16.gmra.mrb[0].mxu0 %v387
    %v1036 = vpop.f32.mrb[0].mxu0
    %v1037 = vadd.f32 0.0, %v1036
    %v1038 = vpop.f32.mrb[0].mxu0
    %v1039 = vpop.f32.mrb[0].mxu0
    %v1040 = vadd.f32 0.0, %v1039
    %v1041 = vpop.f32.mrb[0].mxu0
    %1042 = vmatprep.mubr.bf16.mxu0 0
    %1043 = vmatmul.mubr.bf16.gmra.mrb[0].mxu0 %v395
    %v1044 = vpop.f32.mrb[0].mxu0
    %v1045 = vadd.f32 0.0, %v1044
    %v1046 = vpop.f32.mrb[0].mxu0
    %v1047 = vpop.f32.mrb[0].mxu0
    %v1048 = vadd.f32 0.0, %v1047
    %v1049 = vpop.f32.mrb[0].mxu0
    %1050 = vmatprep.mubr.bf16.mxu0 0
    %1051 = vmatmul.mubr.bf16.gmra.mrb[0].mxu0 %v403
    %v1052 = vpop.f32.mrb[0].mxu0
    %v1053 = vadd.f32 0.0, %v1052
    %v1054 = vpop.f32.mrb[0].mxu0
    %v1055 = vpop.f32.mrb[0].mxu0
    %v1056 = vadd.f32 0.0, %v1055
    %v1057 = vpop.f32.mrb[0].mxu0
    %1058 = vmatprep.mubr.bf16.mxu0 0
    %1059 = vmatmul.mubr.bf16.gmra.mrb[0].mxu0 %v411
    %v1060 = vpop.f32.mrb[0].mxu0
    %v1061 = vadd.f32 0.0, %v1060
    %v1062 = vpop.f32.mrb[0].mxu0
    %v1063 = vpop.f32.mrb[0].mxu0
    %v1064 = vadd.f32 0.0, %v1063
    %v1065 = vpop.f32.mrb[0].mxu0
    %1066 = vmatprep.mubr.bf16.mxu0 0
    %1067 = vmatmul.mubr.bf16.gmra.mrb[0].mxu0 %v419
    %v1068 = vpop.f32.mrb[0].mxu0
    %v1069 = vadd.f32 0.0, %v1068
    %v1070 = vpop.f32.mrb[0].mxu0
    %v1071 = vpop.f32.mrb[0].mxu0
    %v1072 = vadd.f32 0.0, %v1071
    %v1073 = vpop.f32.mrb[0].mxu0
    %1074 = vmatprep.mubr.bf16.mxu0 0
    %1075 = vmatmul.mubr.bf16.gmra.mrb[0].mxu0 %v422
    %v1076 = vpop.f32.mrb[0].mxu0
    %v1077 = vadd.f32 0.0, %v1076
    %v1078 = vpop.f32.mrb[0].mxu0
    %v1079 = vpop.f32.mrb[0].mxu0
    %v1080 = vadd.f32 0.0, %v1079
    %v1081 = vpop.f32.mrb[0].mxu0
    %1082 = vdwg.mxu0
    %v1099 = vunpack.c.l.b16 %v262
    %v1100 = vunpack.c.l.b16 %v263
    %v1101 = vunpack.c.l.b16 %v264
    %v1102 = vunpack.c.l.b16 %v265
    %v1103 = vunpack.c.l.b16 %v266
    %v1104 = vunpack.c.l.b16 %v267
    %v1105 = vunpack.c.l.b16 %v268
    %v1106 = vunpack.c.l.b16 %v269
    %v1107 = vunpack.c.l.b16 %v270
    %v1108 = vunpack.c.l.b16 %v271
    %v1109 = vunpack.c.l.b16 %v272
    %v1110 = vunpack.c.l.b16 %v273
    %v1111 = vunpack.c.l.b16 %v274
    %v1112 = vunpack.c.l.b16 %v275
    %v1113 = vunpack.c.l.b16 %v276
    %v1114 = vunpack.c.l.b16 %v277
    %v1115 = vpack.c.b16 %v1100, %v1099
    %v1116 = vpack.c.b16 %v1102, %v1101
    %v1117 = vpack.c.b16 %v1104, %v1103
    %v1118 = vpack.c.b16 %v1106, %v1105
    %v1119 = vpack.c.b16 %v1108, %v1107
    %v1120 = vpack.c.b16 %v1110, %v1109
    %v1121 = vpack.c.b16 %v1112, %v1111
    %v1122 = vpack.c.b16 %v1114, %v1113
    %1131 = vmatprep.subr.bf16.mxu0 0
    %1132 = vmatpush1.bf16.msra.mxu0 %v1115
    %1133 = vmatprep.subr.bf16.mxu0 0
    %1134 = vmatpush1.bf16.msra.mxu0 %v1116
    %1135 = vmatprep.subr.bf16.mxu0 0
    %1136 = vmatpush1.bf16.msra.mxu0 %v1117
    %1137 = vmatprep.subr.bf16.mxu0 0
    %1138 = vmatpush1.bf16.msra.mxu0 %v1118
    %1139 = vmatprep.subr.bf16.mxu0 0
    %1140 = vmatpush1.bf16.msra.mxu0 %v1119
    %1141 = vmatprep.subr.bf16.mxu0 0
    %1142 = vmatpush1.bf16.msra.mxu0 %v1120
    %1143 = vmatprep.subr.bf16.mxu0 0
    %1144 = vmatpush1.bf16.msra.mxu0 %v1121
    %1145 = vmatprep.subr.bf16.mxu0 0
    %1146 = vmatpush1.bf16.msra.mxu0 %v1122
    %1147 = vmatprep.subr.bf16.mxu0 0
    %1148 = vmatpush1.bf16.msra.mxu0 0
    %1149 = vmatprep.subr.bf16.mxu0 0
    %1150 = vmatpush1.bf16.msra.mxu0 0
    %1151 = vmatprep.subr.bf16.mxu0 0
    %1152 = vmatpush1.bf16.msra.mxu0 0
    %1153 = vmatprep.subr.bf16.mxu0 0
    %1154 = vmatpush1.bf16.msra.mxu0 0
    %1155 = vmatprep.subr.bf16.mxu0 0
    %1156 = vmatpush1.bf16.msra.mxu0 0
    %1157 = vmatprep.subr.bf16.mxu0 0
    %1158 = vmatpush1.bf16.msra.mxu0 0
    %1159 = vmatprep.subr.bf16.mxu0 0
    %1160 = vmatpush1.bf16.msra.mxu0 0
    %1161 = vmatprep.subr.bf16.mxu0 0
    %1162 = vmatpush1.bf16.msra.mxu0 0
    %1163 = vmatprep.mubr.bf16.mxu0 0
    %1164 = vmatmul.mubr.bf16.gmra.mrb[0].mxu0 %v230
    %v1165 = vpop.f32.mrb[0].mxu0
    %v1166 = vadd.f32 %v957, %v1165
    %v1167 = vpop.f32.mrb[0].mxu0
    %v1168 = vpop.f32.mrb[0].mxu0
    %v1169 = vadd.f32 %v960, %v1168
    %v1170 = vpop.f32.mrb[0].mxu0
    %1171 = vmatprep.mubr.bf16.mxu0 0
    %1172 = vmatmul.mubr.bf16.gmra.mrb[0].mxu0 %v231
    %v1173 = vpop.f32.mrb[0].mxu0
    %v1174 = vadd.f32 %v965, %v1173
    %v1175 = vpop.f32.mrb[0].mxu0
    %v1176 = vpop.f32.mrb[0].mxu0
    %v1177 = vadd.f32 %v968, %v1176
    %v1178 = vpop.f32.mrb[0].mxu0
    %1179 = vmatprep.mubr.bf16.mxu0 0
    %1180 = vmatmul.mubr.bf16.gmra.mrb[0].mxu0 %v232
    %v1181 = vpop.f32.mrb[0].mxu0
    %v1182 = vadd.f32 %v973, %v1181
    %v1183 = vpop.f32.mrb[0].mxu0
    %v1184 = vpop.f32.mrb[0].mxu0
    %v1185 = vadd.f32 %v976, %v1184
    %v1186 = vpop.f32.mrb[0].mxu0
    %1187 = vmatprep.mubr.bf16.mxu0 0
    %1188 = vmatmul.mubr.bf16.gmra.mrb[0].mxu0 %v233
    %v1189 = vpop.f32.mrb[0].mxu0
    %v1190 = vadd.f32 %v981, %v1189
    %v1191 = vpop.f32.mrb[0].mxu0
    %v1192 = vpop.f32.mrb[0].mxu0
    %v1193 = vadd.f32 %v984, %v1192
    %v1194 = vpop.f32.mrb[0].mxu0
    %1195 = vmatprep.mubr.bf16.mxu0 0
    %1196 = vmatmul.mubr.bf16.gmra.mrb[0].mxu0 %v234
    %v1197 = vpop.f32.mrb[0].mxu0
    %v1198 = vadd.f32 %v989, %v1197
    %v1199 = vpop.f32.mrb[0].mxu0
    %v1200 = vpop.f32.mrb[0].mxu0
    %v1201 = vadd.f32 %v992, %v1200
    %v1202 = vpop.f32.mrb[0].mxu0
    %1203 = vmatprep.mubr.bf16.mxu0 0
    %1204 = vmatmul.mubr.bf16.gmra.mrb[0].mxu0 %v235
    %v1205 = vpop.f32.mrb[0].mxu0
    %v1206 = vadd.f32 %v997, %v1205
    %v1207 = vpop.f32.mrb[0].mxu0
    %v1208 = vpop.f32.mrb[0].mxu0
    %v1209 = vadd.f32 %v1000, %v1208
    %v1210 = vpop.f32.mrb[0].mxu0
    %1211 = vmatprep.mubr.bf16.mxu0 0
    %1212 = vmatmul.mubr.bf16.gmra.mrb[0].mxu0 %v236
    %v1213 = vpop.f32.mrb[0].mxu0
    %v1214 = vadd.f32 %v1005, %v1213
    %v1215 = vpop.f32.mrb[0].mxu0
    %v1216 = vpop.f32.mrb[0].mxu0
    %v1217 = vadd.f32 %v1008, %v1216
    %v1218 = vpop.f32.mrb[0].mxu0
    %1219 = vmatprep.mubr.bf16.mxu0 0
    %1220 = vmatmul.mubr.bf16.gmra.mrb[0].mxu0 %v237
    %v1221 = vpop.f32.mrb[0].mxu0
    %v1222 = vadd.f32 %v1013, %v1221
    %v1223 = vpop.f32.mrb[0].mxu0
    %v1224 = vpop.f32.mrb[0].mxu0
    %v1225 = vadd.f32 %v1016, %v1224
    %v1226 = vpop.f32.mrb[0].mxu0
    %1227 = vmatprep.mubr.bf16.mxu0 0
    %1228 = vmatmul.mubr.bf16.gmra.mrb[0].mxu0 %v238
    %v1229 = vpop.f32.mrb[0].mxu0
    %v1230 = vadd.f32 %v1021, %v1229
    %v1231 = vpop.f32.mrb[0].mxu0
    %v1232 = vpop.f32.mrb[0].mxu0
    %v1233 = vadd.f32 %v1024, %v1232
    %v1234 = vpop.f32.mrb[0].mxu0
    %1235 = vmatprep.mubr.bf16.mxu0 0
    %1236 = vmatmul.mubr.bf16.gmra.mrb[0].mxu0 %v239
    %v1237 = vpop.f32.mrb[0].mxu0
    %v1238 = vadd.f32 %v1029, %v1237
    %v1239 = vpop.f32.mrb[0].mxu0
    %v1240 = vpop.f32.mrb[0].mxu0
    %v1241 = vadd.f32 %v1032, %v1240
    %v1242 = vpop.f32.mrb[0].mxu0
    %1243 = vmatprep.mubr.bf16.mxu0 0
    %1244 = vmatmul.mubr.bf16.gmra.mrb[0].mxu0 %v240
    %v1245 = vpop.f32.mrb[0].mxu0
    %v1246 = vadd.f32 %v1037, %v1245
    %v1247 = vpop.f32.mrb[0].mxu0
    %v1248 = vpop.f32.mrb[0].mxu0
    %v1249 = vadd.f32 %v1040, %v1248
    %v1250 = vpop.f32.mrb[0].mxu0
    %1251 = vmatprep.mubr.bf16.mxu0 0
    %1252 = vmatmul.mubr.bf16.gmra.mrb[0].mxu0 %v241
    %v1253 = vpop.f32.mrb[0].mxu0
    %v1254 = vadd.f32 %v1045, %v1253
    %v1255 = vpop.f32.mrb[0].mxu0
    %v1256 = vpop.f32.mrb[0].mxu0
    %v1257 = vadd.f32 %v1048, %v1256
    %v1258 = vpop.f32.mrb[0].mxu0
    %1259 = vmatprep.mubr.bf16.mxu0 0
    %1260 = vmatmul.mubr.bf16.gmra.mrb[0].mxu0 %v242
    %v1261 = vpop.f32.mrb[0].mxu0
    %v1262 = vadd.f32 %v1053, %v1261
    %v1263 = vpop.f32.mrb[0].mxu0
    %v1264 = vpop.f32.mrb[0].mxu0
    %v1265 = vadd.f32 %v1056, %v1264
    %v1266 = vpop.f32.mrb[0].mxu0
    %1267 = vmatprep.mubr.bf16.mxu0 0
    %1268 = vmatmul.mubr.bf16.gmra.mrb[0].mxu0 %v243
    %v1269 = vpop.f32.mrb[0].mxu0
    %v1270 = vadd.f32 %v1061, %v1269
    %v1271 = vpop.f32.mrb[0].mxu0
    %v1272 = vpop.f32.mrb[0].mxu0
    %v1273 = vadd.f32 %v1064, %v1272
    %v1274 = vpop.f32.mrb[0].mxu0
    %1275 = vmatprep.mubr.bf16.mxu0 0
    %1276 = vmatmul.mubr.bf16.gmra.mrb[0].mxu0 %v244
    %v1277 = vpop.f32.mrb[0].mxu0
    %v1278 = vadd.f32 %v1069, %v1277
    %v1279 = vpop.f32.mrb[0].mxu0
    %v1280 = vpop.f32.mrb[0].mxu0
    %v1281 = vadd.f32 %v1072, %v1280
    %v1282 = vpop.f32.mrb[0].mxu0
    %1283 = vmatprep.mubr.bf16.mxu0 0
    %1284 = vmatmul.mubr.bf16.gmra.mrb[0].mxu0 %v245
    %v1285 = vpop.f32.mrb[0].mxu0
    %v1286 = vadd.f32 %v1077, %v1285
    %v1287 = vpop.f32.mrb[0].mxu0
    %v1288 = vpop.f32.mrb[0].mxu0
    %v1289 = vadd.f32 %v1080, %v1288
    %v1290 = vpop.f32.mrb[0].mxu0
    %1291 = vdwg.mxu0
    %s1292 = scalar_lea.vmem %s1, 128
    %v1293 = vld [vmem:[%s1292] sm:$0xf]
    %v1294 = vld [vmem:[%s1292 + $0x4] sm:$0xf]
    %v1295 = vld [vmem:[%s1292 + $0x8] sm:$0xf]
    %v1296 = vld [vmem:[%s1292 + $0xc] sm:$0xf]
    %v1297 = vld [vmem:[%s1292 + $0x10] sm:$0xf]
    %v1298 = vld [vmem:[%s1292 + $0x14] sm:$0xf]
    %v1299 = vld [vmem:[%s1292 + $0x18] sm:$0xf]
    %v1300 = vld [vmem:[%s1292 + $0x1c] sm:$0xf]
    %v1301 = vld [vmem:[%s1292 + $0x20] sm:$0xf]
    %v1302 = vld [vmem:[%s1292 + $0x24] sm:$0xf]
    %v1303 = vld [vmem:[%s1292 + $0x28] sm:$0xf]
    %v1304 = vld [vmem:[%s1292 + $0x2c] sm:$0xf]
    %v1305 = vld [vmem:[%s1292 + $0x30] sm:$0xf]
    %v1306 = vld [vmem:[%s1292 + $0x34] sm:$0xf]
    %v1307 = vld [vmem:[%s1292 + $0x38] sm:$0xf]
    %v1308 = vld [vmem:[%s1292 + $0x3c] sm:$0xf]
    %vm1325 = vcmask 1046528
    %v1326 = vrot.slane %v230, 1
    %v1327 = vrot.slane %v231, 1
    %v1328 = vsel %vm1325, %v1326, %v1327
    %v1329 = vrot.slane %v232, 1
    %v1330 = vsel %vm1325, %v1327, %v1329
    %v1331 = vrot.slane %v233, 1
    %v1332 = vsel %vm1325, %v1329, %v1331
    %v1333 = vrot.slane %v234, 1
    %v1334 = vsel %vm1325, %v1331, %v1333
    %v1335 = vrot.slane %v235, 1
    %v1336 = vsel %vm1325, %v1333, %v1335
    %v1337 = vrot.slane %v236, 1
    %v1338 = vsel %vm1325, %v1335, %v1337
    %v1339 = vrot.slane %v237, 1
    %v1340 = vsel %vm1325, %v1337, %v1339
    %v1341 = vrot.slane %v238, 1
    %v1342 = vsel %vm1325, %v1339, %v1341
    %v1343 = vrot.slane %v239, 1
    %v1344 = vsel %vm1325, %v1341, %v1343
    %v1345 = vrot.slane %v240, 1
    %v1346 = vsel %vm1325, %v1343, %v1345
    %v1347 = vrot.slane %v241, 1
    %v1348 = vsel %vm1325, %v1345, %v1347
    %v1349 = vrot.slane %v242, 1
    %v1350 = vsel %vm1325, %v1347, %v1349
    %v1351 = vrot.slane %v243, 1
    %v1352 = vsel %vm1325, %v1349, %v1351
    %v1353 = vrot.slane %v244, 1
    %v1354 = vsel %vm1325, %v1351, %v1353
    %v1355 = vrot.slane %v245, 1
    %v1356 = vsel %vm1325, %v1353, %v1355
    %v1389 = vunpack.c.l.b16 %v1293
    %v1390 = vunpack.c.l.b16 %v1294
    %v1391 = vunpack.c.l.b16 %v1295
    %v1392 = vunpack.c.l.b16 %v1296
    %v1393 = vunpack.c.l.b16 %v1297
    %v1394 = vunpack.c.l.b16 %v1298
    %v1395 = vunpack.c.l.b16 %v1299
    %v1396 = vunpack.c.l.b16 %v1300
    %v1397 = vunpack.c.l.b16 %v1301
    %v1398 = vunpack.c.l.b16 %v1302
    %v1399 = vunpack.c.l.b16 %v1303
    %v1400 = vunpack.c.l.b16 %v1304
    %v1401 = vunpack.c.l.b16 %v1305
    %v1402 = vunpack.c.l.b16 %v1306
    %v1403 = vunpack.c.l.b16 %v1307
    %v1404 = vunpack.c.l.b16 %v1308
    %v1405 = vpack.c.b16 %v1390, %v1389
    %v1406 = vpack.c.b16 %v1392, %v1391
    %v1407 = vpack.c.b16 %v1394, %v1393
    %v1408 = vpack.c.b16 %v1396, %v1395
    %v1409 = vpack.c.b16 %v1398, %v1397
    %v1410 = vpack.c.b16 %v1400, %v1399
    %v1411 = vpack.c.b16 %v1402, %v1401
    %v1412 = vpack.c.b16 %v1404, %v1403
    %1421 = vmatprep.subr.bf16.mxu0 0
    %1422 = vmatpush1.bf16.msra.mxu0 %v1405
    %1423 = vmatprep.subr.bf16.mxu0 0
    %1424 = vmatpush1.bf16.msra.mxu0 %v1406
    %1425 = vmatprep.subr.bf16.mxu0 0
    %1426 = vmatpush1.bf16.msra.mxu0 %v1407
    %1427 = vmatprep.subr.bf16.mxu0 0
    %1428 = vmatpush1.bf16.msra.mxu0 %v1408
    %1429 = vmatprep.subr.bf16.mxu0 0
    %1430 = vmatpush1.bf16.msra.mxu0 %v1409
    %1431 = vmatprep.subr.bf16.mxu0 0
    %1432 = vmatpush1.bf16.msra.mxu0 %v1410
    %1433 = vmatprep.subr.bf16.mxu0 0
    %1434 = vmatpush1.bf16.msra.mxu0 %v1411
    %1435 = vmatprep.subr.bf16.mxu0 0
    %1436 = vmatpush1.bf16.msra.mxu0 %v1412
    %1437 = vmatprep.subr.bf16.mxu0 0
    %1438 = vmatpush1.bf16.msra.mxu0 0
    %1439 = vmatprep.subr.bf16.mxu0 0
    %1440 = vmatpush1.bf16.msra.mxu0 0
    %1441 = vmatprep.subr.bf16.mxu0 0
    %1442 = vmatpush1.bf16.msra.mxu0 0
    %1443 = vmatprep.subr.bf16.mxu0 0
    %1444 = vmatpush1.bf16.msra.mxu0 0
    %1445 = vmatprep.subr.bf16.mxu0 0
    %1446 = vmatpush1.bf16.msra.mxu0 0
    %1447 = vmatprep.subr.bf16.mxu0 0
    %1448 = vmatpush1.bf16.msra.mxu0 0
    %1449 = vmatprep.subr.bf16.mxu0 0
    %1450 = vmatpush1.bf16.msra.mxu0 0
    %1451 = vmatprep.subr.bf16.mxu0 0
    %1452 = vmatpush1.bf16.msra.mxu0 0
    %1453 = vmatprep.mubr.bf16.mxu0 0
    %1454 = vmatmul.mubr.bf16.gmra.mrb[0].mxu0 %v1328
    %v1455 = vpop.f32.mrb[0].mxu0
    %v1456 = vadd.f32 0.0, %v1455
    %v1457 = vpop.f32.mrb[0].mxu0
    %v1458 = vpop.f32.mrb[0].mxu0
    %v1459 = vadd.f32 0.0, %v1458
    %v1460 = vpop.f32.mrb[0].mxu0
    %1461 = vmatprep.mubr.bf16.mxu0 0
    %1462 = vmatmul.mubr.bf16.gmra.mrb[0].mxu0 %v1330
    %v1463 = vpop.f32.mrb[0].mxu0
    %v1464 = vadd.f32 0.0, %v1463
    %v1465 = vpop.f32.mrb[0].mxu0
    %v1466 = vpop.f32.mrb[0].mxu0
    %v1467 = vadd.f32 0.0, %v1466
    %v1468 = vpop.f32.mrb[0].mxu0
    %1469 = vmatprep.mubr.bf16.mxu0 0
    %1470 = vmatmul.mubr.bf16.gmra.mrb[0].mxu0 %v1332
    %v1471 = vpop.f32.mrb[0].mxu0
    %v1472 = vadd.f32 0.0, %v1471
    %v1473 = vpop.f32.mrb[0].mxu0
    %v1474 = vpop.f32.mrb[0].mxu0
    %v1475 = vadd.f32 0.0, %v1474
    %v1476 = vpop.f32.mrb[0].mxu0
    %1477 = vmatprep.mubr.bf16.mxu0 0
    %1478 = vmatmul.mubr.bf16.gmra.mrb[0].mxu0 %v1334
    %v1479 = vpop.f32.mrb[0].mxu0
    %v1480 = vadd.f32 0.0, %v1479
    %v1481 = vpop.f32.mrb[0].mxu0
    %v1482 = vpop.f32.mrb[0].mxu0
    %v1483 = vadd.f32 0.0, %v1482
    %v1484 = vpop.f32.mrb[0].mxu0
    %1485 = vmatprep.mubr.bf16.mxu0 0
    %1486 = vmatmul.mubr.bf16.gmra.mrb[0].mxu0 %v1336
    %v1487 = vpop.f32.mrb[0].mxu0
    %v1488 = vadd.f32 0.0, %v1487
    %v1489 = vpop.f32.mrb[0].mxu0
    %v1490 = vpop.f32.mrb[0].mxu0
    %v1491 = vadd.f32 0.0, %v1490
    %v1492 = vpop.f32.mrb[0].mxu0
    %1493 = vmatprep.mubr.bf16.mxu0 0
    %1494 = vmatmul.mubr.bf16.gmra.mrb[0].mxu0 %v1338
    %v1495 = vpop.f32.mrb[0].mxu0
    %v1496 = vadd.f32 0.0, %v1495
    %v1497 = vpop.f32.mrb[0].mxu0
    %v1498 = vpop.f32.mrb[0].mxu0
    %v1499 = vadd.f32 0.0, %v1498
    %v1500 = vpop.f32.mrb[0].mxu0
    %1501 = vmatprep.mubr.bf16.mxu0 0
    %1502 = vmatmul.mubr.bf16.gmra.mrb[0].mxu0 %v1340
    %v1503 = vpop.f32.mrb[0].mxu0
    %v1504 = vadd.f32 0.0, %v1503
    %v1505 = vpop.f32.mrb[0].mxu0
    %v1506 = vpop.f32.mrb[0].mxu0
    %v1507 = vadd.f32 0.0, %v1506
    %v1508 = vpop.f32.mrb[0].mxu0
    %1509 = vmatprep.mubr.bf16.mxu0 0
    %1510 = vmatmul.mubr.bf16.gmra.mrb[0].mxu0 %v1342
    %v1511 = vpop.f32.mrb[0].mxu0
    %v1512 = vadd.f32 0.0, %v1511
    %v1513 = vpop.f32.mrb[0].mxu0
    %v1514 = vpop.f32.mrb[0].mxu0
    %v1515 = vadd.f32 0.0, %v1514
    %v1516 = vpop.f32.mrb[0].mxu0
    %1517 = vmatprep.mubr.bf16.mxu0 0
    %1518 = vmatmul.mubr.bf16.gmra.mrb[0].mxu0 %v1344
    %v1519 = vpop.f32.mrb[0].mxu0
    %v1520 = vadd.f32 0.0, %v1519
    %v1521 = vpop.f32.mrb[0].mxu0
    %v1522 = vpop.f32.mrb[0].mxu0
    %v1523 = vadd.f32 0.0, %v1522
    %v1524 = vpop.f32.mrb[0].mxu0
    %1525 = vmatprep.mubr.bf16.mxu0 0
    %1526 = vmatmul.mubr.bf16.gmra.mrb[0].mxu0 %v1346
    %v1527 = vpop.f32.mrb[0].mxu0
    %v1528 = vadd.f32 0.0, %v1527
    %v1529 = vpop.f32.mrb[0].mxu0
    %v1530 = vpop.f32.mrb[0].mxu0
    %v1531 = vadd.f32 0.0, %v1530
    %v1532 = vpop.f32.mrb[0].mxu0
    %1533 = vmatprep.mubr.bf16.mxu0 0
    %1534 = vmatmul.mubr.bf16.gmra.mrb[0].mxu0 %v1348
    %v1535 = vpop.f32.mrb[0].mxu0
    %v1536 = vadd.f32 0.0, %v1535
    %v1537 = vpop.f32.mrb[0].mxu0
    %v1538 = vpop.f32.mrb[0].mxu0
    %v1539 = vadd.f32 0.0, %v1538
    %v1540 = vpop.f32.mrb[0].mxu0
    %1541 = vmatprep.mubr.bf16.mxu0 0
    %1542 = vmatmul.mubr.bf16.gmra.mrb[0].mxu0 %v1350
    %v1543 = vpop.f32.mrb[0].mxu0
    %v1544 = vadd.f32 0.0, %v1543
    %v1545 = vpop.f32.mrb[0].mxu0
    %v1546 = vpop.f32.mrb[0].mxu0
    %v1547 = vadd.f32 0.0, %v1546
    %v1548 = vpop.f32.mrb[0].mxu0
    %1549 = vmatprep.mubr.bf16.mxu0 0
    %1550 = vmatmul.mubr.bf16.gmra.mrb[0].mxu0 %v1352
    %v1551 = vpop.f32.mrb[0].mxu0
    %v1552 = vadd.f32 0.0, %v1551
    %v1553 = vpop.f32.mrb[0].mxu0
    %v1554 = vpop.f32.mrb[0].mxu0
    %v1555 = vadd.f32 0.0, %v1554
    %v1556 = vpop.f32.mrb[0].mxu0
    %1557 = vmatprep.mubr.bf16.mxu0 0
    %1558 = vmatmul.mubr.bf16.gmra.mrb[0].mxu0 %v1354
    %v1559 = vpop.f32.mrb[0].mxu0
    %v1560 = vadd.f32 0.0, %v1559
    %v1561 = vpop.f32.mrb[0].mxu0
    %v1562 = vpop.f32.mrb[0].mxu0
    %v1563 = vadd.f32 0.0, %v1562
    %v1564 = vpop.f32.mrb[0].mxu0
    %1565 = vmatprep.mubr.bf16.mxu0 0
    %1566 = vmatmul.mubr.bf16.gmra.mrb[0].mxu0 %v1356
    %v1567 = vpop.f32.mrb[0].mxu0
    %v1568 = vadd.f32 0.0, %v1567
    %v1569 = vpop.f32.mrb[0].mxu0
    %v1570 = vpop.f32.mrb[0].mxu0
    %v1571 = vadd.f32 0.0, %v1570
    %v1572 = vpop.f32.mrb[0].mxu0
    %1573 = vmatprep.mubr.bf16.mxu0 0
    %1574 = vmatmul.mubr.bf16.gmra.mrb[0].mxu0 %v1355
    %v1575 = vpop.f32.mrb[0].mxu0
    %v1576 = vadd.f32 0.0, %v1575
    %v1577 = vpop.f32.mrb[0].mxu0
    %v1578 = vpop.f32.mrb[0].mxu0
    %v1579 = vadd.f32 0.0, %v1578
    %v1580 = vpop.f32.mrb[0].mxu0
    %1581 = vdwg.mxu0
    %v1582 = vadd.f32 %v731, %v1456
    %v1583 = vadd.f32 %v734, %v1459
    %v1584 = vadd.f32 %v739, %v1464
    %v1585 = vadd.f32 %v742, %v1467
    %v1586 = vadd.f32 %v747, %v1472
    %v1587 = vadd.f32 %v750, %v1475
    %v1588 = vadd.f32 %v755, %v1480
    %v1589 = vadd.f32 %v758, %v1483
    %v1590 = vadd.f32 %v763, %v1488
    %v1591 = vadd.f32 %v766, %v1491
    %v1592 = vadd.f32 %v771, %v1496
    %v1593 = vadd.f32 %v774, %v1499
    %v1594 = vadd.f32 %v779, %v1504
    %v1595 = vadd.f32 %v782, %v1507
    %v1596 = vadd.f32 %v787, %v1512
    %v1597 = vadd.f32 %v790, %v1515
    %v1598 = vadd.f32 %v795, %v1520
    %v1599 = vadd.f32 %v798, %v1523
    %v1600 = vadd.f32 %v803, %v1528
    %v1601 = vadd.f32 %v806, %v1531
    %v1602 = vadd.f32 %v811, %v1536
    %v1603 = vadd.f32 %v814, %v1539
    %v1604 = vadd.f32 %v819, %v1544
    %v1605 = vadd.f32 %v822, %v1547
    %v1606 = vadd.f32 %v827, %v1552
    %v1607 = vadd.f32 %v830, %v1555
    %v1608 = vadd.f32 %v835, %v1560
    %v1609 = vadd.f32 %v838, %v1563
    %v1610 = vadd.f32 %v843, %v1568
    %v1611 = vadd.f32 %v846, %v1571
    %v1612 = vadd.f32 %v851, %v1576
    %v1613 = vadd.f32 %v854, %v1579
    %s1614 = scalar_lea.vmem %s2, 128
    %v1615 = vld [vmem:[%s1614] sm:$0xf]
    %v1616 = vld [vmem:[%s1614 + $0x4] sm:$0xf]
    %v1617 = vld [vmem:[%s1614 + $0x8] sm:$0xf]
    %v1618 = vld [vmem:[%s1614 + $0xc] sm:$0xf]
    %v1619 = vld [vmem:[%s1614 + $0x10] sm:$0xf]
    %v1620 = vld [vmem:[%s1614 + $0x14] sm:$0xf]
    %v1621 = vld [vmem:[%s1614 + $0x18] sm:$0xf]
    %v1622 = vld [vmem:[%s1614 + $0x1c] sm:$0xf]
    %v1623 = vld [vmem:[%s1614 + $0x20] sm:$0xf]
    %v1624 = vld [vmem:[%s1614 + $0x24] sm:$0xf]
    %v1625 = vld [vmem:[%s1614 + $0x28] sm:$0xf]
    %v1626 = vld [vmem:[%s1614 + $0x2c] sm:$0xf]
    %v1627 = vld [vmem:[%s1614 + $0x30] sm:$0xf]
    %v1628 = vld [vmem:[%s1614 + $0x34] sm:$0xf]
    %v1629 = vld [vmem:[%s1614 + $0x38] sm:$0xf]
    %v1630 = vld [vmem:[%s1614 + $0x3c] sm:$0xf]
    %v1647 = vunpack.c.l.b16 %v1615
    %v1648 = vunpack.c.l.b16 %v1616
    %v1649 = vunpack.c.l.b16 %v1617
    %v1650 = vunpack.c.l.b16 %v1618
    %v1651 = vunpack.c.l.b16 %v1619
    %v1652 = vunpack.c.l.b16 %v1620
    %v1653 = vunpack.c.l.b16 %v1621
    %v1654 = vunpack.c.l.b16 %v1622
    %v1655 = vunpack.c.l.b16 %v1623
    %v1656 = vunpack.c.l.b16 %v1624
    %v1657 = vunpack.c.l.b16 %v1625
    %v1658 = vunpack.c.l.b16 %v1626
    %v1659 = vunpack.c.l.b16 %v1627
    %v1660 = vunpack.c.l.b16 %v1628
    %v1661 = vunpack.c.l.b16 %v1629
    %v1662 = vunpack.c.l.b16 %v1630
    %v1663 = vpack.c.b16 %v1648, %v1647
    %v1664 = vpack.c.b16 %v1650, %v1649
    %v1665 = vpack.c.b16 %v1652, %v1651
    %v1666 = vpack.c.b16 %v1654, %v1653
    %v1667 = vpack.c.b16 %v1656, %v1655
    %v1668 = vpack.c.b16 %v1658, %v1657
    %v1669 = vpack.c.b16 %v1660, %v1659
    %v1670 = vpack.c.b16 %v1662, %v1661
    %1679 = vmatprep.subr.bf16.mxu0 0
    %1680 = vmatpush1.bf16.msra.mxu0 %v1663
    %1681 = vmatprep.subr.bf16.mxu0 0
    %1682 = vmatpush1.bf16.msra.mxu0 %v1664
    %1683 = vmatprep.subr.bf16.mxu0 0
    %1684 = vmatpush1.bf16.msra.mxu0 %v1665
    %1685 = vmatprep.subr.bf16.mxu0 0
    %1686 = vmatpush1.bf16.msra.mxu0 %v1666
    %1687 = vmatprep.subr.bf16.mxu0 0
    %1688 = vmatpush1.bf16.msra.mxu0 %v1667
    %1689 = vmatprep.subr.bf16.mxu0 0
    %1690 = vmatpush1.bf16.msra.mxu0 %v1668
    %1691 = vmatprep.subr.bf16.mxu0 0
    %1692 = vmatpush1.bf16.msra.mxu0 %v1669
    %1693 = vmatprep.subr.bf16.mxu0 0
    %1694 = vmatpush1.bf16.msra.mxu0 %v1670
    %1695 = vmatprep.subr.bf16.mxu0 0
    %1696 = vmatpush1.bf16.msra.mxu0 0
    %1697 = vmatprep.subr.bf16.mxu0 0
    %1698 = vmatpush1.bf16.msra.mxu0 0
    %1699 = vmatprep.subr.bf16.mxu0 0
    %1700 = vmatpush1.bf16.msra.mxu0 0
    %1701 = vmatprep.subr.bf16.mxu0 0
    %1702 = vmatpush1.bf16.msra.mxu0 0
    %1703 = vmatprep.subr.bf16.mxu0 0
    %1704 = vmatpush1.bf16.msra.mxu0 0
    %1705 = vmatprep.subr.bf16.mxu0 0
    %1706 = vmatpush1.bf16.msra.mxu0 0
    %1707 = vmatprep.subr.bf16.mxu0 0
    %1708 = vmatpush1.bf16.msra.mxu0 0
    %1709 = vmatprep.subr.bf16.mxu0 0
    %1710 = vmatpush1.bf16.msra.mxu0 0
    %1711 = vmatprep.mubr.bf16.mxu0 0
    %1712 = vmatmul.mubr.bf16.gmra.mrb[0].mxu0 %v1328
    %v1713 = vpop.f32.mrb[0].mxu0
    %v1714 = vadd.f32 0.0, %v1713
    %v1715 = vpop.f32.mrb[0].mxu0
    %v1716 = vpop.f32.mrb[0].mxu0
    %v1717 = vadd.f32 0.0, %v1716
    %v1718 = vpop.f32.mrb[0].mxu0
    %1719 = vmatprep.mubr.bf16.mxu0 0
    %1720 = vmatmul.mubr.bf16.gmra.mrb[0].mxu0 %v1330
    %v1721 = vpop.f32.mrb[0].mxu0
    %v1722 = vadd.f32 0.0, %v1721
    %v1723 = vpop.f32.mrb[0].mxu0
    %v1724 = vpop.f32.mrb[0].mxu0
    %v1725 = vadd.f32 0.0, %v1724
    %v1726 = vpop.f32.mrb[0].mxu0
    %1727 = vmatprep.mubr.bf16.mxu0 0
    %1728 = vmatmul.mubr.bf16.gmra.mrb[0].mxu0 %v1332
    %v1729 = vpop.f32.mrb[0].mxu0
    %v1730 = vadd.f32 0.0, %v1729
    %v1731 = vpop.f32.mrb[0].mxu0
    %v1732 = vpop.f32.mrb[0].mxu0
    %v1733 = vadd.f32 0.0, %v1732
    %v1734 = vpop.f32.mrb[0].mxu0
    %1735 = vmatprep.mubr.bf16.mxu0 0
    %1736 = vmatmul.mubr.bf16.gmra.mrb[0].mxu0 %v1334
    %v1737 = vpop.f32.mrb[0].mxu0
    %v1738 = vadd.f32 0.0, %v1737
    %v1739 = vpop.f32.mrb[0].mxu0
    %v1740 = vpop.f32.mrb[0].mxu0
    %v1741 = vadd.f32 0.0, %v1740
    %v1742 = vpop.f32.mrb[0].mxu0
    %1743 = vmatprep.mubr.bf16.mxu0 0
    %1744 = vmatmul.mubr.bf16.gmra.mrb[0].mxu0 %v1336
    %v1745 = vpop.f32.mrb[0].mxu0
    %v1746 = vadd.f32 0.0, %v1745
    %v1747 = vpop.f32.mrb[0].mxu0
    %v1748 = vpop.f32.mrb[0].mxu0
    %v1749 = vadd.f32 0.0, %v1748
    %v1750 = vpop.f32.mrb[0].mxu0
    %1751 = vmatprep.mubr.bf16.mxu0 0
    %1752 = vmatmul.mubr.bf16.gmra.mrb[0].mxu0 %v1338
    %v1753 = vpop.f32.mrb[0].mxu0
    %v1754 = vadd.f32 0.0, %v1753
    %v1755 = vpop.f32.mrb[0].mxu0
    %v1756 = vpop.f32.mrb[0].mxu0
    %v1757 = vadd.f32 0.0, %v1756
    %v1758 = vpop.f32.mrb[0].mxu0
    %1759 = vmatprep.mubr.bf16.mxu0 0
    %1760 = vmatmul.mubr.bf16.gmra.mrb[0].mxu0 %v1340
    %v1761 = vpop.f32.mrb[0].mxu0
    %v1762 = vadd.f32 0.0, %v1761
    %v1763 = vpop.f32.mrb[0].mxu0
    %v1764 = vpop.f32.mrb[0].mxu0
    %v1765 = vadd.f32 0.0, %v1764
    %v1766 = vpop.f32.mrb[0].mxu0
    %1767 = vmatprep.mubr.bf16.mxu0 0
    %1768 = vmatmul.mubr.bf16.gmra.mrb[0].mxu0 %v1342
    %v1769 = vpop.f32.mrb[0].mxu0
    %v1770 = vadd.f32 0.0, %v1769
    %v1771 = vpop.f32.mrb[0].mxu0
    %v1772 = vpop.f32.mrb[0].mxu0
    %v1773 = vadd.f32 0.0, %v1772
    %v1774 = vpop.f32.mrb[0].mxu0
    %1775 = vmatprep.mubr.bf16.mxu0 0
    %1776 = vmatmul.mubr.bf16.gmra.mrb[0].mxu0 %v1344
    %v1777 = vpop.f32.mrb[0].mxu0
    %v1778 = vadd.f32 0.0, %v1777
    %v1779 = vpop.f32.mrb[0].mxu0
    %v1780 = vpop.f32.mrb[0].mxu0
    %v1781 = vadd.f32 0.0, %v1780
    %v1782 = vpop.f32.mrb[0].mxu0
    %1783 = vmatprep.mubr.bf16.mxu0 0
    %1784 = vmatmul.mubr.bf16.gmra.mrb[0].mxu0 %v1346
    %v1785 = vpop.f32.mrb[0].mxu0
    %v1786 = vadd.f32 0.0, %v1785
    %v1787 = vpop.f32.mrb[0].mxu0
    %v1788 = vpop.f32.mrb[0].mxu0
    %v1789 = vadd.f32 0.0, %v1788
    %v1790 = vpop.f32.mrb[0].mxu0
    %1791 = vmatprep.mubr.bf16.mxu0 0
    %1792 = vmatmul.mubr.bf16.gmra.mrb[0].mxu0 %v1348
    %v1793 = vpop.f32.mrb[0].mxu0
    %v1794 = vadd.f32 0.0, %v1793
    %v1795 = vpop.f32.mrb[0].mxu0
    %v1796 = vpop.f32.mrb[0].mxu0
    %v1797 = vadd.f32 0.0, %v1796
    %v1798 = vpop.f32.mrb[0].mxu0
    %1799 = vmatprep.mubr.bf16.mxu0 0
    %1800 = vmatmul.mubr.bf16.gmra.mrb[0].mxu0 %v1350
    %v1801 = vpop.f32.mrb[0].mxu0
    %v1802 = vadd.f32 0.0, %v1801
    %v1803 = vpop.f32.mrb[0].mxu0
    %v1804 = vpop.f32.mrb[0].mxu0
    %v1805 = vadd.f32 0.0, %v1804
    %v1806 = vpop.f32.mrb[0].mxu0
    %1807 = vmatprep.mubr.bf16.mxu0 0
    %1808 = vmatmul.mubr.bf16.gmra.mrb[0].mxu0 %v1352
    %v1809 = vpop.f32.mrb[0].mxu0
    %v1810 = vadd.f32 0.0, %v1809
    %v1811 = vpop.f32.mrb[0].mxu0
    %v1812 = vpop.f32.mrb[0].mxu0
    %v1813 = vadd.f32 0.0, %v1812
    %v1814 = vpop.f32.mrb[0].mxu0
    %1815 = vmatprep.mubr.bf16.mxu0 0
    %1816 = vmatmul.mubr.bf16.gmra.mrb[0].mxu0 %v1354
    %v1817 = vpop.f32.mrb[0].mxu0
    %v1818 = vadd.f32 0.0, %v1817
    %v1819 = vpop.f32.mrb[0].mxu0
    %v1820 = vpop.f32.mrb[0].mxu0
    %v1821 = vadd.f32 0.0, %v1820
    %v1822 = vpop.f32.mrb[0].mxu0
    %1823 = vmatprep.mubr.bf16.mxu0 0
    %1824 = vmatmul.mubr.bf16.gmra.mrb[0].mxu0 %v1356
    %v1825 = vpop.f32.mrb[0].mxu0
    %v1826 = vadd.f32 0.0, %v1825
    %v1827 = vpop.f32.mrb[0].mxu0
    %v1828 = vpop.f32.mrb[0].mxu0
    %v1829 = vadd.f32 0.0, %v1828
    %v1830 = vpop.f32.mrb[0].mxu0
    %1831 = vmatprep.mubr.bf16.mxu0 0
    %1832 = vmatmul.mubr.bf16.gmra.mrb[0].mxu0 %v1355
    %v1833 = vpop.f32.mrb[0].mxu0
    %v1834 = vadd.f32 0.0, %v1833
    %v1835 = vpop.f32.mrb[0].mxu0
    %v1836 = vpop.f32.mrb[0].mxu0
    %v1837 = vadd.f32 0.0, %v1836
    %v1838 = vpop.f32.mrb[0].mxu0
    %1839 = vdwg.mxu0
    %v1840 = vadd.f32 %v1166, %v1714
    %v1841 = vadd.f32 %v1169, %v1717
    %v1842 = vadd.f32 %v1174, %v1722
    %v1843 = vadd.f32 %v1177, %v1725
    %v1844 = vadd.f32 %v1182, %v1730
    %v1845 = vadd.f32 %v1185, %v1733
    %v1846 = vadd.f32 %v1190, %v1738
    %v1847 = vadd.f32 %v1193, %v1741
    %v1848 = vadd.f32 %v1198, %v1746
    %v1849 = vadd.f32 %v1201, %v1749
    %v1850 = vadd.f32 %v1206, %v1754
    %v1851 = vadd.f32 %v1209, %v1757
    %v1852 = vadd.f32 %v1214, %v1762
    %v1853 = vadd.f32 %v1217, %v1765
    %v1854 = vadd.f32 %v1222, %v1770
    %v1855 = vadd.f32 %v1225, %v1773
    %v1856 = vadd.f32 %v1230, %v1778
    %v1857 = vadd.f32 %v1233, %v1781
    %v1858 = vadd.f32 %v1238, %v1786
    %v1859 = vadd.f32 %v1241, %v1789
    %v1860 = vadd.f32 %v1246, %v1794
    %v1861 = vadd.f32 %v1249, %v1797
    %v1862 = vadd.f32 %v1254, %v1802
    %v1863 = vadd.f32 %v1257, %v1805
    %v1864 = vadd.f32 %v1262, %v1810
    %v1865 = vadd.f32 %v1265, %v1813
    %v1866 = vadd.f32 %v1270, %v1818
    %v1867 = vadd.f32 %v1273, %v1821
    %v1868 = vadd.f32 %v1278, %v1826
    %v1869 = vadd.f32 %v1281, %v1829
    %v1870 = vadd.f32 %v1286, %v1834
    %v1871 = vadd.f32 %v1289, %v1837
    %s1872 = scalar_lea.vmem %s1, 192
    %v1873 = vld [vmem:[%s1872] sm:$0xf]
    %v1874 = vld [vmem:[%s1872 + $0x4] sm:$0xf]
    %v1875 = vld [vmem:[%s1872 + $0x8] sm:$0xf]
    %v1876 = vld [vmem:[%s1872 + $0xc] sm:$0xf]
    %v1877 = vld [vmem:[%s1872 + $0x10] sm:$0xf]
    %v1878 = vld [vmem:[%s1872 + $0x14] sm:$0xf]
    %v1879 = vld [vmem:[%s1872 + $0x18] sm:$0xf]
    %v1880 = vld [vmem:[%s1872 + $0x1c] sm:$0xf]
    %v1881 = vld [vmem:[%s1872 + $0x20] sm:$0xf]
    %v1882 = vld [vmem:[%s1872 + $0x24] sm:$0xf]
    %v1883 = vld [vmem:[%s1872 + $0x28] sm:$0xf]
    %v1884 = vld [vmem:[%s1872 + $0x2c] sm:$0xf]
    %v1885 = vld [vmem:[%s1872 + $0x30] sm:$0xf]
    %v1886 = vld [vmem:[%s1872 + $0x34] sm:$0xf]
    %v1887 = vld [vmem:[%s1872 + $0x38] sm:$0xf]
    %v1888 = vld [vmem:[%s1872 + $0x3c] sm:$0xf]
    %vm1889 = vsmask.f32 6400
    %v1890 = vrot.slane %v297, 1
    %v1891 = vrot.slane %v299, 2
    %v1892 = vor.u32 %v1890, %v1891
    %v1893 = vrot.slane %v308, 1
    %v1894 = vrot.slane %v304, 2
    %v1895 = vor.u32 %v1893, %v1894
    %v1896 = vsel %vm1889, %v1892, %v1895
    %v1897 = vrot.slane %v316, 1
    %v1898 = vrot.slane %v312, 2
    %v1899 = vor.u32 %v1897, %v1898
    %v1900 = vsel %vm1889, %v1895, %v1899
    %v1901 = vrot.slane %v324, 1
    %v1902 = vrot.slane %v320, 2
    %v1903 = vor.u32 %v1901, %v1902
    %v1904 = vsel %vm1889, %v1899, %v1903
    %v1905 = vrot.slane %v332, 1
    %v1906 = vrot.slane %v328, 2
    %v1907 = vor.u32 %v1905, %v1906
    %v1908 = vsel %vm1889, %v1903, %v1907
    %v1909 = vrot.slane %v340, 1
    %v1910 = vrot.slane %v336, 2
    %v1911 = vor.u32 %v1909, %v1910
    %v1912 = vsel %vm1889, %v1907, %v1911
    %v1913 = vrot.slane %v348, 1
    %v1914 = vrot.slane %v344, 2
    %v1915 = vor.u32 %v1913, %v1914
    %v1916 = vsel %vm1889, %v1911, %v1915
    %v1917 = vrot.slane %v356, 1
    %v1918 = vrot.slane %v352, 2
    %v1919 = vor.u32 %v1917, %v1918
    %v1920 = vsel %vm1889, %v1915, %v1919
    %v1921 = vrot.slane %v364, 1
    %v1922 = vrot.slane %v360, 2
    %v1923 = vor.u32 %v1921, %v1922
    %v1924 = vsel %vm1889, %v1919, %v1923
    %v1925 = vrot.slane %v372, 1
    %v1926 = vrot.slane %v368, 2
    %v1927 = vor.u32 %v1925, %v1926
    %v1928 = vsel %vm1889, %v1923, %v1927
    %v1929 = vrot.slane %v380, 1
    %v1930 = vrot.slane %v376, 2
    %v1931 = vor.u32 %v1929, %v1930
    %v1932 = vsel %vm1889, %v1927, %v1931
    %v1933 = vrot.slane %v388, 1
    %v1934 = vrot.slane %v384, 2
    %v1935 = vor.u32 %v1933, %v1934
    %v1936 = vsel %vm1889, %v1931, %v1935
    %v1937 = vrot.slane %v396, 1
    %v1938 = vrot.slane %v392, 2
    %v1939 = vor.u32 %v1937, %v1938
    %v1940 = vsel %vm1889, %v1935, %v1939
    %v1941 = vrot.slane %v404, 1
    %v1942 = vrot.slane %v400, 2
    %v1943 = vor.u32 %v1941, %v1942
    %v1944 = vsel %vm1889, %v1939, %v1943
    %v1945 = vrot.slane %v412, 1
    %v1946 = vrot.slane %v408, 2
    %v1947 = vor.u32 %v1945, %v1946
    %v1948 = vsel %vm1889, %v1943, %v1947
    %v1949 = vrot.slane %v420, 1
    %v1950 = vrot.slane %v416, 2
    %v1951 = vor.u32 %v1949, %v1950
    %v1952 = vsel %vm1889, %v1947, %v1951
    %v1985 = vunpack.c.l.b16 %v1873
    %v1986 = vunpack.c.l.b16 %v1874
    %v1987 = vunpack.c.l.b16 %v1875
    %v1988 = vunpack.c.l.b16 %v1876
    %v1989 = vunpack.c.l.b16 %v1877
    %v1990 = vunpack.c.l.b16 %v1878
    %v1991 = vunpack.c.l.b16 %v1879
    %v1992 = vunpack.c.l.b16 %v1880
    %v1993 = vunpack.c.l.b16 %v1881
    %v1994 = vunpack.c.l.b16 %v1882
    %v1995 = vunpack.c.l.b16 %v1883
    %v1996 = vunpack.c.l.b16 %v1884
    %v1997 = vunpack.c.l.b16 %v1885
    %v1998 = vunpack.c.l.b16 %v1886
    %v1999 = vunpack.c.l.b16 %v1887
    %v2000 = vunpack.c.l.b16 %v1888
    %v2001 = vpack.c.b16 %v1986, %v1985
    %v2002 = vpack.c.b16 %v1988, %v1987
    %v2003 = vpack.c.b16 %v1990, %v1989
    %v2004 = vpack.c.b16 %v1992, %v1991
    %v2005 = vpack.c.b16 %v1994, %v1993
    %v2006 = vpack.c.b16 %v1996, %v1995
    %v2007 = vpack.c.b16 %v1998, %v1997
    %v2008 = vpack.c.b16 %v2000, %v1999
    %2017 = vmatprep.subr.bf16.mxu0 0
    %2018 = vmatpush1.bf16.msra.mxu0 %v2001
    %2019 = vmatprep.subr.bf16.mxu0 0
    %2020 = vmatpush1.bf16.msra.mxu0 %v2002
    %2021 = vmatprep.subr.bf16.mxu0 0
    %2022 = vmatpush1.bf16.msra.mxu0 %v2003
    %2023 = vmatprep.subr.bf16.mxu0 0
    %2024 = vmatpush1.bf16.msra.mxu0 %v2004
    %2025 = vmatprep.subr.bf16.mxu0 0
    %2026 = vmatpush1.bf16.msra.mxu0 %v2005
    %2027 = vmatprep.subr.bf16.mxu0 0
    %2028 = vmatpush1.bf16.msra.mxu0 %v2006
    %2029 = vmatprep.subr.bf16.mxu0 0
    %2030 = vmatpush1.bf16.msra.mxu0 %v2007
    %2031 = vmatprep.subr.bf16.mxu0 0
    %2032 = vmatpush1.bf16.msra.mxu0 %v2008
    %2033 = vmatprep.subr.bf16.mxu0 0
    %2034 = vmatpush1.bf16.msra.mxu0 0
    %2035 = vmatprep.subr.bf16.mxu0 0
    %2036 = vmatpush1.bf16.msra.mxu0 0
    %2037 = vmatprep.subr.bf16.mxu0 0
    %2038 = vmatpush1.bf16.msra.mxu0 0
    %2039 = vmatprep.subr.bf16.mxu0 0
    %2040 = vmatpush1.bf16.msra.mxu0 0
    %2041 = vmatprep.subr.bf16.mxu0 0
    %2042 = vmatpush1.bf16.msra.mxu0 0
    %2043 = vmatprep.subr.bf16.mxu0 0
    %2044 = vmatpush1.bf16.msra.mxu0 0
    %2045 = vmatprep.subr.bf16.mxu0 0
    %2046 = vmatpush1.bf16.msra.mxu0 0
    %2047 = vmatprep.subr.bf16.mxu0 0
    %2048 = vmatpush1.bf16.msra.mxu0 0
    %2049 = vmatprep.mubr.bf16.mxu0 0
    %2050 = vmatmul.mubr.bf16.gmra.mrb[0].mxu0 %v1896
    %v2051 = vpop.f32.mrb[0].mxu0
    %v2052 = vadd.f32 0.0, %v2051
    %v2053 = vpop.f32.mrb[0].mxu0
    %v2054 = vpop.f32.mrb[0].mxu0
    %v2055 = vadd.f32 0.0, %v2054
    %v2056 = vpop.f32.mrb[0].mxu0
    %2057 = vmatprep.mubr.bf16.mxu0 0
    %2058 = vmatmul.mubr.bf16.gmra.mrb[0].mxu0 %v1900
    %v2059 = vpop.f32.mrb[0].mxu0
    %v2060 = vadd.f32 0.0, %v2059
    %v2061 = vpop.f32.mrb[0].mxu0
    %v2062 = vpop.f32.mrb[0].mxu0
    %v2063 = vadd.f32 0.0, %v2062
    %v2064 = vpop.f32.mrb[0].mxu0
    %2065 = vmatprep.mubr.bf16.mxu0 0
    %2066 = vmatmul.mubr.bf16.gmra.mrb[0].mxu0 %v1904
    %v2067 = vpop.f32.mrb[0].mxu0
    %v2068 = vadd.f32 0.0, %v2067
    %v2069 = vpop.f32.mrb[0].mxu0
    %v2070 = vpop.f32.mrb[0].mxu0
    %v2071 = vadd.f32 0.0, %v2070
    %v2072 = vpop.f32.mrb[0].mxu0
    %2073 = vmatprep.mubr.bf16.mxu0 0
    %2074 = vmatmul.mubr.bf16.gmra.mrb[0].mxu0 %v1908
    %v2075 = vpop.f32.mrb[0].mxu0
    %v2076 = vadd.f32 0.0, %v2075
    %v2077 = vpop.f32.mrb[0].mxu0
    %v2078 = vpop.f32.mrb[0].mxu0
    %v2079 = vadd.f32 0.0, %v2078
    %v2080 = vpop.f32.mrb[0].mxu0
    %2081 = vmatprep.mubr.bf16.mxu0 0
    %2082 = vmatmul.mubr.bf16.gmra.mrb[0].mxu0 %v1912
    %v2083 = vpop.f32.mrb[0].mxu0
    %v2084 = vadd.f32 0.0, %v2083
    %v2085 = vpop.f32.mrb[0].mxu0
    %v2086 = vpop.f32.mrb[0].mxu0
    %v2087 = vadd.f32 0.0, %v2086
    %v2088 = vpop.f32.mrb[0].mxu0
    %2089 = vmatprep.mubr.bf16.mxu0 0
    %2090 = vmatmul.mubr.bf16.gmra.mrb[0].mxu0 %v1916
    %v2091 = vpop.f32.mrb[0].mxu0
    %v2092 = vadd.f32 0.0, %v2091
    %v2093 = vpop.f32.mrb[0].mxu0
    %v2094 = vpop.f32.mrb[0].mxu0
    %v2095 = vadd.f32 0.0, %v2094
    %v2096 = vpop.f32.mrb[0].mxu0
    %2097 = vmatprep.mubr.bf16.mxu0 0
    %2098 = vmatmul.mubr.bf16.gmra.mrb[0].mxu0 %v1920
    %v2099 = vpop.f32.mrb[0].mxu0
    %v2100 = vadd.f32 0.0, %v2099
    %v2101 = vpop.f32.mrb[0].mxu0
    %v2102 = vpop.f32.mrb[0].mxu0
    %v2103 = vadd.f32 0.0, %v2102
    %v2104 = vpop.f32.mrb[0].mxu0
    %2105 = vmatprep.mubr.bf16.mxu0 0
    %2106 = vmatmul.mubr.bf16.gmra.mrb[0].mxu0 %v1924
    %v2107 = vpop.f32.mrb[0].mxu0
    %v2108 = vadd.f32 0.0, %v2107
    %v2109 = vpop.f32.mrb[0].mxu0
    %v2110 = vpop.f32.mrb[0].mxu0
    %v2111 = vadd.f32 0.0, %v2110
    %v2112 = vpop.f32.mrb[0].mxu0
    %2113 = vmatprep.mubr.bf16.mxu0 0
    %2114 = vmatmul.mubr.bf16.gmra.mrb[0].mxu0 %v1928
    %v2115 = vpop.f32.mrb[0].mxu0
    %v2116 = vadd.f32 0.0, %v2115
    %v2117 = vpop.f32.mrb[0].mxu0
    %v2118 = vpop.f32.mrb[0].mxu0
    %v2119 = vadd.f32 0.0, %v2118
    %v2120 = vpop.f32.mrb[0].mxu0
    %2121 = vmatprep.mubr.bf16.mxu0 0
    %2122 = vmatmul.mubr.bf16.gmra.mrb[0].mxu0 %v1932
    %v2123 = vpop.f32.mrb[0].mxu0
    %v2124 = vadd.f32 0.0, %v2123
    %v2125 = vpop.f32.mrb[0].mxu0
    %v2126 = vpop.f32.mrb[0].mxu0
    %v2127 = vadd.f32 0.0, %v2126
    %v2128 = vpop.f32.mrb[0].mxu0
    %2129 = vmatprep.mubr.bf16.mxu0 0
    %2130 = vmatmul.mubr.bf16.gmra.mrb[0].mxu0 %v1936
    %v2131 = vpop.f32.mrb[0].mxu0
    %v2132 = vadd.f32 0.0, %v2131
    %v2133 = vpop.f32.mrb[0].mxu0
    %v2134 = vpop.f32.mrb[0].mxu0
    %v2135 = vadd.f32 0.0, %v2134
    %v2136 = vpop.f32.mrb[0].mxu0
    %2137 = vmatprep.mubr.bf16.mxu0 0
    %2138 = vmatmul.mubr.bf16.gmra.mrb[0].mxu0 %v1940
    %v2139 = vpop.f32.mrb[0].mxu0
    %v2140 = vadd.f32 0.0, %v2139
    %v2141 = vpop.f32.mrb[0].mxu0
    %v2142 = vpop.f32.mrb[0].mxu0
    %v2143 = vadd.f32 0.0, %v2142
    %v2144 = vpop.f32.mrb[0].mxu0
    %2145 = vmatprep.mubr.bf16.mxu0 0
    %2146 = vmatmul.mubr.bf16.gmra.mrb[0].mxu0 %v1944
    %v2147 = vpop.f32.mrb[0].mxu0
    %v2148 = vadd.f32 0.0, %v2147
    %v2149 = vpop.f32.mrb[0].mxu0
    %v2150 = vpop.f32.mrb[0].mxu0
    %v2151 = vadd.f32 0.0, %v2150
    %v2152 = vpop.f32.mrb[0].mxu0
    %2153 = vmatprep.mubr.bf16.mxu0 0
    %2154 = vmatmul.mubr.bf16.gmra.mrb[0].mxu0 %v1948
    %v2155 = vpop.f32.mrb[0].mxu0
    %v2156 = vadd.f32 0.0, %v2155
    %v2157 = vpop.f32.mrb[0].mxu0
    %v2158 = vpop.f32.mrb[0].mxu0
    %v2159 = vadd.f32 0.0, %v2158
    %v2160 = vpop.f32.mrb[0].mxu0
    %2161 = vmatprep.mubr.bf16.mxu0 0
    %2162 = vmatmul.mubr.bf16.gmra.mrb[0].mxu0 %v1952
    %v2163 = vpop.f32.mrb[0].mxu0
    %v2164 = vadd.f32 0.0, %v2163
    %v2165 = vpop.f32.mrb[0].mxu0
    %v2166 = vpop.f32.mrb[0].mxu0
    %v2167 = vadd.f32 0.0, %v2166
    %v2168 = vpop.f32.mrb[0].mxu0
    %2169 = vmatprep.mubr.bf16.mxu0 0
    %2170 = vmatmul.mubr.bf16.gmra.mrb[0].mxu0 %v1951
    %v2171 = vpop.f32.mrb[0].mxu0
    %v2172 = vadd.f32 0.0, %v2171
    %v2173 = vpop.f32.mrb[0].mxu0
    %v2174 = vpop.f32.mrb[0].mxu0
    %v2175 = vadd.f32 0.0, %v2174
    %v2176 = vpop.f32.mrb[0].mxu0
    %2177 = vdwg.mxu0
    %v2178 = vadd.f32 %v1582, %v2052
    %v2179 = vadd.f32 %v1583, %v2055
    %v2180 = vadd.f32 %v1584, %v2060
    %v2181 = vadd.f32 %v1585, %v2063
    %v2182 = vadd.f32 %v1586, %v2068
    %v2183 = vadd.f32 %v1587, %v2071
    %v2184 = vadd.f32 %v1588, %v2076
    %v2185 = vadd.f32 %v1589, %v2079
    %v2186 = vadd.f32 %v1590, %v2084
    %v2187 = vadd.f32 %v1591, %v2087
    %v2188 = vadd.f32 %v1592, %v2092
    %v2189 = vadd.f32 %v1593, %v2095
    %v2190 = vadd.f32 %v1594, %v2100
    %v2191 = vadd.f32 %v1595, %v2103
    %v2192 = vadd.f32 %v1596, %v2108
    %v2193 = vadd.f32 %v1597, %v2111
    %v2194 = vadd.f32 %v1598, %v2116
    %v2195 = vadd.f32 %v1599, %v2119
    %v2196 = vadd.f32 %v1600, %v2124
    %v2197 = vadd.f32 %v1601, %v2127
    %v2198 = vadd.f32 %v1602, %v2132
    %v2199 = vadd.f32 %v1603, %v2135
    %v2200 = vadd.f32 %v1604, %v2140
    %v2201 = vadd.f32 %v1605, %v2143
    %v2202 = vadd.f32 %v1606, %v2148
    %v2203 = vadd.f32 %v1607, %v2151
    %v2204 = vadd.f32 %v1608, %v2156
    %v2205 = vadd.f32 %v1609, %v2159
    %v2206 = vadd.f32 %v1610, %v2164
    %v2207 = vadd.f32 %v1611, %v2167
    %v2208 = vadd.f32 %v1612, %v2172
    %v2209 = vadd.f32 %v1613, %v2175
    %s2210 = scalar_lea.vmem %s2, 192
    %v2211 = vld [vmem:[%s2210] sm:$0xf]
    %v2212 = vld [vmem:[%s2210 + $0x4] sm:$0xf]
    %v2213 = vld [vmem:[%s2210 + $0x8] sm:$0xf]
    %v2214 = vld [vmem:[%s2210 + $0xc] sm:$0xf]
    %v2215 = vld [vmem:[%s2210 + $0x10] sm:$0xf]
    %v2216 = vld [vmem:[%s2210 + $0x14] sm:$0xf]
    %v2217 = vld [vmem:[%s2210 + $0x18] sm:$0xf]
    %v2218 = vld [vmem:[%s2210 + $0x1c] sm:$0xf]
    %v2219 = vld [vmem:[%s2210 + $0x20] sm:$0xf]
    %v2220 = vld [vmem:[%s2210 + $0x24] sm:$0xf]
    %v2221 = vld [vmem:[%s2210 + $0x28] sm:$0xf]
    %v2222 = vld [vmem:[%s2210 + $0x2c] sm:$0xf]
    %v2223 = vld [vmem:[%s2210 + $0x30] sm:$0xf]
    %v2224 = vld [vmem:[%s2210 + $0x34] sm:$0xf]
    %v2225 = vld [vmem:[%s2210 + $0x38] sm:$0xf]
    %v2226 = vld [vmem:[%s2210 + $0x3c] sm:$0xf]
    %v2243 = vunpack.c.l.b16 %v2211
    %v2244 = vunpack.c.l.b16 %v2212
    %v2245 = vunpack.c.l.b16 %v2213
    %v2246 = vunpack.c.l.b16 %v2214
    %v2247 = vunpack.c.l.b16 %v2215
    %v2248 = vunpack.c.l.b16 %v2216
    %v2249 = vunpack.c.l.b16 %v2217
    %v2250 = vunpack.c.l.b16 %v2218
    %v2251 = vunpack.c.l.b16 %v2219
    %v2252 = vunpack.c.l.b16 %v2220
    %v2253 = vunpack.c.l.b16 %v2221
    %v2254 = vunpack.c.l.b16 %v2222
    %v2255 = vunpack.c.l.b16 %v2223
    %v2256 = vunpack.c.l.b16 %v2224
    %v2257 = vunpack.c.l.b16 %v2225
    %v2258 = vunpack.c.l.b16 %v2226
    %v2259 = vpack.c.b16 %v2244, %v2243
    %v2260 = vpack.c.b16 %v2246, %v2245
    %v2261 = vpack.c.b16 %v2248, %v2247
    %v2262 = vpack.c.b16 %v2250, %v2249
    %v2263 = vpack.c.b16 %v2252, %v2251
    %v2264 = vpack.c.b16 %v2254, %v2253
    %v2265 = vpack.c.b16 %v2256, %v2255
    %v2266 = vpack.c.b16 %v2258, %v2257
    %2275 = vmatprep.subr.bf16.mxu0 0
    %2276 = vmatpush1.bf16.msra.mxu0 %v2259
    %2277 = vmatprep.subr.bf16.mxu0 0
    %2278 = vmatpush1.bf16.msra.mxu0 %v2260
    %2279 = vmatprep.subr.bf16.mxu0 0
    %2280 = vmatpush1.bf16.msra.mxu0 %v2261
    %2281 = vmatprep.subr.bf16.mxu0 0
    %2282 = vmatpush1.bf16.msra.mxu0 %v2262
    %2283 = vmatprep.subr.bf16.mxu0 0
    %2284 = vmatpush1.bf16.msra.mxu0 %v2263
    %2285 = vmatprep.subr.bf16.mxu0 0
    %2286 = vmatpush1.bf16.msra.mxu0 %v2264
    %2287 = vmatprep.subr.bf16.mxu0 0
    %2288 = vmatpush1.bf16.msra.mxu0 %v2265
    %2289 = vmatprep.subr.bf16.mxu0 0
    %2290 = vmatpush1.bf16.msra.mxu0 %v2266
    %2291 = vmatprep.subr.bf16.mxu0 0
    %2292 = vmatpush1.bf16.msra.mxu0 0
    %2293 = vmatprep.subr.bf16.mxu0 0
    %2294 = vmatpush1.bf16.msra.mxu0 0
    %2295 = vmatprep.subr.bf16.mxu0 0
    %2296 = vmatpush1.bf16.msra.mxu0 0
    %2297 = vmatprep.subr.bf16.mxu0 0
    %2298 = vmatpush1.bf16.msra.mxu0 0
    %2299 = vmatprep.subr.bf16.mxu0 0
    %2300 = vmatpush1.bf16.msra.mxu0 0
    %2301 = vmatprep.subr.bf16.mxu0 0
    %2302 = vmatpush1.bf16.msra.mxu0 0
    %2303 = vmatprep.subr.bf16.mxu0 0
    %2304 = vmatpush1.bf16.msra.mxu0 0
    %2305 = vmatprep.subr.bf16.mxu0 0
    %2306 = vmatpush1.bf16.msra.mxu0 0
    %2307 = vmatprep.mubr.bf16.mxu0 0
    %2308 = vmatmul.mubr.bf16.gmra.mrb[0].mxu0 %v1896
    %v2309 = vpop.f32.mrb[0].mxu0
    %v2310 = vadd.f32 0.0, %v2309
    %v2311 = vpop.f32.mrb[0].mxu0
    %v2312 = vpop.f32.mrb[0].mxu0
    %v2313 = vadd.f32 0.0, %v2312
    %v2314 = vpop.f32.mrb[0].mxu0
    %2315 = vmatprep.mubr.bf16.mxu0 0
    %2316 = vmatmul.mubr.bf16.gmra.mrb[0].mxu0 %v1900
    %v2317 = vpop.f32.mrb[0].mxu0
    %v2318 = vadd.f32 0.0, %v2317
    %v2319 = vpop.f32.mrb[0].mxu0
    %v2320 = vpop.f32.mrb[0].mxu0
    %v2321 = vadd.f32 0.0, %v2320
    %v2322 = vpop.f32.mrb[0].mxu0
    %2323 = vmatprep.mubr.bf16.mxu0 0
    %2324 = vmatmul.mubr.bf16.gmra.mrb[0].mxu0 %v1904
    %v2325 = vpop.f32.mrb[0].mxu0
    %v2326 = vadd.f32 0.0, %v2325
    %v2327 = vpop.f32.mrb[0].mxu0
    %v2328 = vpop.f32.mrb[0].mxu0
    %v2329 = vadd.f32 0.0, %v2328
    %v2330 = vpop.f32.mrb[0].mxu0
    %2331 = vmatprep.mubr.bf16.mxu0 0
    %2332 = vmatmul.mubr.bf16.gmra.mrb[0].mxu0 %v1908
    %v2333 = vpop.f32.mrb[0].mxu0
    %v2334 = vadd.f32 0.0, %v2333
    %v2335 = vpop.f32.mrb[0].mxu0
    %v2336 = vpop.f32.mrb[0].mxu0
    %v2337 = vadd.f32 0.0, %v2336
    %v2338 = vpop.f32.mrb[0].mxu0
    %2339 = vmatprep.mubr.bf16.mxu0 0
    %2340 = vmatmul.mubr.bf16.gmra.mrb[0].mxu0 %v1912
    %v2341 = vpop.f32.mrb[0].mxu0
    %v2342 = vadd.f32 0.0, %v2341
    %v2343 = vpop.f32.mrb[0].mxu0
    %v2344 = vpop.f32.mrb[0].mxu0
    %v2345 = vadd.f32 0.0, %v2344
    %v2346 = vpop.f32.mrb[0].mxu0
    %2347 = vmatprep.mubr.bf16.mxu0 0
    %2348 = vmatmul.mubr.bf16.gmra.mrb[0].mxu0 %v1916
    %v2349 = vpop.f32.mrb[0].mxu0
    %v2350 = vadd.f32 0.0, %v2349
    %v2351 = vpop.f32.mrb[0].mxu0
    %v2352 = vpop.f32.mrb[0].mxu0
    %v2353 = vadd.f32 0.0, %v2352
    %v2354 = vpop.f32.mrb[0].mxu0
    %2355 = vmatprep.mubr.bf16.mxu0 0
    %2356 = vmatmul.mubr.bf16.gmra.mrb[0].mxu0 %v1920
    %v2357 = vpop.f32.mrb[0].mxu0
    %v2358 = vadd.f32 0.0, %v2357
    %v2359 = vpop.f32.mrb[0].mxu0
    %v2360 = vpop.f32.mrb[0].mxu0
    %v2361 = vadd.f32 0.0, %v2360
    %v2362 = vpop.f32.mrb[0].mxu0
    %2363 = vmatprep.mubr.bf16.mxu0 0
    %2364 = vmatmul.mubr.bf16.gmra.mrb[0].mxu0 %v1924
    %v2365 = vpop.f32.mrb[0].mxu0
    %v2366 = vadd.f32 0.0, %v2365
    %v2367 = vpop.f32.mrb[0].mxu0
    %v2368 = vpop.f32.mrb[0].mxu0
    %v2369 = vadd.f32 0.0, %v2368
    %v2370 = vpop.f32.mrb[0].mxu0
    %2371 = vmatprep.mubr.bf16.mxu0 0
    %2372 = vmatmul.mubr.bf16.gmra.mrb[0].mxu0 %v1928
    %v2373 = vpop.f32.mrb[0].mxu0
    %v2374 = vadd.f32 0.0, %v2373
    %v2375 = vpop.f32.mrb[0].mxu0
    %v2376 = vpop.f32.mrb[0].mxu0
    %v2377 = vadd.f32 0.0, %v2376
    %v2378 = vpop.f32.mrb[0].mxu0
    %2379 = vmatprep.mubr.bf16.mxu0 0
    %2380 = vmatmul.mubr.bf16.gmra.mrb[0].mxu0 %v1932
    %v2381 = vpop.f32.mrb[0].mxu0
    %v2382 = vadd.f32 0.0, %v2381
    %v2383 = vpop.f32.mrb[0].mxu0
    %v2384 = vpop.f32.mrb[0].mxu0
    %v2385 = vadd.f32 0.0, %v2384
    %v2386 = vpop.f32.mrb[0].mxu0
    %2387 = vmatprep.mubr.bf16.mxu0 0
    %2388 = vmatmul.mubr.bf16.gmra.mrb[0].mxu0 %v1936
    %v2389 = vpop.f32.mrb[0].mxu0
    %v2390 = vadd.f32 0.0, %v2389
    %v2391 = vpop.f32.mrb[0].mxu0
    %v2392 = vpop.f32.mrb[0].mxu0
    %v2393 = vadd.f32 0.0, %v2392
    %v2394 = vpop.f32.mrb[0].mxu0
    %2395 = vmatprep.mubr.bf16.mxu0 0
    %2396 = vmatmul.mubr.bf16.gmra.mrb[0].mxu0 %v1940
    %v2397 = vpop.f32.mrb[0].mxu0
    %v2398 = vadd.f32 0.0, %v2397
    %v2399 = vpop.f32.mrb[0].mxu0
    %v2400 = vpop.f32.mrb[0].mxu0
    %v2401 = vadd.f32 0.0, %v2400
    %v2402 = vpop.f32.mrb[0].mxu0
    %2403 = vmatprep.mubr.bf16.mxu0 0
    %2404 = vmatmul.mubr.bf16.gmra.mrb[0].mxu0 %v1944
    %v2405 = vpop.f32.mrb[0].mxu0
    %v2406 = vadd.f32 0.0, %v2405
    %v2407 = vpop.f32.mrb[0].mxu0
    %v2408 = vpop.f32.mrb[0].mxu0
    %v2409 = vadd.f32 0.0, %v2408
    %v2410 = vpop.f32.mrb[0].mxu0
    %2411 = vmatprep.mubr.bf16.mxu0 0
    %2412 = vmatmul.mubr.bf16.gmra.mrb[0].mxu0 %v1948
    %v2413 = vpop.f32.mrb[0].mxu0
    %v2414 = vadd.f32 0.0, %v2413
    %v2415 = vpop.f32.mrb[0].mxu0
    %v2416 = vpop.f32.mrb[0].mxu0
    %v2417 = vadd.f32 0.0, %v2416
    %v2418 = vpop.f32.mrb[0].mxu0
    %2419 = vmatprep.mubr.bf16.mxu0 0
    %2420 = vmatmul.mubr.bf16.gmra.mrb[0].mxu0 %v1952
    %v2421 = vpop.f32.mrb[0].mxu0
    %v2422 = vadd.f32 0.0, %v2421
    %v2423 = vpop.f32.mrb[0].mxu0
    %v2424 = vpop.f32.mrb[0].mxu0
    %v2425 = vadd.f32 0.0, %v2424
    %v2426 = vpop.f32.mrb[0].mxu0
    %2427 = vmatprep.mubr.bf16.mxu0 0
    %2428 = vmatmul.mubr.bf16.gmra.mrb[0].mxu0 %v1951
    %v2429 = vpop.f32.mrb[0].mxu0
    %v2430 = vadd.f32 0.0, %v2429
    %v2431 = vpop.f32.mrb[0].mxu0
    %v2432 = vpop.f32.mrb[0].mxu0
    %v2433 = vadd.f32 0.0, %v2432
    %v2434 = vpop.f32.mrb[0].mxu0
    %2435 = vdwg.mxu0
    %v2436 = vadd.f32 %v1840, %v2310
    %v2437 = vadd.f32 %v1841, %v2313
    %v2438 = vadd.f32 %v1842, %v2318
    %v2439 = vadd.f32 %v1843, %v2321
    %v2440 = vadd.f32 %v1844, %v2326
    %v2441 = vadd.f32 %v1845, %v2329
    %v2442 = vadd.f32 %v1846, %v2334
    %v2443 = vadd.f32 %v1847, %v2337
    %v2444 = vadd.f32 %v1848, %v2342
    %v2445 = vadd.f32 %v1849, %v2345
    %v2446 = vadd.f32 %v1850, %v2350
    %v2447 = vadd.f32 %v1851, %v2353
    %v2448 = vadd.f32 %v1852, %v2358
    %v2449 = vadd.f32 %v1853, %v2361
    %v2450 = vadd.f32 %v1854, %v2366
    %v2451 = vadd.f32 %v1855, %v2369
    %v2452 = vadd.f32 %v1856, %v2374
    %v2453 = vadd.f32 %v1857, %v2377
    %v2454 = vadd.f32 %v1858, %v2382
    %v2455 = vadd.f32 %v1859, %v2385
    %v2456 = vadd.f32 %v1860, %v2390
    %v2457 = vadd.f32 %v1861, %v2393
    %v2458 = vadd.f32 %v1862, %v2398
    %v2459 = vadd.f32 %v1863, %v2401
    %v2460 = vadd.f32 %v1864, %v2406
    %v2461 = vadd.f32 %v1865, %v2409
    %v2462 = vadd.f32 %v1866, %v2414
    %v2463 = vadd.f32 %v1867, %v2417
    %v2464 = vadd.f32 %v1868, %v2422
    %v2465 = vadd.f32 %v1869, %v2425
    %v2466 = vadd.f32 %v1870, %v2430
    %v2467 = vadd.f32 %v1871, %v2433
    %s2468 = scalar_lea.vmem %s1, 256
    %v2469 = vld [vmem:[%s2468] sm:$0xf]
    %v2470 = vld [vmem:[%s2468 + $0x4] sm:$0xf]
    %v2471 = vld [vmem:[%s2468 + $0x8] sm:$0xf]
    %v2472 = vld [vmem:[%s2468 + $0xc] sm:$0xf]
    %v2473 = vld [vmem:[%s2468 + $0x10] sm:$0xf]
    %v2474 = vld [vmem:[%s2468 + $0x14] sm:$0xf]
    %v2475 = vld [vmem:[%s2468 + $0x18] sm:$0xf]
    %v2476 = vld [vmem:[%s2468 + $0x1c] sm:$0xf]
    %v2477 = vld [vmem:[%s2468 + $0x20] sm:$0xf]
    %v2478 = vld [vmem:[%s2468 + $0x24] sm:$0xf]
    %v2479 = vld [vmem:[%s2468 + $0x28] sm:$0xf]
    %v2480 = vld [vmem:[%s2468 + $0x2c] sm:$0xf]
    %v2481 = vld [vmem:[%s2468 + $0x30] sm:$0xf]
    %v2482 = vld [vmem:[%s2468 + $0x34] sm:$0xf]
    %v2483 = vld [vmem:[%s2468 + $0x38] sm:$0xf]
    %v2484 = vld [vmem:[%s2468 + $0x3c] sm:$0xf]
    %vm2485 = vcmask 1045504
    %v2486 = vrot.slane %v230, 2
    %v2487 = vrot.slane %v231, 2
    %v2488 = vsel %vm2485, %v2486, %v2487
    %v2489 = vrot.slane %v232, 2
    %v2490 = vsel %vm2485, %v2487, %v2489
    %v2491 = vrot.slane %v233, 2
    %v2492 = vsel %vm2485, %v2489, %v2491
    %v2493 = vrot.slane %v234, 2
    %v2494 = vsel %vm2485, %v2491, %v2493
    %v2495 = vrot.slane %v235, 2
    %v2496 = vsel %vm2485, %v2493, %v2495
    %v2497 = vrot.slane %v236, 2
    %v2498 = vsel %vm2485, %v2495, %v2497
    %v2499 = vrot.slane %v237, 2
    %v2500 = vsel %vm2485, %v2497, %v2499
    %v2501 = vrot.slane %v238, 2
    %v2502 = vsel %vm2485, %v2499, %v2501
    %v2503 = vrot.slane %v239, 2
    %v2504 = vsel %vm2485, %v2501, %v2503
    %v2505 = vrot.slane %v240, 2
    %v2506 = vsel %vm2485, %v2503, %v2505
    %v2507 = vrot.slane %v241, 2
    %v2508 = vsel %vm2485, %v2505, %v2507
    %v2509 = vrot.slane %v242, 2
    %v2510 = vsel %vm2485, %v2507, %v2509
    %v2511 = vrot.slane %v243, 2
    %v2512 = vsel %vm2485, %v2509, %v2511
    %v2513 = vrot.slane %v244, 2
    %v2514 = vsel %vm2485, %v2511, %v2513
    %v2515 = vrot.slane %v245, 2
    %v2516 = vsel %vm2485, %v2513, %v2515
    %v2549 = vunpack.c.l.b16 %v2469
    %v2550 = vunpack.c.l.b16 %v2470
    %v2551 = vunpack.c.l.b16 %v2471
    %v2552 = vunpack.c.l.b16 %v2472
    %v2553 = vunpack.c.l.b16 %v2473
    %v2554 = vunpack.c.l.b16 %v2474
    %v2555 = vunpack.c.l.b16 %v2475
    %v2556 = vunpack.c.l.b16 %v2476
    %v2557 = vunpack.c.l.b16 %v2477
    %v2558 = vunpack.c.l.b16 %v2478
    %v2559 = vunpack.c.l.b16 %v2479
    %v2560 = vunpack.c.l.b16 %v2480
    %v2561 = vunpack.c.l.b16 %v2481
    %v2562 = vunpack.c.l.b16 %v2482
    %v2563 = vunpack.c.l.b16 %v2483
    %v2564 = vunpack.c.l.b16 %v2484
    %v2565 = vpack.c.b16 %v2550, %v2549
    %v2566 = vpack.c.b16 %v2552, %v2551
    %v2567 = vpack.c.b16 %v2554, %v2553
    %v2568 = vpack.c.b16 %v2556, %v2555
    %v2569 = vpack.c.b16 %v2558, %v2557
    %v2570 = vpack.c.b16 %v2560, %v2559
    %v2571 = vpack.c.b16 %v2562, %v2561
    %v2572 = vpack.c.b16 %v2564, %v2563
    %2581 = vmatprep.subr.bf16.mxu0 0
    %2582 = vmatpush1.bf16.msra.mxu0 %v2565
    %2583 = vmatprep.subr.bf16.mxu0 0
    %2584 = vmatpush1.bf16.msra.mxu0 %v2566
    %2585 = vmatprep.subr.bf16.mxu0 0
    %2586 = vmatpush1.bf16.msra.mxu0 %v2567
    %2587 = vmatprep.subr.bf16.mxu0 0
    %2588 = vmatpush1.bf16.msra.mxu0 %v2568
    %2589 = vmatprep.subr.bf16.mxu0 0
    %2590 = vmatpush1.bf16.msra.mxu0 %v2569
    %2591 = vmatprep.subr.bf16.mxu0 0
    %2592 = vmatpush1.bf16.msra.mxu0 %v2570
    %2593 = vmatprep.subr.bf16.mxu0 0
    %2594 = vmatpush1.bf16.msra.mxu0 %v2571
    %2595 = vmatprep.subr.bf16.mxu0 0
    %2596 = vmatpush1.bf16.msra.mxu0 %v2572
    %2597 = vmatprep.subr.bf16.mxu0 0
    %2598 = vmatpush1.bf16.msra.mxu0 0
    %2599 = vmatprep.subr.bf16.mxu0 0
    %2600 = vmatpush1.bf16.msra.mxu0 0
    %2601 = vmatprep.subr.bf16.mxu0 0
    %2602 = vmatpush1.bf16.msra.mxu0 0
    %2603 = vmatprep.subr.bf16.mxu0 0
    %2604 = vmatpush1.bf16.msra.mxu0 0
    %2605 = vmatprep.subr.bf16.mxu0 0
    %2606 = vmatpush1.bf16.msra.mxu0 0
    %2607 = vmatprep.subr.bf16.mxu0 0
    %2608 = vmatpush1.bf16.msra.mxu0 0
    %2609 = vmatprep.subr.bf16.mxu0 0
    %2610 = vmatpush1.bf16.msra.mxu0 0
    %2611 = vmatprep.subr.bf16.mxu0 0
    %2612 = vmatpush1.bf16.msra.mxu0 0
    %2613 = vmatprep.mubr.bf16.mxu0 0
    %2614 = vmatmul.mubr.bf16.gmra.mrb[0].mxu0 %v2488
    %v2615 = vpop.f32.mrb[0].mxu0
    %v2616 = vadd.f32 0.0, %v2615
    %v2617 = vpop.f32.mrb[0].mxu0
    %v2618 = vpop.f32.mrb[0].mxu0
    %v2619 = vadd.f32 0.0, %v2618
    %v2620 = vpop.f32.mrb[0].mxu0
    %2621 = vmatprep.mubr.bf16.mxu0 0
    %2622 = vmatmul.mubr.bf16.gmra.mrb[0].mxu0 %v2490
    %v2623 = vpop.f32.mrb[0].mxu0
    %v2624 = vadd.f32 0.0, %v2623
    %v2625 = vpop.f32.mrb[0].mxu0
    %v2626 = vpop.f32.mrb[0].mxu0
    %v2627 = vadd.f32 0.0, %v2626
    %v2628 = vpop.f32.mrb[0].mxu0
    %2629 = vmatprep.mubr.bf16.mxu0 0
    %2630 = vmatmul.mubr.bf16.gmra.mrb[0].mxu0 %v2492
    %v2631 = vpop.f32.mrb[0].mxu0
    %v2632 = vadd.f32 0.0, %v2631
    %v2633 = vpop.f32.mrb[0].mxu0
    %v2634 = vpop.f32.mrb[0].mxu0
    %v2635 = vadd.f32 0.0, %v2634
    %v2636 = vpop.f32.mrb[0].mxu0
    %2637 = vmatprep.mubr.bf16.mxu0 0
    %2638 = vmatmul.mubr.bf16.gmra.mrb[0].mxu0 %v2494
    %v2639 = vpop.f32.mrb[0].mxu0
    %v2640 = vadd.f32 0.0, %v2639
    %v2641 = vpop.f32.mrb[0].mxu0
    %v2642 = vpop.f32.mrb[0].mxu0
    %v2643 = vadd.f32 0.0, %v2642
    %v2644 = vpop.f32.mrb[0].mxu0
    %2645 = vmatprep.mubr.bf16.mxu0 0
    %2646 = vmatmul.mubr.bf16.gmra.mrb[0].mxu0 %v2496
    %v2647 = vpop.f32.mrb[0].mxu0
    %v2648 = vadd.f32 0.0, %v2647
    %v2649 = vpop.f32.mrb[0].mxu0
    %v2650 = vpop.f32.mrb[0].mxu0
    %v2651 = vadd.f32 0.0, %v2650
    %v2652 = vpop.f32.mrb[0].mxu0
    %2653 = vmatprep.mubr.bf16.mxu0 0
    %2654 = vmatmul.mubr.bf16.gmra.mrb[0].mxu0 %v2498
    %v2655 = vpop.f32.mrb[0].mxu0
    %v2656 = vadd.f32 0.0, %v2655
    %v2657 = vpop.f32.mrb[0].mxu0
    %v2658 = vpop.f32.mrb[0].mxu0
    %v2659 = vadd.f32 0.0, %v2658
    %v2660 = vpop.f32.mrb[0].mxu0
    %2661 = vmatprep.mubr.bf16.mxu0 0
    %2662 = vmatmul.mubr.bf16.gmra.mrb[0].mxu0 %v2500
    %v2663 = vpop.f32.mrb[0].mxu0
    %v2664 = vadd.f32 0.0, %v2663
    %v2665 = vpop.f32.mrb[0].mxu0
    %v2666 = vpop.f32.mrb[0].mxu0
    %v2667 = vadd.f32 0.0, %v2666
    %v2668 = vpop.f32.mrb[0].mxu0
    %2669 = vmatprep.mubr.bf16.mxu0 0
    %2670 = vmatmul.mubr.bf16.gmra.mrb[0].mxu0 %v2502
    %v2671 = vpop.f32.mrb[0].mxu0
    %v2672 = vadd.f32 0.0, %v2671
    %v2673 = vpop.f32.mrb[0].mxu0
    %v2674 = vpop.f32.mrb[0].mxu0
    %v2675 = vadd.f32 0.0, %v2674
    %v2676 = vpop.f32.mrb[0].mxu0
    %2677 = vmatprep.mubr.bf16.mxu0 0
    %2678 = vmatmul.mubr.bf16.gmra.mrb[0].mxu0 %v2504
    %v2679 = vpop.f32.mrb[0].mxu0
    %v2680 = vadd.f32 0.0, %v2679
    %v2681 = vpop.f32.mrb[0].mxu0
    %v2682 = vpop.f32.mrb[0].mxu0
    %v2683 = vadd.f32 0.0, %v2682
    %v2684 = vpop.f32.mrb[0].mxu0
    %2685 = vmatprep.mubr.bf16.mxu0 0
    %2686 = vmatmul.mubr.bf16.gmra.mrb[0].mxu0 %v2506
    %v2687 = vpop.f32.mrb[0].mxu0
    %v2688 = vadd.f32 0.0, %v2687
    %v2689 = vpop.f32.mrb[0].mxu0
    %v2690 = vpop.f32.mrb[0].mxu0
    %v2691 = vadd.f32 0.0, %v2690
    %v2692 = vpop.f32.mrb[0].mxu0
    %2693 = vmatprep.mubr.bf16.mxu0 0
    %2694 = vmatmul.mubr.bf16.gmra.mrb[0].mxu0 %v2508
    %v2695 = vpop.f32.mrb[0].mxu0
    %v2696 = vadd.f32 0.0, %v2695
    %v2697 = vpop.f32.mrb[0].mxu0
    %v2698 = vpop.f32.mrb[0].mxu0
    %v2699 = vadd.f32 0.0, %v2698
    %v2700 = vpop.f32.mrb[0].mxu0
    %2701 = vmatprep.mubr.bf16.mxu0 0
    %2702 = vmatmul.mubr.bf16.gmra.mrb[0].mxu0 %v2510
    %v2703 = vpop.f32.mrb[0].mxu0
    %v2704 = vadd.f32 0.0, %v2703
    %v2705 = vpop.f32.mrb[0].mxu0
    %v2706 = vpop.f32.mrb[0].mxu0
    %v2707 = vadd.f32 0.0, %v2706
    %v2708 = vpop.f32.mrb[0].mxu0
    %2709 = vmatprep.mubr.bf16.mxu0 0
    %2710 = vmatmul.mubr.bf16.gmra.mrb[0].mxu0 %v2512
    %v2711 = vpop.f32.mrb[0].mxu0
    %v2712 = vadd.f32 0.0, %v2711
    %v2713 = vpop.f32.mrb[0].mxu0
    %v2714 = vpop.f32.mrb[0].mxu0
    %v2715 = vadd.f32 0.0, %v2714
    %v2716 = vpop.f32.mrb[0].mxu0
    %2717 = vmatprep.mubr.bf16.mxu0 0
    %2718 = vmatmul.mubr.bf16.gmra.mrb[0].mxu0 %v2514
    %v2719 = vpop.f32.mrb[0].mxu0
    %v2720 = vadd.f32 0.0, %v2719
    %v2721 = vpop.f32.mrb[0].mxu0
    %v2722 = vpop.f32.mrb[0].mxu0
    %v2723 = vadd.f32 0.0, %v2722
    %v2724 = vpop.f32.mrb[0].mxu0
    %2725 = vmatprep.mubr.bf16.mxu0 0
    %2726 = vmatmul.mubr.bf16.gmra.mrb[0].mxu0 %v2516
    %v2727 = vpop.f32.mrb[0].mxu0
    %v2728 = vadd.f32 0.0, %v2727
    %v2729 = vpop.f32.mrb[0].mxu0
    %v2730 = vpop.f32.mrb[0].mxu0
    %v2731 = vadd.f32 0.0, %v2730
    %v2732 = vpop.f32.mrb[0].mxu0
    %2733 = vmatprep.mubr.bf16.mxu0 0
    %2734 = vmatmul.mubr.bf16.gmra.mrb[0].mxu0 %v2515
    %v2735 = vpop.f32.mrb[0].mxu0
    %v2736 = vadd.f32 0.0, %v2735
    %v2737 = vpop.f32.mrb[0].mxu0
    %v2738 = vpop.f32.mrb[0].mxu0
    %v2739 = vadd.f32 0.0, %v2738
    %v2740 = vpop.f32.mrb[0].mxu0
    %2741 = vdwg.mxu0
    %v2742 = vadd.f32 %v2178, %v2616
    %v2743 = vadd.f32 %v2179, %v2619
    %v2744 = vadd.f32 %v2180, %v2624
    %v2745 = vadd.f32 %v2181, %v2627
    %v2746 = vadd.f32 %v2182, %v2632
    %v2747 = vadd.f32 %v2183, %v2635
    %v2748 = vadd.f32 %v2184, %v2640
    %v2749 = vadd.f32 %v2185, %v2643
    %v2750 = vadd.f32 %v2186, %v2648
    %v2751 = vadd.f32 %v2187, %v2651
    %v2752 = vadd.f32 %v2188, %v2656
    %v2753 = vadd.f32 %v2189, %v2659
    %v2754 = vadd.f32 %v2190, %v2664
    %v2755 = vadd.f32 %v2191, %v2667
    %v2756 = vadd.f32 %v2192, %v2672
    %v2757 = vadd.f32 %v2193, %v2675
    %v2758 = vadd.f32 %v2194, %v2680
    %v2759 = vadd.f32 %v2195, %v2683
    %v2760 = vadd.f32 %v2196, %v2688
    %v2761 = vadd.f32 %v2197, %v2691
    %v2762 = vadd.f32 %v2198, %v2696
    %v2763 = vadd.f32 %v2199, %v2699
    %v2764 = vadd.f32 %v2200, %v2704
    %v2765 = vadd.f32 %v2201, %v2707
    %v2766 = vadd.f32 %v2202, %v2712
    %v2767 = vadd.f32 %v2203, %v2715
    %v2768 = vadd.f32 %v2204, %v2720
    %v2769 = vadd.f32 %v2205, %v2723
    %v2770 = vadd.f32 %v2206, %v2728
    %v2771 = vadd.f32 %v2207, %v2731
    %v2772 = vadd.f32 %v2208, %v2736
    %v2773 = vadd.f32 %v2209, %v2739
    %s2774 = scalar_lea.vmem %s2, 256
    %v2775 = vld [vmem:[%s2774] sm:$0xf]
    %v2776 = vld [vmem:[%s2774 + $0x4] sm:$0xf]
    %v2777 = vld [vmem:[%s2774 + $0x8] sm:$0xf]
    %v2778 = vld [vmem:[%s2774 + $0xc] sm:$0xf]
    %v2779 = vld [vmem:[%s2774 + $0x10] sm:$0xf]
    %v2780 = vld [vmem:[%s2774 + $0x14] sm:$0xf]
    %v2781 = vld [vmem:[%s2774 + $0x18] sm:$0xf]
    %v2782 = vld [vmem:[%s2774 + $0x1c] sm:$0xf]
    %v2783 = vld [vmem:[%s2774 + $0x20] sm:$0xf]
    %v2784 = vld [vmem:[%s2774 + $0x24] sm:$0xf]
    %v2785 = vld [vmem:[%s2774 + $0x28] sm:$0xf]
    %v2786 = vld [vmem:[%s2774 + $0x2c] sm:$0xf]
    %v2787 = vld [vmem:[%s2774 + $0x30] sm:$0xf]
    %v2788 = vld [vmem:[%s2774 + $0x34] sm:$0xf]
    %v2789 = vld [vmem:[%s2774 + $0x38] sm:$0xf]
    %v2790 = vld [vmem:[%s2774 + $0x3c] sm:$0xf]
    %v2807 = vunpack.c.l.b16 %v2775
    %v2808 = vunpack.c.l.b16 %v2776
    %v2809 = vunpack.c.l.b16 %v2777
    %v2810 = vunpack.c.l.b16 %v2778
    %v2811 = vunpack.c.l.b16 %v2779
    %v2812 = vunpack.c.l.b16 %v2780
    %v2813 = vunpack.c.l.b16 %v2781
    %v2814 = vunpack.c.l.b16 %v2782
    %v2815 = vunpack.c.l.b16 %v2783
    %v2816 = vunpack.c.l.b16 %v2784
    %v2817 = vunpack.c.l.b16 %v2785
    %v2818 = vunpack.c.l.b16 %v2786
    %v2819 = vunpack.c.l.b16 %v2787
    %v2820 = vunpack.c.l.b16 %v2788
    %v2821 = vunpack.c.l.b16 %v2789
    %v2822 = vunpack.c.l.b16 %v2790
    %v2823 = vpack.c.b16 %v2808, %v2807
    %v2824 = vpack.c.b16 %v2810, %v2809
    %v2825 = vpack.c.b16 %v2812, %v2811
    %v2826 = vpack.c.b16 %v2814, %v2813
    %v2827 = vpack.c.b16 %v2816, %v2815
    %v2828 = vpack.c.b16 %v2818, %v2817
    %v2829 = vpack.c.b16 %v2820, %v2819
    %v2830 = vpack.c.b16 %v2822, %v2821
    %2839 = vmatprep.subr.bf16.mxu0 0
    %2840 = vmatpush1.bf16.msra.mxu0 %v2823
    %2841 = vmatprep.subr.bf16.mxu0 0
    %2842 = vmatpush1.bf16.msra.mxu0 %v2824
    %2843 = vmatprep.subr.bf16.mxu0 0
    %2844 = vmatpush1.bf16.msra.mxu0 %v2825
    %2845 = vmatprep.subr.bf16.mxu0 0
    %2846 = vmatpush1.bf16.msra.mxu0 %v2826
    %2847 = vmatprep.subr.bf16.mxu0 0
    %2848 = vmatpush1.bf16.msra.mxu0 %v2827
    %2849 = vmatprep.subr.bf16.mxu0 0
    %2850 = vmatpush1.bf16.msra.mxu0 %v2828
    %2851 = vmatprep.subr.bf16.mxu0 0
    %2852 = vmatpush1.bf16.msra.mxu0 %v2829
    %2853 = vmatprep.subr.bf16.mxu0 0
    %2854 = vmatpush1.bf16.msra.mxu0 %v2830
    %2855 = vmatprep.subr.bf16.mxu0 0
    %2856 = vmatpush1.bf16.msra.mxu0 0
    %2857 = vmatprep.subr.bf16.mxu0 0
    %2858 = vmatpush1.bf16.msra.mxu0 0
    %2859 = vmatprep.subr.bf16.mxu0 0
    %2860 = vmatpush1.bf16.msra.mxu0 0
    %2861 = vmatprep.subr.bf16.mxu0 0
    %2862 = vmatpush1.bf16.msra.mxu0 0
    %2863 = vmatprep.subr.bf16.mxu0 0
    %2864 = vmatpush1.bf16.msra.mxu0 0
    %2865 = vmatprep.subr.bf16.mxu0 0
    %2866 = vmatpush1.bf16.msra.mxu0 0
    %2867 = vmatprep.subr.bf16.mxu0 0
    %2868 = vmatpush1.bf16.msra.mxu0 0
    %2869 = vmatprep.subr.bf16.mxu0 0
    %2870 = vmatpush1.bf16.msra.mxu0 0
    %2871 = vmatprep.mubr.bf16.mxu0 0
    %2872 = vmatmul.mubr.bf16.gmra.mrb[0].mxu0 %v2488
    %v2873 = vpop.f32.mrb[0].mxu0
    %v2874 = vadd.f32 0.0, %v2873
    %v2875 = vpop.f32.mrb[0].mxu0
    %v2876 = vpop.f32.mrb[0].mxu0
    %v2877 = vadd.f32 0.0, %v2876
    %v2878 = vpop.f32.mrb[0].mxu0
    %2879 = vmatprep.mubr.bf16.mxu0 0
    %2880 = vmatmul.mubr.bf16.gmra.mrb[0].mxu0 %v2490
    %v2881 = vpop.f32.mrb[0].mxu0
    %v2882 = vadd.f32 0.0, %v2881
    %v2883 = vpop.f32.mrb[0].mxu0
    %v2884 = vpop.f32.mrb[0].mxu0
    %v2885 = vadd.f32 0.0, %v2884
    %v2886 = vpop.f32.mrb[0].mxu0
    %2887 = vmatprep.mubr.bf16.mxu0 0
    %2888 = vmatmul.mubr.bf16.gmra.mrb[0].mxu0 %v2492
    %v2889 = vpop.f32.mrb[0].mxu0
    %v2890 = vadd.f32 0.0, %v2889
    %v2891 = vpop.f32.mrb[0].mxu0
    %v2892 = vpop.f32.mrb[0].mxu0
    %v2893 = vadd.f32 0.0, %v2892
    %v2894 = vpop.f32.mrb[0].mxu0
    %2895 = vmatprep.mubr.bf16.mxu0 0
    %2896 = vmatmul.mubr.bf16.gmra.mrb[0].mxu0 %v2494
    %v2897 = vpop.f32.mrb[0].mxu0
    %v2898 = vadd.f32 0.0, %v2897
    %v2899 = vpop.f32.mrb[0].mxu0
    %v2900 = vpop.f32.mrb[0].mxu0
    %v2901 = vadd.f32 0.0, %v2900
    %v2902 = vpop.f32.mrb[0].mxu0
    %2903 = vmatprep.mubr.bf16.mxu0 0
    %2904 = vmatmul.mubr.bf16.gmra.mrb[0].mxu0 %v2496
    %v2905 = vpop.f32.mrb[0].mxu0
    %v2906 = vadd.f32 0.0, %v2905
    %v2907 = vpop.f32.mrb[0].mxu0
    %v2908 = vpop.f32.mrb[0].mxu0
    %v2909 = vadd.f32 0.0, %v2908
    %v2910 = vpop.f32.mrb[0].mxu0
    %2911 = vmatprep.mubr.bf16.mxu0 0
    %2912 = vmatmul.mubr.bf16.gmra.mrb[0].mxu0 %v2498
    %v2913 = vpop.f32.mrb[0].mxu0
    %v2914 = vadd.f32 0.0, %v2913
    %v2915 = vpop.f32.mrb[0].mxu0
    %v2916 = vpop.f32.mrb[0].mxu0
    %v2917 = vadd.f32 0.0, %v2916
    %v2918 = vpop.f32.mrb[0].mxu0
    %2919 = vmatprep.mubr.bf16.mxu0 0
    %2920 = vmatmul.mubr.bf16.gmra.mrb[0].mxu0 %v2500
    %v2921 = vpop.f32.mrb[0].mxu0
    %v2922 = vadd.f32 0.0, %v2921
    %v2923 = vpop.f32.mrb[0].mxu0
    %v2924 = vpop.f32.mrb[0].mxu0
    %v2925 = vadd.f32 0.0, %v2924
    %v2926 = vpop.f32.mrb[0].mxu0
    %2927 = vmatprep.mubr.bf16.mxu0 0
    %2928 = vmatmul.mubr.bf16.gmra.mrb[0].mxu0 %v2502
    %v2929 = vpop.f32.mrb[0].mxu0
    %v2930 = vadd.f32 0.0, %v2929
    %v2931 = vpop.f32.mrb[0].mxu0
    %v2932 = vpop.f32.mrb[0].mxu0
    %v2933 = vadd.f32 0.0, %v2932
    %v2934 = vpop.f32.mrb[0].mxu0
    %2935 = vmatprep.mubr.bf16.mxu0 0
    %2936 = vmatmul.mubr.bf16.gmra.mrb[0].mxu0 %v2504
    %v2937 = vpop.f32.mrb[0].mxu0
    %v2938 = vadd.f32 0.0, %v2937
    %v2939 = vpop.f32.mrb[0].mxu0
    %v2940 = vpop.f32.mrb[0].mxu0
    %v2941 = vadd.f32 0.0, %v2940
    %v2942 = vpop.f32.mrb[0].mxu0
    %2943 = vmatprep.mubr.bf16.mxu0 0
    %2944 = vmatmul.mubr.bf16.gmra.mrb[0].mxu0 %v2506
    %v2945 = vpop.f32.mrb[0].mxu0
    %v2946 = vadd.f32 0.0, %v2945
    %v2947 = vpop.f32.mrb[0].mxu0
    %v2948 = vpop.f32.mrb[0].mxu0
    %v2949 = vadd.f32 0.0, %v2948
    %v2950 = vpop.f32.mrb[0].mxu0
    %2951 = vmatprep.mubr.bf16.mxu0 0
    %2952 = vmatmul.mubr.bf16.gmra.mrb[0].mxu0 %v2508
    %v2953 = vpop.f32.mrb[0].mxu0
    %v2954 = vadd.f32 0.0, %v2953
    %v2955 = vpop.f32.mrb[0].mxu0
    %v2956 = vpop.f32.mrb[0].mxu0
    %v2957 = vadd.f32 0.0, %v2956
    %v2958 = vpop.f32.mrb[0].mxu0
    %2959 = vmatprep.mubr.bf16.mxu0 0
    %2960 = vmatmul.mubr.bf16.gmra.mrb[0].mxu0 %v2510
    %v2961 = vpop.f32.mrb[0].mxu0
    %v2962 = vadd.f32 0.0, %v2961
    %v2963 = vpop.f32.mrb[0].mxu0
    %v2964 = vpop.f32.mrb[0].mxu0
    %v2965 = vadd.f32 0.0, %v2964
    %v2966 = vpop.f32.mrb[0].mxu0
    %2967 = vmatprep.mubr.bf16.mxu0 0
    %2968 = vmatmul.mubr.bf16.gmra.mrb[0].mxu0 %v2512
    %v2969 = vpop.f32.mrb[0].mxu0
    %v2970 = vadd.f32 0.0, %v2969
    %v2971 = vpop.f32.mrb[0].mxu0
    %v2972 = vpop.f32.mrb[0].mxu0
    %v2973 = vadd.f32 0.0, %v2972
    %v2974 = vpop.f32.mrb[0].mxu0
    %2975 = vmatprep.mubr.bf16.mxu0 0
    %2976 = vmatmul.mubr.bf16.gmra.mrb[0].mxu0 %v2514
    %v2977 = vpop.f32.mrb[0].mxu0
    %v2978 = vadd.f32 0.0, %v2977
    %v2979 = vpop.f32.mrb[0].mxu0
    %v2980 = vpop.f32.mrb[0].mxu0
    %v2981 = vadd.f32 0.0, %v2980
    %v2982 = vpop.f32.mrb[0].mxu0
    %2983 = vmatprep.mubr.bf16.mxu0 0
    %2984 = vmatmul.mubr.bf16.gmra.mrb[0].mxu0 %v2516
    %v2985 = vpop.f32.mrb[0].mxu0
    %v2986 = vadd.f32 0.0, %v2985
    %v2987 = vpop.f32.mrb[0].mxu0
    %v2988 = vpop.f32.mrb[0].mxu0
    %v2989 = vadd.f32 0.0, %v2988
    %v2990 = vpop.f32.mrb[0].mxu0
    %2991 = vmatprep.mubr.bf16.mxu0 0
    %2992 = vmatmul.mubr.bf16.gmra.mrb[0].mxu0 %v2515
    %v2993 = vpop.f32.mrb[0].mxu0
    %v2994 = vadd.f32 0.0, %v2993
    %v2995 = vpop.f32.mrb[0].mxu0
    %v2996 = vpop.f32.mrb[0].mxu0
    %v2997 = vadd.f32 0.0, %v2996
    %v2998 = vpop.f32.mrb[0].mxu0
    %2999 = vdwg.mxu0
    %v3000 = vadd.f32 %v2436, %v2874
    %v3001 = vadd.f32 %v2437, %v2877
    %v3002 = vadd.f32 %v2438, %v2882
    %v3003 = vadd.f32 %v2439, %v2885
    %v3004 = vadd.f32 %v2440, %v2890
    %v3005 = vadd.f32 %v2441, %v2893
    %v3006 = vadd.f32 %v2442, %v2898
    %v3007 = vadd.f32 %v2443, %v2901
    %v3008 = vadd.f32 %v2444, %v2906
    %v3009 = vadd.f32 %v2445, %v2909
    %v3010 = vadd.f32 %v2446, %v2914
    %v3011 = vadd.f32 %v2447, %v2917
    %v3012 = vadd.f32 %v2448, %v2922
    %v3013 = vadd.f32 %v2449, %v2925
    %v3014 = vadd.f32 %v2450, %v2930
    %v3015 = vadd.f32 %v2451, %v2933
    %v3016 = vadd.f32 %v2452, %v2938
    %v3017 = vadd.f32 %v2453, %v2941
    %v3018 = vadd.f32 %v2454, %v2946
    %v3019 = vadd.f32 %v2455, %v2949
    %v3020 = vadd.f32 %v2456, %v2954
    %v3021 = vadd.f32 %v2457, %v2957
    %v3022 = vadd.f32 %v2458, %v2962
    %v3023 = vadd.f32 %v2459, %v2965
    %v3024 = vadd.f32 %v2460, %v2970
    %v3025 = vadd.f32 %v2461, %v2973
    %v3026 = vadd.f32 %v2462, %v2978
    %v3027 = vadd.f32 %v2463, %v2981
    %v3028 = vadd.f32 %v2464, %v2986
    %v3029 = vadd.f32 %v2465, %v2989
    %v3030 = vadd.f32 %v2466, %v2994
    %v3031 = vadd.f32 %v2467, %v2997
    %v3032 = vmax.f32 %v2742, %v3000
    %v3033 = vmax.f32 %v2743, %v3001
    %v3034 = vmax.f32 %v2744, %v3002
    %v3035 = vmax.f32 %v2745, %v3003
    %v3036 = vmax.f32 %v2746, %v3004
    %v3037 = vmax.f32 %v2747, %v3005
    %v3038 = vmax.f32 %v2748, %v3006
    %v3039 = vmax.f32 %v2749, %v3007
    %v3040 = vmax.f32 %v2750, %v3008
    %v3041 = vmax.f32 %v2751, %v3009
    %v3042 = vmax.f32 %v2752, %v3010
    %v3043 = vmax.f32 %v2753, %v3011
    %v3044 = vmax.f32 %v2754, %v3012
    %v3045 = vmax.f32 %v2755, %v3013
    %v3046 = vmax.f32 %v2756, %v3014
    %v3047 = vmax.f32 %v2757, %v3015
    %v3048 = vmax.f32 %v2758, %v3016
    %v3049 = vmax.f32 %v2759, %v3017
    %v3050 = vmax.f32 %v2760, %v3018
    %v3051 = vmax.f32 %v2761, %v3019
    %v3052 = vmax.f32 %v2762, %v3020
    %v3053 = vmax.f32 %v2763, %v3021
    %v3054 = vmax.f32 %v2764, %v3022
    %v3055 = vmax.f32 %v2765, %v3023
    %v3056 = vmax.f32 %v2766, %v3024
    %v3057 = vmax.f32 %v2767, %v3025
    %v3058 = vmax.f32 %v2768, %v3026
    %v3059 = vmax.f32 %v2769, %v3027
    %v3060 = vmax.f32 %v2770, %v3028
    %v3061 = vmax.f32 %v2771, %v3029
    %v3062 = vmax.f32 %v2772, %v3030
    %v3063 = vmax.f32 %v2773, %v3031
    %v3064 = vpack.c.bf16 %v3033, %v3032
    %v3065 = vpack.c.bf16 %v3035, %v3034
    %v3066 = vpack.c.bf16 %v3037, %v3036
    %v3067 = vpack.c.bf16 %v3039, %v3038
    %v3068 = vpack.c.bf16 %v3041, %v3040
    %v3069 = vpack.c.bf16 %v3043, %v3042
    %v3070 = vpack.c.bf16 %v3045, %v3044
    %v3071 = vpack.c.bf16 %v3047, %v3046
    %v3072 = vpack.c.bf16 %v3049, %v3048
    %v3073 = vpack.c.bf16 %v3051, %v3050
    %v3074 = vpack.c.bf16 %v3053, %v3052
    %v3075 = vpack.c.bf16 %v3055, %v3054
    %v3076 = vpack.c.bf16 %v3057, %v3056
    %v3077 = vpack.c.bf16 %v3059, %v3058
    %v3078 = vpack.c.bf16 %v3061, %v3060
    %v3079 = vpack.c.bf16 %v3063, %v3062
    %v3080 = vld [vmem:[#allocation2] sm:$0xff]
    %v3081 = vld [vmem:[#allocation2 + $0x8] sm:$0xff]
    %v3082 = vld [vmem:[#allocation2 + $0x10] sm:$0xff]
    %v3083 = vld [vmem:[#allocation2 + $0x18] sm:$0xff]
    %v3084 = vld [vmem:[#allocation2 + $0x20] sm:$0xff]
    %v3085 = vld [vmem:[#allocation2 + $0x28] sm:$0xff]
    %v3086 = vld [vmem:[#allocation2 + $0x30] sm:$0xff]
    %v3087 = vld [vmem:[#allocation2 + $0x38] sm:$0xff]
    %v3088 = vld [vmem:[#allocation2 + $0x40] sm:$0xff]
    %v3089 = vld [vmem:[#allocation2 + $0x48] sm:$0xff]
    %v3090 = vld [vmem:[#allocation2 + $0x50] sm:$0xff]
    %v3091 = vld [vmem:[#allocation2 + $0x58] sm:$0xff]
    %v3092 = vld [vmem:[#allocation2 + $0x60] sm:$0xff]
    %v3093 = vld [vmem:[#allocation2 + $0x68] sm:$0xff]
    %v3108 = vunpack.c.l.b16 %v3080
    %v3109 = vunpack.c.h.b16 %v3080
    %v3110 = vunpack.c.l.b16 %v3081
    %v3111 = vunpack.c.h.b16 %v3081
    %v3112 = vunpack.c.l.b16 %v3082
    %v3113 = vunpack.c.h.b16 %v3082
    %v3114 = vunpack.c.l.b16 %v3083
    %v3115 = vunpack.c.h.b16 %v3083
    %v3116 = vunpack.c.l.b16 %v3084
    %v3117 = vunpack.c.h.b16 %v3084
    %v3118 = vunpack.c.l.b16 %v3085
    %v3119 = vunpack.c.h.b16 %v3085
    %v3120 = vunpack.c.l.b16 %v3086
    %v3121 = vunpack.c.h.b16 %v3086
    %v3122 = vunpack.c.l.b16 %v3087
    %v3123 = vunpack.c.h.b16 %v3087
    %v3124 = vunpack.c.l.b16 %v3088
    %v3125 = vunpack.c.h.b16 %v3088
    %v3126 = vunpack.c.l.b16 %v3089
    %v3127 = vunpack.c.h.b16 %v3089
    %v3128 = vunpack.c.l.b16 %v3090
    %v3129 = vunpack.c.h.b16 %v3090
    %v3130 = vunpack.c.l.b16 %v3091
    %v3131 = vunpack.c.h.b16 %v3091
    %v3132 = vunpack.c.l.b16 %v3092
    %v3133 = vunpack.c.h.b16 %v3092
    %v3134 = vunpack.c.l.b16 %v3093
    %v3135 = vunpack.c.h.b16 %v3093
    %v3136 = vpack.c.b16 %v3110, %v3108
    %v3137 = vpack.c.b16 %v3111, %v3109
    %v3138 = vpack.c.b16 %v3114, %v3112
    %v3139 = vpack.c.b16 %v3115, %v3113
    %v3140 = vpack.c.b16 %v3118, %v3116
    %v3141 = vpack.c.b16 %v3119, %v3117
    %v3142 = vpack.c.b16 %v3122, %v3120
    %v3143 = vpack.c.b16 %v3123, %v3121
    %v3144 = vpack.c.b16 %v3126, %v3124
    %v3145 = vpack.c.b16 %v3127, %v3125
    %v3146 = vpack.c.b16 %v3130, %v3128
    %v3147 = vpack.c.b16 %v3131, %v3129
    %v3148 = vpack.c.b16 %v3134, %v3132
    %v3149 = vpack.c.b16 %v3135, %v3133
    %vm3157 = vcmask 1014784
    %v3159 = vsel %vm3157, %v3137, 0
    %v3162 = vsel %vm3157, %v3139, 0
    %v3165 = vsel %vm3157, %v3141, 0
    %v3168 = vsel %vm3157, %v3143, 0
    %v3171 = vsel %vm3157, %v3145, 0
    %v3174 = vsel %vm3157, %v3147, 0
    %v3177 = vsel %vm3157, %v3149, 0
    %vm3179 = vcmask 1045504
    %v3181 = vsel %vm3179, %v3079, 0
    %3183 = vmatprep.subr.bf16.mxu0 0
    %3184 = vmatpush1.bf16.msra.mxu0 %v3064
    %3185 = vmatprep.subr.bf16.mxu0 0
    %3186 = vmatpush1.bf16.msra.mxu0 %v3065
    %3187 = vmatprep.subr.bf16.mxu0 0
    %3188 = vmatpush1.bf16.msra.mxu0 %v3066
    %3189 = vmatprep.subr.bf16.mxu0 0
    %3190 = vmatpush1.bf16.msra.mxu0 %v3067
    %3191 = vmatprep.subr.bf16.mxu0 0
    %3192 = vmatpush1.bf16.msra.mxu0 %v3068
    %3193 = vmatprep.subr.bf16.mxu0 0
    %3194 = vmatpush1.bf16.msra.mxu0 %v3069
    %3195 = vmatprep.subr.bf16.mxu0 0
    %3196 = vmatpush1.bf16.msra.mxu0 %v3070
    %3197 = vmatprep.subr.bf16.mxu0 0
    %3198 = vmatpush1.bf16.msra.mxu0 %v3071
    %3199 = vmatprep.subr.bf16.mxu0 0
    %3200 = vmatpush1.bf16.msra.mxu0 %v3072
    %3201 = vmatprep.subr.bf16.mxu0 0
    %3202 = vmatpush1.bf16.msra.mxu0 %v3073
    %3203 = vmatprep.subr.bf16.mxu0 0
    %3204 = vmatpush1.bf16.msra.mxu0 %v3074
    %3205 = vmatprep.subr.bf16.mxu0 0
    %3206 = vmatpush1.bf16.msra.mxu0 %v3075
    %3207 = vmatprep.subr.bf16.mxu0 0
    %3208 = vmatpush1.bf16.msra.mxu0 %v3076
    %3209 = vmatprep.subr.bf16.mxu0 0
    %3210 = vmatpush1.bf16.msra.mxu0 %v3077
    %3211 = vmatprep.subr.bf16.mxu0 0
    %3212 = vmatpush1.bf16.msra.mxu0 %v3078
    %3213 = vmatprep.subr.bf16.mxu0 0
    %3214 = vmatpush1.bf16.msra.mxu0 %v3181
    %3215 = vmatprep.mubr.bf16.mxu0 %v3159
    %3216 = vmatmul.mubr.bf16.gmra.mrb[0].mxu0 %v3136
    %v3217 = vpop.f32.mrb[0].mxu0
    %v3218 = vadd.f32 0.0, %v3217
    %v3219 = vpop.f32.mrb[0].mxu0
    %v3220 = vpop.f32.mrb[0].mxu0
    %v3221 = vadd.f32 0.0, %v3220
    %v3222 = vpop.f32.mrb[0].mxu0
    %3223 = vmatprep.mubr.bf16.mxu0 %v3162
    %3224 = vmatmul.mubr.bf16.gmra.mrb[0].mxu0 %v3138
    %v3225 = vpop.f32.mrb[0].mxu0
    %v3226 = vadd.f32 0.0, %v3225
    %v3227 = vpop.f32.mrb[0].mxu0
    %v3228 = vpop.f32.mrb[0].mxu0
    %v3229 = vadd.f32 0.0, %v3228
    %v3230 = vpop.f32.mrb[0].mxu0
    %3231 = vmatprep.mubr.bf16.mxu0 %v3165
    %3232 = vmatmul.mubr.bf16.gmra.mrb[0].mxu0 %v3140
    %v3233 = vpop.f32.mrb[0].mxu0
    %v3234 = vadd.f32 0.0, %v3233
    %v3235 = vpop.f32.mrb[0].mxu0
    %v3236 = vpop.f32.mrb[0].mxu0
    %v3237 = vadd.f32 0.0, %v3236
    %v3238 = vpop.f32.mrb[0].mxu0
    %3239 = vmatprep.mubr.bf16.mxu0 %v3168
    %3240 = vmatmul.mubr.bf16.gmra.mrb[0].mxu0 %v3142
    %v3241 = vpop.f32.mrb[0].mxu0
    %v3242 = vadd.f32 0.0, %v3241
    %v3243 = vpop.f32.mrb[0].mxu0
    %v3244 = vpop.f32.mrb[0].mxu0
    %v3245 = vadd.f32 0.0, %v3244
    %v3246 = vpop.f32.mrb[0].mxu0
    %3247 = vmatprep.mubr.bf16.mxu0 %v3171
    %3248 = vmatmul.mubr.bf16.gmra.mrb[0].mxu0 %v3144
    %v3249 = vpop.f32.mrb[0].mxu0
    %v3250 = vadd.f32 0.0, %v3249
    %v3251 = vpop.f32.mrb[0].mxu0
    %v3252 = vpop.f32.mrb[0].mxu0
    %v3253 = vadd.f32 0.0, %v3252
    %v3254 = vpop.f32.mrb[0].mxu0
    %3255 = vmatprep.mubr.bf16.mxu0 %v3174
    %3256 = vmatmul.mubr.bf16.gmra.mrb[0].mxu0 %v3146
    %v3257 = vpop.f32.mrb[0].mxu0
    %v3258 = vadd.f32 0.0, %v3257
    %v3259 = vpop.f32.mrb[0].mxu0
    %v3260 = vpop.f32.mrb[0].mxu0
    %v3261 = vadd.f32 0.0, %v3260
    %v3262 = vpop.f32.mrb[0].mxu0
    %3263 = vmatprep.mubr.bf16.mxu0 %v3177
    %3264 = vmatmul.mubr.bf16.gmra.mrb[0].mxu0 %v3148
    %v3265 = vpop.f32.mrb[0].mxu0
    %v3266 = vadd.f32 0.0, %v3265
    %v3267 = vpop.f32.mrb[0].mxu0
    %v3268 = vpop.f32.mrb[0].mxu0
    %v3269 = vadd.f32 0.0, %v3268
    %v3270 = vpop.f32.mrb[0].mxu0
    %3271 = vdwg.mxu0
    %v3272 = vld [vmem:[#allocation4] sm:$0xff]
    %v3273 = vld [vmem:[#allocation4 + $0x8] sm:$0xff]
    %v3274 = vld [vmem:[#allocation4 + $0x10] sm:$0xff]
    %v3275 = vld [vmem:[#allocation4 + $0x18] sm:$0xff]
    %v3276 = vld [vmem:[#allocation4 + $0x20] sm:$0xff]
    %v3277 = vld [vmem:[#allocation4 + $0x28] sm:$0xff]
    %v3278 = vld [vmem:[#allocation4 + $0x30] sm:$0xff]
    %v3279 = vld [vmem:[#allocation4 + $0x38] sm:$0xff]
    %v3280 = vld [vmem:[#allocation4 + $0x40] sm:$0xff]
    %v3281 = vld [vmem:[#allocation4 + $0x48] sm:$0xff]
    %v3282 = vld [vmem:[#allocation4 + $0x50] sm:$0xff]
    %v3283 = vld [vmem:[#allocation4 + $0x58] sm:$0xff]
    %v3284 = vld [vmem:[#allocation4 + $0x60] sm:$0xff]
    %v3285 = vld [vmem:[#allocation4 + $0x68] sm:$0xff]
    %v3300 = vunpack.c.l.b16 %v3272
    %v3301 = vunpack.c.h.b16 %v3272
    %v3302 = vunpack.c.l.b16 %v3273
    %v3303 = vunpack.c.h.b16 %v3273
    %v3304 = vunpack.c.l.b16 %v3274
    %v3305 = vunpack.c.h.b16 %v3274
    %v3306 = vunpack.c.l.b16 %v3275
    %v3307 = vunpack.c.h.b16 %v3275
    %v3308 = vunpack.c.l.b16 %v3276
    %v3309 = vunpack.c.h.b16 %v3276
    %v3310 = vunpack.c.l.b16 %v3277
    %v3311 = vunpack.c.h.b16 %v3277
    %v3312 = vunpack.c.l.b16 %v3278
    %v3313 = vunpack.c.h.b16 %v3278
    %v3314 = vunpack.c.l.b16 %v3279
    %v3315 = vunpack.c.h.b16 %v3279
    %v3316 = vunpack.c.l.b16 %v3280
    %v3317 = vunpack.c.h.b16 %v3280
    %v3318 = vunpack.c.l.b16 %v3281
    %v3319 = vunpack.c.h.b16 %v3281
    %v3320 = vunpack.c.l.b16 %v3282
    %v3321 = vunpack.c.h.b16 %v3282
    %v3322 = vunpack.c.l.b16 %v3283
    %v3323 = vunpack.c.h.b16 %v3283
    %v3324 = vunpack.c.l.b16 %v3284
    %v3325 = vunpack.c.h.b16 %v3284
    %v3326 = vunpack.c.l.b16 %v3285
    %v3327 = vunpack.c.h.b16 %v3285
    %v3328 = vpack.c.b16 %v3302, %v3300
    %v3329 = vpack.c.b16 %v3303, %v3301
    %v3330 = vpack.c.b16 %v3306, %v3304
    %v3331 = vpack.c.b16 %v3307, %v3305
    %v3332 = vpack.c.b16 %v3310, %v3308
    %v3333 = vpack.c.b16 %v3311, %v3309
    %v3334 = vpack.c.b16 %v3314, %v3312
    %v3335 = vpack.c.b16 %v3315, %v3313
    %v3336 = vpack.c.b16 %v3318, %v3316
    %v3337 = vpack.c.b16 %v3319, %v3317
    %v3338 = vpack.c.b16 %v3322, %v3320
    %v3339 = vpack.c.b16 %v3323, %v3321
    %v3340 = vpack.c.b16 %v3326, %v3324
    %v3341 = vpack.c.b16 %v3327, %v3325
    %v3350 = vsel %vm3157, %v3329, 0
    %v3353 = vsel %vm3157, %v3331, 0
    %v3356 = vsel %vm3157, %v3333, 0
    %v3359 = vsel %vm3157, %v3335, 0
    %v3362 = vsel %vm3157, %v3337, 0
    %v3365 = vsel %vm3157, %v3339, 0
    %v3368 = vsel %vm3157, %v3341, 0
    %3370 = vmatprep.subr.bf16.mxu0 0
    %3371 = vmatpush1.bf16.msra.mxu0 %v3064
    %3372 = vmatprep.subr.bf16.mxu0 0
    %3373 = vmatpush1.bf16.msra.mxu0 %v3065
    %3374 = vmatprep.subr.bf16.mxu0 0
    %3375 = vmatpush1.bf16.msra.mxu0 %v3066
    %3376 = vmatprep.subr.bf16.mxu0 0
    %3377 = vmatpush1.bf16.msra.mxu0 %v3067
    %3378 = vmatprep.subr.bf16.mxu0 0
    %3379 = vmatpush1.bf16.msra.mxu0 %v3068
    %3380 = vmatprep.subr.bf16.mxu0 0
    %3381 = vmatpush1.bf16.msra.mxu0 %v3069
    %3382 = vmatprep.subr.bf16.mxu0 0
    %3383 = vmatpush1.bf16.msra.mxu0 %v3070
    %3384 = vmatprep.subr.bf16.mxu0 0
    %3385 = vmatpush1.bf16.msra.mxu0 %v3071
    %3386 = vmatprep.subr.bf16.mxu0 0
    %3387 = vmatpush1.bf16.msra.mxu0 %v3072
    %3388 = vmatprep.subr.bf16.mxu0 0
    %3389 = vmatpush1.bf16.msra.mxu0 %v3073
    %3390 = vmatprep.subr.bf16.mxu0 0
    %3391 = vmatpush1.bf16.msra.mxu0 %v3074
    %3392 = vmatprep.subr.bf16.mxu0 0
    %3393 = vmatpush1.bf16.msra.mxu0 %v3075
    %3394 = vmatprep.subr.bf16.mxu0 0
    %3395 = vmatpush1.bf16.msra.mxu0 %v3076
    %3396 = vmatprep.subr.bf16.mxu0 0
    %3397 = vmatpush1.bf16.msra.mxu0 %v3077
    %3398 = vmatprep.subr.bf16.mxu0 0
    %3399 = vmatpush1.bf16.msra.mxu0 %v3078
    %3400 = vmatprep.subr.bf16.mxu0 0
    %3401 = vmatpush1.bf16.msra.mxu0 %v3181
    %3402 = vmatprep.mubr.bf16.mxu0 %v3350
    %3403 = vmatmul.mubr.bf16.gmra.mrb[0].mxu0 %v3328
    %v3404 = vpop.f32.mrb[0].mxu0
    %v3405 = vadd.f32 0.0, %v3404
    %v3406 = vpop.f32.mrb[0].mxu0
    %v3407 = vpop.f32.mrb[0].mxu0
    %v3408 = vadd.f32 0.0, %v3407
    %v3409 = vpop.f32.mrb[0].mxu0
    %3410 = vmatprep.mubr.bf16.mxu0 %v3353
    %3411 = vmatmul.mubr.bf16.gmra.mrb[0].mxu0 %v3330
    %v3412 = vpop.f32.mrb[0].mxu0
    %v3413 = vadd.f32 0.0, %v3412
    %v3414 = vpop.f32.mrb[0].mxu0
    %v3415 = vpop.f32.mrb[0].mxu0
    %v3416 = vadd.f32 0.0, %v3415
    %v3417 = vpop.f32.mrb[0].mxu0
    %3418 = vmatprep.mubr.bf16.mxu0 %v3356
    %3419 = vmatmul.mubr.bf16.gmra.mrb[0].mxu0 %v3332
    %v3420 = vpop.f32.mrb[0].mxu0
    %v3421 = vadd.f32 0.0, %v3420
    %v3422 = vpop.f32.mrb[0].mxu0
    %v3423 = vpop.f32.mrb[0].mxu0
    %v3424 = vadd.f32 0.0, %v3423
    %v3425 = vpop.f32.mrb[0].mxu0
    %3426 = vmatprep.mubr.bf16.mxu0 %v3359
    %3427 = vmatmul.mubr.bf16.gmra.mrb[0].mxu0 %v3334
    %v3428 = vpop.f32.mrb[0].mxu0
    %v3429 = vadd.f32 0.0, %v3428
    %v3430 = vpop.f32.mrb[0].mxu0
    %v3431 = vpop.f32.mrb[0].mxu0
    %v3432 = vadd.f32 0.0, %v3431
    %v3433 = vpop.f32.mrb[0].mxu0
    %3434 = vmatprep.mubr.bf16.mxu0 %v3362
    %3435 = vmatmul.mubr.bf16.gmra.mrb[0].mxu0 %v3336
    %v3436 = vpop.f32.mrb[0].mxu0
    %v3437 = vadd.f32 0.0, %v3436
    %v3438 = vpop.f32.mrb[0].mxu0
    %v3439 = vpop.f32.mrb[0].mxu0
    %v3440 = vadd.f32 0.0, %v3439
    %v3441 = vpop.f32.mrb[0].mxu0
    %3442 = vmatprep.mubr.bf16.mxu0 %v3365
    %3443 = vmatmul.mubr.bf16.gmra.mrb[0].mxu0 %v3338
    %v3444 = vpop.f32.mrb[0].mxu0
    %v3445 = vadd.f32 0.0, %v3444
    %v3446 = vpop.f32.mrb[0].mxu0
    %v3447 = vpop.f32.mrb[0].mxu0
    %v3448 = vadd.f32 0.0, %v3447
    %v3449 = vpop.f32.mrb[0].mxu0
    %3450 = vmatprep.mubr.bf16.mxu0 %v3368
    %3451 = vmatmul.mubr.bf16.gmra.mrb[0].mxu0 %v3340
    %v3452 = vpop.f32.mrb[0].mxu0
    %v3453 = vadd.f32 0.0, %v3452
    %v3454 = vpop.f32.mrb[0].mxu0
    %v3455 = vpop.f32.mrb[0].mxu0
    %v3456 = vadd.f32 0.0, %v3455
    %v3457 = vpop.f32.mrb[0].mxu0
    %3458 = vdwg.mxu0
    %v3459 = vmax.f32 %v3218, %v3405
    %v3460 = vmax.f32 %v3221, %v3408
    %v3461 = vmax.f32 %v3226, %v3413
    %v3462 = vmax.f32 %v3229, %v3416
    %v3463 = vmax.f32 %v3234, %v3421
    %v3464 = vmax.f32 %v3237, %v3424
    %v3465 = vmax.f32 %v3242, %v3429
    %v3466 = vmax.f32 %v3245, %v3432
    %v3467 = vmax.f32 %v3250, %v3437
    %v3468 = vmax.f32 %v3253, %v3440
    %v3469 = vmax.f32 %v3258, %v3445
    %v3470 = vmax.f32 %v3261, %v3448
    %v3471 = vmax.f32 %v3266, %v3453
    %v3472 = vmax.f32 %v3269, %v3456
    %v3473 = vld [vmem:[%s5] sm:$0x1]
    %v3475 = vlaneseq
    %v3476 = vshrl.u32 %v3475, 7
    %v3477 = vsub.s32 0, %v3476
    %v3478 = vrot.slane %v3473, %v3477
    %v3480 = vadd.f32 %v3459, %v3478
    %v3481 = vadd.f32 %v3460, %v3478
    %v3482 = vadd.f32 %v3461, %v3478
    %v3483 = vadd.f32 %v3462, %v3478
    %v3484 = vadd.f32 %v3463, %v3478
    %v3485 = vadd.f32 %v3464, %v3478
    %v3486 = vadd.f32 %v3465, %v3478
    %v3487 = vadd.f32 %v3466, %v3478
    %v3488 = vadd.f32 %v3467, %v3478
    %v3489 = vadd.f32 %v3468, %v3478
    %v3490 = vadd.f32 %v3469, %v3478
    %v3491 = vadd.f32 %v3470, %v3478
    %v3492 = vadd.f32 %v3471, %v3478
    %v3493 = vadd.f32 %v3472, %v3478
    %v3494 = vmax.f32 %v3480, 0.0
    %v3495 = vmax.f32 %v3481, 0.0
    %v3496 = vmax.f32 %v3482, 0.0
    %v3497 = vmax.f32 %v3483, 0.0
    %v3498 = vmax.f32 %v3484, 0.0
    %v3499 = vmax.f32 %v3485, 0.0
    %v3500 = vmax.f32 %v3486, 0.0
    %v3501 = vmax.f32 %v3487, 0.0
    %v3502 = vmax.f32 %v3488, 0.0
    %v3503 = vmax.f32 %v3489, 0.0
    %v3504 = vmax.f32 %v3490, 0.0
    %v3505 = vmax.f32 %v3491, 0.0
    %v3506 = vmax.f32 %v3492, 0.0
    %v3507 = vmax.f32 %v3493, 0.0
    %v3508 = vpack.c.bf16 %v3495, %v3494
    %v3509 = vpack.c.bf16 %v3497, %v3496
    %v3510 = vpack.c.bf16 %v3499, %v3498
    %v3511 = vpack.c.bf16 %v3501, %v3500
    %v3512 = vpack.c.bf16 %v3503, %v3502
    %v3513 = vpack.c.bf16 %v3505, %v3504
    %v3514 = vpack.c.bf16 %v3507, %v3506
    %v3515 = vld [vmem:[%s6] sm:$0xf]
    %v3516 = vld [vmem:[%s6 + $0x4] sm:$0xf]
    %v3517 = vld [vmem:[%s6 + $0x8] sm:$0xf]
    %v3518 = vld [vmem:[%s6 + $0xc] sm:$0xf]
    %v3519 = vld [vmem:[%s6 + $0x10] sm:$0xf]
    %v3520 = vld [vmem:[%s6 + $0x14] sm:$0xf]
    %v3521 = vld [vmem:[%s6 + $0x18] sm:$0xf]
    %v3522 = vld [vmem:[%s6 + $0x1c] sm:$0xf]
    %v3523 = vld [vmem:[%s6 + $0x20] sm:$0xf]
    %v3524 = vld [vmem:[%s6 + $0x24] sm:$0xf]
    %v3525 = vld [vmem:[%s6 + $0x28] sm:$0xf]
    %v3526 = vld [vmem:[%s6 + $0x2c] sm:$0xf]
    %v3527 = vld [vmem:[%s6 + $0x30] sm:$0xf]
    %v3528 = vld [vmem:[%s6 + $0x34] sm:$0xf]
    %v3529 = vld [vmem:[%s6 + $0x38] sm:$0xf]
    %v3530 = vld [vmem:[%s6 + $0x3c] sm:$0xf]
    %v3531 = vld [vmem:[#allocation6] sm:$0xf]
    %v3532 = vld [vmem:[#allocation6 + $0x4] sm:$0xf]
    %v3533 = vld [vmem:[#allocation6 + $0x8] sm:$0xf]
    %v3534 = vld [vmem:[#allocation6 + $0xc] sm:$0xf]
    %v3535 = vld [vmem:[#allocation6 + $0x10] sm:$0xf]
    %v3536 = vld [vmem:[#allocation6 + $0x14] sm:$0xf]
    %v3537 = vld [vmem:[#allocation6 + $0x18] sm:$0xf]
    %v3538 = vld [vmem:[#allocation6 + $0x1c] sm:$0xf]
    %v3539 = vld [vmem:[#allocation6 + $0x20] sm:$0xf]
    %v3540 = vld [vmem:[#allocation6 + $0x24] sm:$0xf]
    %v3541 = vld [vmem:[#allocation6 + $0x28] sm:$0xf]
    %v3542 = vld [vmem:[#allocation6 + $0x2c] sm:$0xf]
    %v3543 = vld [vmem:[#allocation6 + $0x30] sm:$0xf]
    %v3544 = vld [vmem:[#allocation6 + $0x34] sm:$0xf]
    %v3545 = vld [vmem:[#allocation6 + $0x38] sm:$0xf]
    %v3546 = vld [vmem:[#allocation6 + $0x3c] sm:$0xf]
    %s3547 = scalar_lea.vmem %s6, 64
    %v3548 = vld [vmem:[%s3547] sm:$0xf]
    %v3549 = vld [vmem:[%s3547 + $0x4] sm:$0xf]
    %v3550 = vld [vmem:[%s3547 + $0x8] sm:$0xf]
    %v3551 = vld [vmem:[%s3547 + $0xc] sm:$0xf]
    %v3552 = vld [vmem:[%s3547 + $0x10] sm:$0xf]
    %v3553 = vld [vmem:[%s3547 + $0x14] sm:$0xf]
    %v3554 = vld [vmem:[%s3547 + $0x18] sm:$0xf]
    %v3555 = vld [vmem:[%s3547 + $0x1c] sm:$0xf]
    %v3556 = vld [vmem:[%s3547 + $0x20] sm:$0xf]
    %v3557 = vld [vmem:[%s3547 + $0x24] sm:$0xf]
    %v3558 = vld [vmem:[%s3547 + $0x28] sm:$0xf]
    %v3559 = vld [vmem:[%s3547 + $0x2c] sm:$0xf]
    %v3560 = vld [vmem:[%s3547 + $0x30] sm:$0xf]
    %v3561 = vld [vmem:[%s3547 + $0x34] sm:$0xf]
    %v3562 = vld [vmem:[%s3547 + $0x38] sm:$0xf]
    %v3563 = vld [vmem:[%s3547 + $0x3c] sm:$0xf]
    %v3565 = vshrl.u32 %v3508, 16
    %v3567 = vshll.u32 %v3508, 16
    %v3569 = vrot.slane %v3567, 1
    %v3570 = vor.u32 %v3565, %v3569
    %v3572 = vshll.u32 %v3509, 16
    %v3574 = vrot.slane %v3572, 1
    %v3575 = vsel %vm295, %v3570, %v3574
    %v3576 = vshrl.u32 %v3509, 16
    %v3578 = vor.u32 %v3576, %v3574
    %v3580 = vshll.u32 %v3510, 16
    %v3582 = vrot.slane %v3580, 1
    %v3583 = vsel %vm295, %v3578, %v3582
    %v3584 = vshrl.u32 %v3510, 16
    %v3586 = vor.u32 %v3584, %v3582
    %v3588 = vshll.u32 %v3511, 16
    %v3590 = vrot.slane %v3588, 1
    %v3591 = vsel %vm295, %v3586, %v3590
    %v3592 = vshrl.u32 %v3511, 16
    %v3594 = vor.u32 %v3592, %v3590
    %v3596 = vshll.u32 %v3512, 16
    %v3598 = vrot.slane %v3596, 1
    %v3599 = vsel %vm295, %v3594, %v3598
    %v3600 = vshrl.u32 %v3512, 16
    %v3602 = vor.u32 %v3600, %v3598
    %v3604 = vshll.u32 %v3513, 16
    %v3606 = vrot.slane %v3604, 1
    %v3607 = vsel %vm295, %v3602, %v3606
    %v3608 = vshrl.u32 %v3513, 16
    %v3610 = vor.u32 %v3608, %v3606
    %v3612 = vshll.u32 %v3514, 16
    %v3614 = vrot.slane %v3612, 1
    %v3615 = vsel %vm295, %v3610, %v3614
    %v3616 = vshrl.u32 %v3514, 16
    %v3618 = vor.u32 %v3616, %v3614
    %v3642 = vunpack.c.l.b16 %v3548
    %v3643 = vunpack.c.l.b16 %v3549
    %v3644 = vunpack.c.l.b16 %v3550
    %v3645 = vunpack.c.l.b16 %v3551
    %v3646 = vunpack.c.l.b16 %v3552
    %v3647 = vunpack.c.l.b16 %v3553
    %v3648 = vunpack.c.l.b16 %v3554
    %v3649 = vunpack.c.l.b16 %v3555
    %v3650 = vunpack.c.l.b16 %v3556
    %v3651 = vunpack.c.l.b16 %v3557
    %v3652 = vunpack.c.l.b16 %v3558
    %v3653 = vunpack.c.l.b16 %v3559
    %v3654 = vunpack.c.l.b16 %v3560
    %v3655 = vunpack.c.l.b16 %v3561
    %v3656 = vunpack.c.l.b16 %v3562
    %v3657 = vunpack.c.l.b16 %v3563
    %v3658 = vpack.c.b16 %v3643, %v3642
    %v3659 = vpack.c.b16 %v3645, %v3644
    %v3660 = vpack.c.b16 %v3647, %v3646
    %v3661 = vpack.c.b16 %v3649, %v3648
    %v3662 = vpack.c.b16 %v3651, %v3650
    %v3663 = vpack.c.b16 %v3653, %v3652
    %v3664 = vpack.c.b16 %v3655, %v3654
    %v3665 = vpack.c.b16 %v3657, %v3656
    %3674 = vmatprep.subr.bf16.mxu0 0
    %3675 = vmatpush1.bf16.msra.mxu0 %v3658
    %3676 = vmatprep.subr.bf16.mxu0 0
    %3677 = vmatpush1.bf16.msra.mxu0 %v3659
    %3678 = vmatprep.subr.bf16.mxu0 0
    %3679 = vmatpush1.bf16.msra.mxu0 %v3660
    %3680 = vmatprep.subr.bf16.mxu0 0
    %3681 = vmatpush1.bf16.msra.mxu0 %v3661
    %3682 = vmatprep.subr.bf16.mxu0 0
    %3683 = vmatpush1.bf16.msra.mxu0 %v3662
    %3684 = vmatprep.subr.bf16.mxu0 0
    %3685 = vmatpush1.bf16.msra.mxu0 %v3663
    %3686 = vmatprep.subr.bf16.mxu0 0
    %3687 = vmatpush1.bf16.msra.mxu0 %v3664
    %3688 = vmatprep.subr.bf16.mxu0 0
    %3689 = vmatpush1.bf16.msra.mxu0 %v3665
    %3690 = vmatprep.subr.bf16.mxu0 0
    %3691 = vmatpush1.bf16.msra.mxu0 0
    %3692 = vmatprep.subr.bf16.mxu0 0
    %3693 = vmatpush1.bf16.msra.mxu0 0
    %3694 = vmatprep.subr.bf16.mxu0 0
    %3695 = vmatpush1.bf16.msra.mxu0 0
    %3696 = vmatprep.subr.bf16.mxu0 0
    %3697 = vmatpush1.bf16.msra.mxu0 0
    %3698 = vmatprep.subr.bf16.mxu0 0
    %3699 = vmatpush1.bf16.msra.mxu0 0
    %3700 = vmatprep.subr.bf16.mxu0 0
    %3701 = vmatpush1.bf16.msra.mxu0 0
    %3702 = vmatprep.subr.bf16.mxu0 0
    %3703 = vmatpush1.bf16.msra.mxu0 0
    %3704 = vmatprep.subr.bf16.mxu0 0
    %3705 = vmatpush1.bf16.msra.mxu0 0
    %3706 = vmatprep.mubr.bf16.mxu0 0
    %3707 = vmatmul.mubr.bf16.gmra.mrb[0].mxu0 %v3575
    %v3708 = vpop.f32.mrb[0].mxu0
    %v3709 = vadd.f32 0.0, %v3708
    %v3710 = vpop.f32.mrb[0].mxu0
    %v3711 = vpop.f32.mrb[0].mxu0
    %v3712 = vadd.f32 0.0, %v3711
    %v3713 = vpop.f32.mrb[0].mxu0
    %3714 = vmatprep.mubr.bf16.mxu0 0
    %3715 = vmatmul.mubr.bf16.gmra.mrb[0].mxu0 %v3583
    %v3716 = vpop.f32.mrb[0].mxu0
    %v3717 = vadd.f32 0.0, %v3716
    %v3718 = vpop.f32.mrb[0].mxu0
    %v3719 = vpop.f32.mrb[0].mxu0
    %v3720 = vadd.f32 0.0, %v3719
    %v3721 = vpop.f32.mrb[0].mxu0
    %3722 = vmatprep.mubr.bf16.mxu0 0
    %3723 = vmatmul.mubr.bf16.gmra.mrb[0].mxu0 %v3591
    %v3724 = vpop.f32.mrb[0].mxu0
    %v3725 = vadd.f32 0.0, %v3724
    %v3726 = vpop.f32.mrb[0].mxu0
    %v3727 = vpop.f32.mrb[0].mxu0
    %v3728 = vadd.f32 0.0, %v3727
    %v3729 = vpop.f32.mrb[0].mxu0
    %3730 = vmatprep.mubr.bf16.mxu0 0
    %3731 = vmatmul.mubr.bf16.gmra.mrb[0].mxu0 %v3599
    %v3732 = vpop.f32.mrb[0].mxu0
    %v3733 = vadd.f32 0.0, %v3732
    %v3734 = vpop.f32.mrb[0].mxu0
    %v3735 = vpop.f32.mrb[0].mxu0
    %v3736 = vadd.f32 0.0, %v3735
    %v3737 = vpop.f32.mrb[0].mxu0
    %3738 = vmatprep.mubr.bf16.mxu0 0
    %3739 = vmatmul.mubr.bf16.gmra.mrb[0].mxu0 %v3607
    %v3740 = vpop.f32.mrb[0].mxu0
    %v3741 = vadd.f32 0.0, %v3740
    %v3742 = vpop.f32.mrb[0].mxu0
    %v3743 = vpop.f32.mrb[0].mxu0
    %v3744 = vadd.f32 0.0, %v3743
    %v3745 = vpop.f32.mrb[0].mxu0
    %3746 = vmatprep.mubr.bf16.mxu0 0
    %3747 = vmatmul.mubr.bf16.gmra.mrb[0].mxu0 %v3615
    %v3748 = vpop.f32.mrb[0].mxu0
    %v3749 = vadd.f32 0.0, %v3748
    %v3750 = vpop.f32.mrb[0].mxu0
    %v3751 = vpop.f32.mrb[0].mxu0
    %v3752 = vadd.f32 0.0, %v3751
    %v3753 = vpop.f32.mrb[0].mxu0
    %3754 = vmatprep.mubr.bf16.mxu0 0
    %3755 = vmatmul.mubr.bf16.gmra.mrb[0].mxu0 %v3618
    %v3756 = vpop.f32.mrb[0].mxu0
    %v3757 = vadd.f32 0.0, %v3756
    %v3758 = vpop.f32.mrb[0].mxu0
    %v3759 = vpop.f32.mrb[0].mxu0
    %v3760 = vadd.f32 0.0, %v3759
    %v3761 = vpop.f32.mrb[0].mxu0
    %3762 = vdwg.mxu0
    %v3779 = vunpack.c.l.b16 %v3515
    %v3780 = vunpack.c.l.b16 %v3516
    %v3781 = vunpack.c.l.b16 %v3517
    %v3782 = vunpack.c.l.b16 %v3518
    %v3783 = vunpack.c.l.b16 %v3519
    %v3784 = vunpack.c.l.b16 %v3520
    %v3785 = vunpack.c.l.b16 %v3521
    %v3786 = vunpack.c.l.b16 %v3522
    %v3787 = vunpack.c.l.b16 %v3523
    %v3788 = vunpack.c.l.b16 %v3524
    %v3789 = vunpack.c.l.b16 %v3525
    %v3790 = vunpack.c.l.b16 %v3526
    %v3791 = vunpack.c.l.b16 %v3527
    %v3792 = vunpack.c.l.b16 %v3528
    %v3793 = vunpack.c.l.b16 %v3529
    %v3794 = vunpack.c.l.b16 %v3530
    %v3795 = vpack.c.b16 %v3780, %v3779
    %v3796 = vpack.c.b16 %v3782, %v3781
    %v3797 = vpack.c.b16 %v3784, %v3783
    %v3798 = vpack.c.b16 %v3786, %v3785
    %v3799 = vpack.c.b16 %v3788, %v3787
    %v3800 = vpack.c.b16 %v3790, %v3789
    %v3801 = vpack.c.b16 %v3792, %v3791
    %v3802 = vpack.c.b16 %v3794, %v3793
    %3811 = vmatprep.subr.bf16.mxu0 0
    %3812 = vmatpush1.bf16.msra.mxu0 %v3795
    %3813 = vmatprep.subr.bf16.mxu0 0
    %3814 = vmatpush1.bf16.msra.mxu0 %v3796
    %3815 = vmatprep.subr.bf16.mxu0 0
    %3816 = vmatpush1.bf16.msra.mxu0 %v3797
    %3817 = vmatprep.subr.bf16.mxu0 0
    %3818 = vmatpush1.bf16.msra.mxu0 %v3798
    %3819 = vmatprep.subr.bf16.mxu0 0
    %3820 = vmatpush1.bf16.msra.mxu0 %v3799
    %3821 = vmatprep.subr.bf16.mxu0 0
    %3822 = vmatpush1.bf16.msra.mxu0 %v3800
    %3823 = vmatprep.subr.bf16.mxu0 0
    %3824 = vmatpush1.bf16.msra.mxu0 %v3801
    %3825 = vmatprep.subr.bf16.mxu0 0
    %3826 = vmatpush1.bf16.msra.mxu0 %v3802
    %3827 = vmatprep.subr.bf16.mxu0 0
    %3828 = vmatpush1.bf16.msra.mxu0 0
    %3829 = vmatprep.subr.bf16.mxu0 0
    %3830 = vmatpush1.bf16.msra.mxu0 0
    %3831 = vmatprep.subr.bf16.mxu0 0
    %3832 = vmatpush1.bf16.msra.mxu0 0
    %3833 = vmatprep.subr.bf16.mxu0 0
    %3834 = vmatpush1.bf16.msra.mxu0 0
    %3835 = vmatprep.subr.bf16.mxu0 0
    %3836 = vmatpush1.bf16.msra.mxu0 0
    %3837 = vmatprep.subr.bf16.mxu0 0
    %3838 = vmatpush1.bf16.msra.mxu0 0
    %3839 = vmatprep.subr.bf16.mxu0 0
    %3840 = vmatpush1.bf16.msra.mxu0 0
    %3841 = vmatprep.subr.bf16.mxu0 0
    %3842 = vmatpush1.bf16.msra.mxu0 0
    %3843 = vmatprep.mubr.bf16.mxu0 0
    %3844 = vmatmul.mubr.bf16.gmra.mrb[0].mxu0 %v3508
    %v3845 = vpop.f32.mrb[0].mxu0
    %v3846 = vadd.f32 %v3709, %v3845
    %v3847 = vpop.f32.mrb[0].mxu0
    %v3848 = vpop.f32.mrb[0].mxu0
    %v3849 = vadd.f32 %v3712, %v3848
    %v3850 = vpop.f32.mrb[0].mxu0
    %3851 = vmatprep.mubr.bf16.mxu0 0
    %3852 = vmatmul.mubr.bf16.gmra.mrb[0].mxu0 %v3509
    %v3853 = vpop.f32.mrb[0].mxu0
    %v3854 = vadd.f32 %v3717, %v3853
    %v3855 = vpop.f32.mrb[0].mxu0
    %v3856 = vpop.f32.mrb[0].mxu0
    %v3857 = vadd.f32 %v3720, %v3856
    %v3858 = vpop.f32.mrb[0].mxu0
    %3859 = vmatprep.mubr.bf16.mxu0 0
    %3860 = vmatmul.mubr.bf16.gmra.mrb[0].mxu0 %v3510
    %v3861 = vpop.f32.mrb[0].mxu0
    %v3862 = vadd.f32 %v3725, %v3861
    %v3863 = vpop.f32.mrb[0].mxu0
    %v3864 = vpop.f32.mrb[0].mxu0
    %v3865 = vadd.f32 %v3728, %v3864
    %v3866 = vpop.f32.mrb[0].mxu0
    %3867 = vmatprep.mubr.bf16.mxu0 0
    %3868 = vmatmul.mubr.bf16.gmra.mrb[0].mxu0 %v3511
    %v3869 = vpop.f32.mrb[0].mxu0
    %v3870 = vadd.f32 %v3733, %v3869
    %v3871 = vpop.f32.mrb[0].mxu0
    %v3872 = vpop.f32.mrb[0].mxu0
    %v3873 = vadd.f32 %v3736, %v3872
    %v3874 = vpop.f32.mrb[0].mxu0
    %3875 = vmatprep.mubr.bf16.mxu0 0
    %3876 = vmatmul.mubr.bf16.gmra.mrb[0].mxu0 %v3512
    %v3877 = vpop.f32.mrb[0].mxu0
    %v3878 = vadd.f32 %v3741, %v3877
    %v3879 = vpop.f32.mrb[0].mxu0
    %v3880 = vpop.f32.mrb[0].mxu0
    %v3881 = vadd.f32 %v3744, %v3880
    %v3882 = vpop.f32.mrb[0].mxu0
    %3883 = vmatprep.mubr.bf16.mxu0 0
    %3884 = vmatmul.mubr.bf16.gmra.mrb[0].mxu0 %v3513
    %v3885 = vpop.f32.mrb[0].mxu0
    %v3886 = vadd.f32 %v3749, %v3885
    %v3887 = vpop.f32.mrb[0].mxu0
    %v3888 = vpop.f32.mrb[0].mxu0
    %v3889 = vadd.f32 %v3752, %v3888
    %v3890 = vpop.f32.mrb[0].mxu0
    %3891 = vmatprep.mubr.bf16.mxu0 0
    %3892 = vmatmul.mubr.bf16.gmra.mrb[0].mxu0 %v3514
    %v3893 = vpop.f32.mrb[0].mxu0
    %v3894 = vadd.f32 %v3757, %v3893
    %v3895 = vpop.f32.mrb[0].mxu0
    %v3896 = vpop.f32.mrb[0].mxu0
    %v3897 = vadd.f32 %v3760, %v3896
    %v3898 = vpop.f32.mrb[0].mxu0
    %3899 = vdwg.mxu0
    %s3900 = scalar_lea.vmem [#allocation6], 64
    %v3901 = vld [vmem:[%s3900] sm:$0xf]
    %v3902 = vld [vmem:[%s3900 + $0x4] sm:$0xf]
    %v3903 = vld [vmem:[%s3900 + $0x8] sm:$0xf]
    %v3904 = vld [vmem:[%s3900 + $0xc] sm:$0xf]
    %v3905 = vld [vmem:[%s3900 + $0x10] sm:$0xf]
    %v3906 = vld [vmem:[%s3900 + $0x14] sm:$0xf]
    %v3907 = vld [vmem:[%s3900 + $0x18] sm:$0xf]
    %v3908 = vld [vmem:[%s3900 + $0x1c] sm:$0xf]
    %v3909 = vld [vmem:[%s3900 + $0x20] sm:$0xf]
    %v3910 = vld [vmem:[%s3900 + $0x24] sm:$0xf]
    %v3911 = vld [vmem:[%s3900 + $0x28] sm:$0xf]
    %v3912 = vld [vmem:[%s3900 + $0x2c] sm:$0xf]
    %v3913 = vld [vmem:[%s3900 + $0x30] sm:$0xf]
    %v3914 = vld [vmem:[%s3900 + $0x34] sm:$0xf]
    %v3915 = vld [vmem:[%s3900 + $0x38] sm:$0xf]
    %v3916 = vld [vmem:[%s3900 + $0x3c] sm:$0xf]
    %v3933 = vunpack.c.l.b16 %v3901
    %v3934 = vunpack.c.l.b16 %v3902
    %v3935 = vunpack.c.l.b16 %v3903
    %v3936 = vunpack.c.l.b16 %v3904
    %v3937 = vunpack.c.l.b16 %v3905
    %v3938 = vunpack.c.l.b16 %v3906
    %v3939 = vunpack.c.l.b16 %v3907
    %v3940 = vunpack.c.l.b16 %v3908
    %v3941 = vunpack.c.l.b16 %v3909
    %v3942 = vunpack.c.l.b16 %v3910
    %v3943 = vunpack.c.l.b16 %v3911
    %v3944 = vunpack.c.l.b16 %v3912
    %v3945 = vunpack.c.l.b16 %v3913
    %v3946 = vunpack.c.l.b16 %v3914
    %v3947 = vunpack.c.l.b16 %v3915
    %v3948 = vunpack.c.l.b16 %v3916
    %v3949 = vpack.c.b16 %v3934, %v3933
    %v3950 = vpack.c.b16 %v3936, %v3935
    %v3951 = vpack.c.b16 %v3938, %v3937
    %v3952 = vpack.c.b16 %v3940, %v3939
    %v3953 = vpack.c.b16 %v3942, %v3941
    %v3954 = vpack.c.b16 %v3944, %v3943
    %v3955 = vpack.c.b16 %v3946, %v3945
    %v3956 = vpack.c.b16 %v3948, %v3947
    %3965 = vmatprep.subr.bf16.mxu0 0
    %3966 = vmatpush1.bf16.msra.mxu0 %v3949
    %3967 = vmatprep.subr.bf16.mxu0 0
    %3968 = vmatpush1.bf16.msra.mxu0 %v3950
    %3969 = vmatprep.subr.bf16.mxu0 0
    %3970 = vmatpush1.bf16.msra.mxu0 %v3951
    %3971 = vmatprep.subr.bf16.mxu0 0
    %3972 = vmatpush1.bf16.msra.mxu0 %v3952
    %3973 = vmatprep.subr.bf16.mxu0 0
    %3974 = vmatpush1.bf16.msra.mxu0 %v3953
    %3975 = vmatprep.subr.bf16.mxu0 0
    %3976 = vmatpush1.bf16.msra.mxu0 %v3954
    %3977 = vmatprep.subr.bf16.mxu0 0
    %3978 = vmatpush1.bf16.msra.mxu0 %v3955
    %3979 = vmatprep.subr.bf16.mxu0 0
    %3980 = vmatpush1.bf16.msra.mxu0 %v3956
    %3981 = vmatprep.subr.bf16.mxu0 0
    %3982 = vmatpush1.bf16.msra.mxu0 0
    %3983 = vmatprep.subr.bf16.mxu0 0
    %3984 = vmatpush1.bf16.msra.mxu0 0
    %3985 = vmatprep.subr.bf16.mxu0 0
    %3986 = vmatpush1.bf16.msra.mxu0 0
    %3987 = vmatprep.subr.bf16.mxu0 0
    %3988 = vmatpush1.bf16.msra.mxu0 0
    %3989 = vmatprep.subr.bf16.mxu0 0
    %3990 = vmatpush1.bf16.msra.mxu0 0
    %3991 = vmatprep.subr.bf16.mxu0 0
    %3992 = vmatpush1.bf16.msra.mxu0 0
    %3993 = vmatprep.subr.bf16.mxu0 0
    %3994 = vmatpush1.bf16.msra.mxu0 0
    %3995 = vmatprep.subr.bf16.mxu0 0
    %3996 = vmatpush1.bf16.msra.mxu0 0
    %3997 = vmatprep.mubr.bf16.mxu0 0
    %3998 = vmatmul.mubr.bf16.gmra.mrb[0].mxu0 %v3575
    %v3999 = vpop.f32.mrb[0].mxu0
    %v4000 = vadd.f32 0.0, %v3999
    %v4001 = vpop.f32.mrb[0].mxu0
    %v4002 = vpop.f32.mrb[0].mxu0
    %v4003 = vadd.f32 0.0, %v4002
    %v4004 = vpop.f32.mrb[0].mxu0
    %4005 = vmatprep.mubr.bf16.mxu0 0
    %4006 = vmatmul.mubr.bf16.gmra.mrb[0].mxu0 %v3583
    %v4007 = vpop.f32.mrb[0].mxu0
    %v4008 = vadd.f32 0.0, %v4007
    %v4009 = vpop.f32.mrb[0].mxu0
    %v4010 = vpop.f32.mrb[0].mxu0
    %v4011 = vadd.f32 0.0, %v4010
    %v4012 = vpop.f32.mrb[0].mxu0
    %4013 = vmatprep.mubr.bf16.mxu0 0
    %4014 = vmatmul.mubr.bf16.gmra.mrb[0].mxu0 %v3591
    %v4015 = vpop.f32.mrb[0].mxu0
    %v4016 = vadd.f32 0.0, %v4015
    %v4017 = vpop.f32.mrb[0].mxu0
    %v4018 = vpop.f32.mrb[0].mxu0
    %v4019 = vadd.f32 0.0, %v4018
    %v4020 = vpop.f32.mrb[0].mxu0
    %4021 = vmatprep.mubr.bf16.mxu0 0
    %4022 = vmatmul.mubr.bf16.gmra.mrb[0].mxu0 %v3599
    %v4023 = vpop.f32.mrb[0].mxu0
    %v4024 = vadd.f32 0.0, %v4023
    %v4025 = vpop.f32.mrb[0].mxu0
    %v4026 = vpop.f32.mrb[0].mxu0
    %v4027 = vadd.f32 0.0, %v4026
    %v4028 = vpop.f32.mrb[0].mxu0
    %4029 = vmatprep.mubr.bf16.mxu0 0
    %4030 = vmatmul.mubr.bf16.gmra.mrb[0].mxu0 %v3607
    %v4031 = vpop.f32.mrb[0].mxu0
    %v4032 = vadd.f32 0.0, %v4031
    %v4033 = vpop.f32.mrb[0].mxu0
    %v4034 = vpop.f32.mrb[0].mxu0
    %v4035 = vadd.f32 0.0, %v4034
    %v4036 = vpop.f32.mrb[0].mxu0
    %4037 = vmatprep.mubr.bf16.mxu0 0
    %4038 = vmatmul.mubr.bf16.gmra.mrb[0].mxu0 %v3615
    %v4039 = vpop.f32.mrb[0].mxu0
    %v4040 = vadd.f32 0.0, %v4039
    %v4041 = vpop.f32.mrb[0].mxu0
    %v4042 = vpop.f32.mrb[0].mxu0
    %v4043 = vadd.f32 0.0, %v4042
    %v4044 = vpop.f32.mrb[0].mxu0
    %4045 = vmatprep.mubr.bf16.mxu0 0
    %4046 = vmatmul.mubr.bf16.gmra.mrb[0].mxu0 %v3618
    %v4047 = vpop.f32.mrb[0].mxu0
    %v4048 = vadd.f32 0.0, %v4047
    %v4049 = vpop.f32.mrb[0].mxu0
    %v4050 = vpop.f32.mrb[0].mxu0
    %v4051 = vadd.f32 0.0, %v4050
    %v4052 = vpop.f32.mrb[0].mxu0
    %4053 = vdwg.mxu0
    %v4070 = vunpack.c.l.b16 %v3531
    %v4071 = vunpack.c.l.b16 %v3532
    %v4072 = vunpack.c.l.b16 %v3533
    %v4073 = vunpack.c.l.b16 %v3534
    %v4074 = vunpack.c.l.b16 %v3535
    %v4075 = vunpack.c.l.b16 %v3536
    %v4076 = vunpack.c.l.b16 %v3537
    %v4077 = vunpack.c.l.b16 %v3538
    %v4078 = vunpack.c.l.b16 %v3539
    %v4079 = vunpack.c.l.b16 %v3540
    %v4080 = vunpack.c.l.b16 %v3541
    %v4081 = vunpack.c.l.b16 %v3542
    %v4082 = vunpack.c.l.b16 %v3543
    %v4083 = vunpack.c.l.b16 %v3544
    %v4084 = vunpack.c.l.b16 %v3545
    %v4085 = vunpack.c.l.b16 %v3546
    %v4086 = vpack.c.b16 %v4071, %v4070
    %v4087 = vpack.c.b16 %v4073, %v4072
    %v4088 = vpack.c.b16 %v4075, %v4074
    %v4089 = vpack.c.b16 %v4077, %v4076
    %v4090 = vpack.c.b16 %v4079, %v4078
    %v4091 = vpack.c.b16 %v4081, %v4080
    %v4092 = vpack.c.b16 %v4083, %v4082
    %v4093 = vpack.c.b16 %v4085, %v4084
    %4102 = vmatprep.subr.bf16.mxu0 0
    %4103 = vmatpush1.bf16.msra.mxu0 %v4086
    %4104 = vmatprep.subr.bf16.mxu0 0
    %4105 = vmatpush1.bf16.msra.mxu0 %v4087
    %4106 = vmatprep.subr.bf16.mxu0 0
    %4107 = vmatpush1.bf16.msra.mxu0 %v4088
    %4108 = vmatprep.subr.bf16.mxu0 0
    %4109 = vmatpush1.bf16.msra.mxu0 %v4089
    %4110 = vmatprep.subr.bf16.mxu0 0
    %4111 = vmatpush1.bf16.msra.mxu0 %v4090
    %4112 = vmatprep.subr.bf16.mxu0 0
    %4113 = vmatpush1.bf16.msra.mxu0 %v4091
    %4114 = vmatprep.subr.bf16.mxu0 0
    %4115 = vmatpush1.bf16.msra.mxu0 %v4092
    %4116 = vmatprep.subr.bf16.mxu0 0
    %4117 = vmatpush1.bf16.msra.mxu0 %v4093
    %4118 = vmatprep.subr.bf16.mxu0 0
    %4119 = vmatpush1.bf16.msra.mxu0 0
    %4120 = vmatprep.subr.bf16.mxu0 0
    %4121 = vmatpush1.bf16.msra.mxu0 0
    %4122 = vmatprep.subr.bf16.mxu0 0
    %4123 = vmatpush1.bf16.msra.mxu0 0
    %4124 = vmatprep.subr.bf16.mxu0 0
    %4125 = vmatpush1.bf16.msra.mxu0 0
    %4126 = vmatprep.subr.bf16.mxu0 0
    %4127 = vmatpush1.bf16.msra.mxu0 0
    %4128 = vmatprep.subr.bf16.mxu0 0
    %4129 = vmatpush1.bf16.msra.mxu0 0
    %4130 = vmatprep.subr.bf16.mxu0 0
    %4131 = vmatpush1.bf16.msra.mxu0 0
    %4132 = vmatprep.subr.bf16.mxu0 0
    %4133 = vmatpush1.bf16.msra.mxu0 0
    %4134 = vmatprep.mubr.bf16.mxu0 0
    %4135 = vmatmul.mubr.bf16.gmra.mrb[0].mxu0 %v3508
    %v4136 = vpop.f32.mrb[0].mxu0
    %v4137 = vadd.f32 %v4000, %v4136
    %v4138 = vpop.f32.mrb[0].mxu0
    %v4139 = vpop.f32.mrb[0].mxu0
    %v4140 = vadd.f32 %v4003, %v4139
    %v4141 = vpop.f32.mrb[0].mxu0
    %4142 = vmatprep.mubr.bf16.mxu0 0
    %4143 = vmatmul.mubr.bf16.gmra.mrb[0].mxu0 %v3509
    %v4144 = vpop.f32.mrb[0].mxu0
    %v4145 = vadd.f32 %v4008, %v4144
    %v4146 = vpop.f32.mrb[0].mxu0
    %v4147 = vpop.f32.mrb[0].mxu0
    %v4148 = vadd.f32 %v4011, %v4147
    %v4149 = vpop.f32.mrb[0].mxu0
    %4150 = vmatprep.mubr.bf16.mxu0 0
    %4151 = vmatmul.mubr.bf16.gmra.mrb[0].mxu0 %v3510
    %v4152 = vpop.f32.mrb[0].mxu0
    %v4153 = vadd.f32 %v4016, %v4152
    %v4154 = vpop.f32.mrb[0].mxu0
    %v4155 = vpop.f32.mrb[0].mxu0
    %v4156 = vadd.f32 %v4019, %v4155
    %v4157 = vpop.f32.mrb[0].mxu0
    %4158 = vmatprep.mubr.bf16.mxu0 0
    %4159 = vmatmul.mubr.bf16.gmra.mrb[0].mxu0 %v3511
    %v4160 = vpop.f32.mrb[0].mxu0
    %v4161 = vadd.f32 %v4024, %v4160
    %v4162 = vpop.f32.mrb[0].mxu0
    %v4163 = vpop.f32.mrb[0].mxu0
    %v4164 = vadd.f32 %v4027, %v4163
    %v4165 = vpop.f32.mrb[0].mxu0
    %4166 = vmatprep.mubr.bf16.mxu0 0
    %4167 = vmatmul.mubr.bf16.gmra.mrb[0].mxu0 %v3512
    %v4168 = vpop.f32.mrb[0].mxu0
    %v4169 = vadd.f32 %v4032, %v4168
    %v4170 = vpop.f32.mrb[0].mxu0
    %v4171 = vpop.f32.mrb[0].mxu0
    %v4172 = vadd.f32 %v4035, %v4171
    %v4173 = vpop.f32.mrb[0].mxu0
    %4174 = vmatprep.mubr.bf16.mxu0 0
    %4175 = vmatmul.mubr.bf16.gmra.mrb[0].mxu0 %v3513
    %v4176 = vpop.f32.mrb[0].mxu0
    %v4177 = vadd.f32 %v4040, %v4176
    %v4178 = vpop.f32.mrb[0].mxu0
    %v4179 = vpop.f32.mrb[0].mxu0
    %v4180 = vadd.f32 %v4043, %v4179
    %v4181 = vpop.f32.mrb[0].mxu0
    %4182 = vmatprep.mubr.bf16.mxu0 0
    %4183 = vmatmul.mubr.bf16.gmra.mrb[0].mxu0 %v3514
    %v4184 = vpop.f32.mrb[0].mxu0
    %v4185 = vadd.f32 %v4048, %v4184
    %v4186 = vpop.f32.mrb[0].mxu0
    %v4187 = vpop.f32.mrb[0].mxu0
    %v4188 = vadd.f32 %v4051, %v4187
    %v4189 = vpop.f32.mrb[0].mxu0
    %4190 = vdwg.mxu0
    %s4191 = scalar_lea.vmem %s6, 128
    %v4192 = vld [vmem:[%s4191] sm:$0xf]
    %v4193 = vld [vmem:[%s4191 + $0x4] sm:$0xf]
    %v4194 = vld [vmem:[%s4191 + $0x8] sm:$0xf]
    %v4195 = vld [vmem:[%s4191 + $0xc] sm:$0xf]
    %v4196 = vld [vmem:[%s4191 + $0x10] sm:$0xf]
    %v4197 = vld [vmem:[%s4191 + $0x14] sm:$0xf]
    %v4198 = vld [vmem:[%s4191 + $0x18] sm:$0xf]
    %v4199 = vld [vmem:[%s4191 + $0x1c] sm:$0xf]
    %v4200 = vld [vmem:[%s4191 + $0x20] sm:$0xf]
    %v4201 = vld [vmem:[%s4191 + $0x24] sm:$0xf]
    %v4202 = vld [vmem:[%s4191 + $0x28] sm:$0xf]
    %v4203 = vld [vmem:[%s4191 + $0x2c] sm:$0xf]
    %v4204 = vld [vmem:[%s4191 + $0x30] sm:$0xf]
    %v4205 = vld [vmem:[%s4191 + $0x34] sm:$0xf]
    %v4206 = vld [vmem:[%s4191 + $0x38] sm:$0xf]
    %v4207 = vld [vmem:[%s4191 + $0x3c] sm:$0xf]
    %v4215 = vrot.slane %v3508, 1
    %v4216 = vrot.slane %v3509, 1
    %v4217 = vsel %vm1325, %v4215, %v4216
    %v4218 = vrot.slane %v3510, 1
    %v4219 = vsel %vm1325, %v4216, %v4218
    %v4220 = vrot.slane %v3511, 1
    %v4221 = vsel %vm1325, %v4218, %v4220
    %v4222 = vrot.slane %v3512, 1
    %v4223 = vsel %vm1325, %v4220, %v4222
    %v4224 = vrot.slane %v3513, 1
    %v4225 = vsel %vm1325, %v4222, %v4224
    %v4226 = vrot.slane %v3514, 1
    %v4227 = vsel %vm1325, %v4224, %v4226
    %v4251 = vunpack.c.l.b16 %v4192
    %v4252 = vunpack.c.l.b16 %v4193
    %v4253 = vunpack.c.l.b16 %v4194
    %v4254 = vunpack.c.l.b16 %v4195
    %v4255 = vunpack.c.l.b16 %v4196
    %v4256 = vunpack.c.l.b16 %v4197
    %v4257 = vunpack.c.l.b16 %v4198
    %v4258 = vunpack.c.l.b16 %v4199
    %v4259 = vunpack.c.l.b16 %v4200
    %v4260 = vunpack.c.l.b16 %v4201
    %v4261 = vunpack.c.l.b16 %v4202
    %v4262 = vunpack.c.l.b16 %v4203
    %v4263 = vunpack.c.l.b16 %v4204
    %v4264 = vunpack.c.l.b16 %v4205
    %v4265 = vunpack.c.l.b16 %v4206
    %v4266 = vunpack.c.l.b16 %v4207
    %v4267 = vpack.c.b16 %v4252, %v4251
    %v4268 = vpack.c.b16 %v4254, %v4253
    %v4269 = vpack.c.b16 %v4256, %v4255
    %v4270 = vpack.c.b16 %v4258, %v4257
    %v4271 = vpack.c.b16 %v4260, %v4259
    %v4272 = vpack.c.b16 %v4262, %v4261
    %v4273 = vpack.c.b16 %v4264, %v4263
    %v4274 = vpack.c.b16 %v4266, %v4265
    %4283 = vmatprep.subr.bf16.mxu0 0
    %4284 = vmatpush1.bf16.msra.mxu0 %v4267
    %4285 = vmatprep.subr.bf16.mxu0 0
    %4286 = vmatpush1.bf16.msra.mxu0 %v4268
    %4287 = vmatprep.subr.bf16.mxu0 0
    %4288 = vmatpush1.bf16.msra.mxu0 %v4269
    %4289 = vmatprep.subr.bf16.mxu0 0
    %4290 = vmatpush1.bf16.msra.mxu0 %v4270
    %4291 = vmatprep.subr.bf16.mxu0 0
    %4292 = vmatpush1.bf16.msra.mxu0 %v4271
    %4293 = vmatprep.subr.bf16.mxu0 0
    %4294 = vmatpush1.bf16.msra.mxu0 %v4272
    %4295 = vmatprep.subr.bf16.mxu0 0
    %4296 = vmatpush1.bf16.msra.mxu0 %v4273
    %4297 = vmatprep.subr.bf16.mxu0 0
    %4298 = vmatpush1.bf16.msra.mxu0 %v4274
    %4299 = vmatprep.subr.bf16.mxu0 0
    %4300 = vmatpush1.bf16.msra.mxu0 0
    %4301 = vmatprep.subr.bf16.mxu0 0
    %4302 = vmatpush1.bf16.msra.mxu0 0
    %4303 = vmatprep.subr.bf16.mxu0 0
    %4304 = vmatpush1.bf16.msra.mxu0 0
    %4305 = vmatprep.subr.bf16.mxu0 0
    %4306 = vmatpush1.bf16.msra.mxu0 0
    %4307 = vmatprep.subr.bf16.mxu0 0
    %4308 = vmatpush1.bf16.msra.mxu0 0
    %4309 = vmatprep.subr.bf16.mxu0 0
    %4310 = vmatpush1.bf16.msra.mxu0 0
    %4311 = vmatprep.subr.bf16.mxu0 0
    %4312 = vmatpush1.bf16.msra.mxu0 0
    %4313 = vmatprep.subr.bf16.mxu0 0
    %4314 = vmatpush1.bf16.msra.mxu0 0
    %4315 = vmatprep.mubr.bf16.mxu0 0
    %4316 = vmatmul.mubr.bf16.gmra.mrb[0].mxu0 %v4217
    %v4317 = vpop.f32.mrb[0].mxu0
    %v4318 = vadd.f32 0.0, %v4317
    %v4319 = vpop.f32.mrb[0].mxu0
    %v4320 = vpop.f32.mrb[0].mxu0
    %v4321 = vadd.f32 0.0, %v4320
    %v4322 = vpop.f32.mrb[0].mxu0
    %4323 = vmatprep.mubr.bf16.mxu0 0
    %4324 = vmatmul.mubr.bf16.gmra.mrb[0].mxu0 %v4219
    %v4325 = vpop.f32.mrb[0].mxu0
    %v4326 = vadd.f32 0.0, %v4325
    %v4327 = vpop.f32.mrb[0].mxu0
    %v4328 = vpop.f32.mrb[0].mxu0
    %v4329 = vadd.f32 0.0, %v4328
    %v4330 = vpop.f32.mrb[0].mxu0
    %4331 = vmatprep.mubr.bf16.mxu0 0
    %4332 = vmatmul.mubr.bf16.gmra.mrb[0].mxu0 %v4221
    %v4333 = vpop.f32.mrb[0].mxu0
    %v4334 = vadd.f32 0.0, %v4333
    %v4335 = vpop.f32.mrb[0].mxu0
    %v4336 = vpop.f32.mrb[0].mxu0
    %v4337 = vadd.f32 0.0, %v4336
    %v4338 = vpop.f32.mrb[0].mxu0
    %4339 = vmatprep.mubr.bf16.mxu0 0
    %4340 = vmatmul.mubr.bf16.gmra.mrb[0].mxu0 %v4223
    %v4341 = vpop.f32.mrb[0].mxu0
    %v4342 = vadd.f32 0.0, %v4341
    %v4343 = vpop.f32.mrb[0].mxu0
    %v4344 = vpop.f32.mrb[0].mxu0
    %v4345 = vadd.f32 0.0, %v4344
    %v4346 = vpop.f32.mrb[0].mxu0
    %4347 = vmatprep.mubr.bf16.mxu0 0
    %4348 = vmatmul.mubr.bf16.gmra.mrb[0].mxu0 %v4225
    %v4349 = vpop.f32.mrb[0].mxu0
    %v4350 = vadd.f32 0.0, %v4349
    %v4351 = vpop.f32.mrb[0].mxu0
    %v4352 = vpop.f32.mrb[0].mxu0
    %v4353 = vadd.f32 0.0, %v4352
    %v4354 = vpop.f32.mrb[0].mxu0
    %4355 = vmatprep.mubr.bf16.mxu0 0
    %4356 = vmatmul.mubr.bf16.gmra.mrb[0].mxu0 %v4227
    %v4357 = vpop.f32.mrb[0].mxu0
    %v4358 = vadd.f32 0.0, %v4357
    %v4359 = vpop.f32.mrb[0].mxu0
    %v4360 = vpop.f32.mrb[0].mxu0
    %v4361 = vadd.f32 0.0, %v4360
    %v4362 = vpop.f32.mrb[0].mxu0
    %4363 = vmatprep.mubr.bf16.mxu0 0
    %4364 = vmatmul.mubr.bf16.gmra.mrb[0].mxu0 %v4226
    %v4365 = vpop.f32.mrb[0].mxu0
    %v4366 = vadd.f32 0.0, %v4365
    %v4367 = vpop.f32.mrb[0].mxu0
    %v4368 = vpop.f32.mrb[0].mxu0
    %v4369 = vadd.f32 0.0, %v4368
    %v4370 = vpop.f32.mrb[0].mxu0
    %4371 = vdwg.mxu0
    %v4372 = vadd.f32 %v3846, %v4318
    %v4373 = vadd.f32 %v3849, %v4321
    %v4374 = vadd.f32 %v3854, %v4326
    %v4375 = vadd.f32 %v3857, %v4329
    %v4376 = vadd.f32 %v3862, %v4334
    %v4377 = vadd.f32 %v3865, %v4337
    %v4378 = vadd.f32 %v3870, %v4342
    %v4379 = vadd.f32 %v3873, %v4345
    %v4380 = vadd.f32 %v3878, %v4350
    %v4381 = vadd.f32 %v3881, %v4353
    %v4382 = vadd.f32 %v3886, %v4358
    %v4383 = vadd.f32 %v3889, %v4361
    %v4384 = vadd.f32 %v3894, %v4366
    %v4385 = vadd.f32 %v3897, %v4369
    %s4386 = scalar_lea.vmem [#allocation6], 128
    %v4387 = vld [vmem:[%s4386] sm:$0xf]
    %v4388 = vld [vmem:[%s4386 + $0x4] sm:$0xf]
    %v4389 = vld [vmem:[%s4386 + $0x8] sm:$0xf]
    %v4390 = vld [vmem:[%s4386 + $0xc] sm:$0xf]
    %v4391 = vld [vmem:[%s4386 + $0x10] sm:$0xf]
    %v4392 = vld [vmem:[%s4386 + $0x14] sm:$0xf]
    %v4393 = vld [vmem:[%s4386 + $0x18] sm:$0xf]
    %v4394 = vld [vmem:[%s4386 + $0x1c] sm:$0xf]
    %v4395 = vld [vmem:[%s4386 + $0x20] sm:$0xf]
    %v4396 = vld [vmem:[%s4386 + $0x24] sm:$0xf]
    %v4397 = vld [vmem:[%s4386 + $0x28] sm:$0xf]
    %v4398 = vld [vmem:[%s4386 + $0x2c] sm:$0xf]
    %v4399 = vld [vmem:[%s4386 + $0x30] sm:$0xf]
    %v4400 = vld [vmem:[%s4386 + $0x34] sm:$0xf]
    %v4401 = vld [vmem:[%s4386 + $0x38] sm:$0xf]
    %v4402 = vld [vmem:[%s4386 + $0x3c] sm:$0xf]
    %v4419 = vunpack.c.l.b16 %v4387
    %v4420 = vunpack.c.l.b16 %v4388
    %v4421 = vunpack.c.l.b16 %v4389
    %v4422 = vunpack.c.l.b16 %v4390
    %v4423 = vunpack.c.l.b16 %v4391
    %v4424 = vunpack.c.l.b16 %v4392
    %v4425 = vunpack.c.l.b16 %v4393
    %v4426 = vunpack.c.l.b16 %v4394
    %v4427 = vunpack.c.l.b16 %v4395
    %v4428 = vunpack.c.l.b16 %v4396
    %v4429 = vunpack.c.l.b16 %v4397
    %v4430 = vunpack.c.l.b16 %v4398
    %v4431 = vunpack.c.l.b16 %v4399
    %v4432 = vunpack.c.l.b16 %v4400
    %v4433 = vunpack.c.l.b16 %v4401
    %v4434 = vunpack.c.l.b16 %v4402
    %v4435 = vpack.c.b16 %v4420, %v4419
    %v4436 = vpack.c.b16 %v4422, %v4421
    %v4437 = vpack.c.b16 %v4424, %v4423
    %v4438 = vpack.c.b16 %v4426, %v4425
    %v4439 = vpack.c.b16 %v4428, %v4427
    %v4440 = vpack.c.b16 %v4430, %v4429
    %v4441 = vpack.c.b16 %v4432, %v4431
    %v4442 = vpack.c.b16 %v4434, %v4433
    %4451 = vmatprep.subr.bf16.mxu0 0
    %4452 = vmatpush1.bf16.msra.mxu0 %v4435
    %4453 = vmatprep.subr.bf16.mxu0 0
    %4454 = vmatpush1.bf16.msra.mxu0 %v4436
    %4455 = vmatprep.subr.bf16.mxu0 0
    %4456 = vmatpush1.bf16.msra.mxu0 %v4437
    %4457 = vmatprep.subr.bf16.mxu0 0
    %4458 = vmatpush1.bf16.msra.mxu0 %v4438
    %4459 = vmatprep.subr.bf16.mxu0 0
    %4460 = vmatpush1.bf16.msra.mxu0 %v4439
    %4461 = vmatprep.subr.bf16.mxu0 0
    %4462 = vmatpush1.bf16.msra.mxu0 %v4440
    %4463 = vmatprep.subr.bf16.mxu0 0
    %4464 = vmatpush1.bf16.msra.mxu0 %v4441
    %4465 = vmatprep.subr.bf16.mxu0 0
    %4466 = vmatpush1.bf16.msra.mxu0 %v4442
    %4467 = vmatprep.subr.bf16.mxu0 0
    %4468 = vmatpush1.bf16.msra.mxu0 0
    %4469 = vmatprep.subr.bf16.mxu0 0
    %4470 = vmatpush1.bf16.msra.mxu0 0
    %4471 = vmatprep.subr.bf16.mxu0 0
    %4472 = vmatpush1.bf16.msra.mxu0 0
    %4473 = vmatprep.subr.bf16.mxu0 0
    %4474 = vmatpush1.bf16.msra.mxu0 0
    %4475 = vmatprep.subr.bf16.mxu0 0
    %4476 = vmatpush1.bf16.msra.mxu0 0
    %4477 = vmatprep.subr.bf16.mxu0 0
    %4478 = vmatpush1.bf16.msra.mxu0 0
    %4479 = vmatprep.subr.bf16.mxu0 0
    %4480 = vmatpush1.bf16.msra.mxu0 0
    %4481 = vmatprep.subr.bf16.mxu0 0
    %4482 = vmatpush1.bf16.msra.mxu0 0
    %4483 = vmatprep.mubr.bf16.mxu0 0
    %4484 = vmatmul.mubr.bf16.gmra.mrb[0].mxu0 %v4217
    %v4485 = vpop.f32.mrb[0].mxu0
    %v4486 = vadd.f32 0.0, %v4485
    %v4487 = vpop.f32.mrb[0].mxu0
    %v4488 = vpop.f32.mrb[0].mxu0
    %v4489 = vadd.f32 0.0, %v4488
    %v4490 = vpop.f32.mrb[0].mxu0
    %4491 = vmatprep.mubr.bf16.mxu0 0
    %4492 = vmatmul.mubr.bf16.gmra.mrb[0].mxu0 %v4219
    %v4493 = vpop.f32.mrb[0].mxu0
    %v4494 = vadd.f32 0.0, %v4493
    %v4495 = vpop.f32.mrb[0].mxu0
    %v4496 = vpop.f32.mrb[0].mxu0
    %v4497 = vadd.f32 0.0, %v4496
    %v4498 = vpop.f32.mrb[0].mxu0
    %4499 = vmatprep.mubr.bf16.mxu0 0
    %4500 = vmatmul.mubr.bf16.gmra.mrb[0].mxu0 %v4221
    %v4501 = vpop.f32.mrb[0].mxu0
    %v4502 = vadd.f32 0.0, %v4501
    %v4503 = vpop.f32.mrb[0].mxu0
    %v4504 = vpop.f32.mrb[0].mxu0
    %v4505 = vadd.f32 0.0, %v4504
    %v4506 = vpop.f32.mrb[0].mxu0
    %4507 = vmatprep.mubr.bf16.mxu0 0
    %4508 = vmatmul.mubr.bf16.gmra.mrb[0].mxu0 %v4223
    %v4509 = vpop.f32.mrb[0].mxu0
    %v4510 = vadd.f32 0.0, %v4509
    %v4511 = vpop.f32.mrb[0].mxu0
    %v4512 = vpop.f32.mrb[0].mxu0
    %v4513 = vadd.f32 0.0, %v4512
    %v4514 = vpop.f32.mrb[0].mxu0
    %4515 = vmatprep.mubr.bf16.mxu0 0
    %4516 = vmatmul.mubr.bf16.gmra.mrb[0].mxu0 %v4225
    %v4517 = vpop.f32.mrb[0].mxu0
    %v4518 = vadd.f32 0.0, %v4517
    %v4519 = vpop.f32.mrb[0].mxu0
    %v4520 = vpop.f32.mrb[0].mxu0
    %v4521 = vadd.f32 0.0, %v4520
    %v4522 = vpop.f32.mrb[0].mxu0
    %4523 = vmatprep.mubr.bf16.mxu0 0
    %4524 = vmatmul.mubr.bf16.gmra.mrb[0].mxu0 %v4227
    %v4525 = vpop.f32.mrb[0].mxu0
    %v4526 = vadd.f32 0.0, %v4525
    %v4527 = vpop.f32.mrb[0].mxu0
    %v4528 = vpop.f32.mrb[0].mxu0
    %v4529 = vadd.f32 0.0, %v4528
    %v4530 = vpop.f32.mrb[0].mxu0
    %4531 = vmatprep.mubr.bf16.mxu0 0
    %4532 = vmatmul.mubr.bf16.gmra.mrb[0].mxu0 %v4226
    %v4533 = vpop.f32.mrb[0].mxu0
    %v4534 = vadd.f32 0.0, %v4533
    %v4535 = vpop.f32.mrb[0].mxu0
    %v4536 = vpop.f32.mrb[0].mxu0
    %v4537 = vadd.f32 0.0, %v4536
    %v4538 = vpop.f32.mrb[0].mxu0
    %4539 = vdwg.mxu0
    %v4540 = vadd.f32 %v4137, %v4486
    %v4541 = vadd.f32 %v4140, %v4489
    %v4542 = vadd.f32 %v4145, %v4494
    %v4543 = vadd.f32 %v4148, %v4497
    %v4544 = vadd.f32 %v4153, %v4502
    %v4545 = vadd.f32 %v4156, %v4505
    %v4546 = vadd.f32 %v4161, %v4510
    %v4547 = vadd.f32 %v4164, %v4513
    %v4548 = vadd.f32 %v4169, %v4518
    %v4549 = vadd.f32 %v4172, %v4521
    %v4550 = vadd.f32 %v4177, %v4526
    %v4551 = vadd.f32 %v4180, %v4529
    %v4552 = vadd.f32 %v4185, %v4534
    %v4553 = vadd.f32 %v4188, %v4537
    %s4554 = scalar_lea.vmem %s6, 192
    %v4555 = vld [vmem:[%s4554] sm:$0xf]
    %v4556 = vld [vmem:[%s4554 + $0x4] sm:$0xf]
    %v4557 = vld [vmem:[%s4554 + $0x8] sm:$0xf]
    %v4558 = vld [vmem:[%s4554 + $0xc] sm:$0xf]
    %v4559 = vld [vmem:[%s4554 + $0x10] sm:$0xf]
    %v4560 = vld [vmem:[%s4554 + $0x14] sm:$0xf]
    %v4561 = vld [vmem:[%s4554 + $0x18] sm:$0xf]
    %v4562 = vld [vmem:[%s4554 + $0x1c] sm:$0xf]
    %v4563 = vld [vmem:[%s4554 + $0x20] sm:$0xf]
    %v4564 = vld [vmem:[%s4554 + $0x24] sm:$0xf]
    %v4565 = vld [vmem:[%s4554 + $0x28] sm:$0xf]
    %v4566 = vld [vmem:[%s4554 + $0x2c] sm:$0xf]
    %v4567 = vld [vmem:[%s4554 + $0x30] sm:$0xf]
    %v4568 = vld [vmem:[%s4554 + $0x34] sm:$0xf]
    %v4569 = vld [vmem:[%s4554 + $0x38] sm:$0xf]
    %v4570 = vld [vmem:[%s4554 + $0x3c] sm:$0xf]
    %v4571 = vrot.slane %v3565, 1
    %v4572 = vrot.slane %v3567, 2
    %v4573 = vor.u32 %v4571, %v4572
    %v4574 = vrot.slane %v3576, 1
    %v4575 = vrot.slane %v3572, 2
    %v4576 = vor.u32 %v4574, %v4575
    %v4577 = vsel %vm1889, %v4573, %v4576
    %v4578 = vrot.slane %v3584, 1
    %v4579 = vrot.slane %v3580, 2
    %v4580 = vor.u32 %v4578, %v4579
    %v4581 = vsel %vm1889, %v4576, %v4580
    %v4582 = vrot.slane %v3592, 1
    %v4583 = vrot.slane %v3588, 2
    %v4584 = vor.u32 %v4582, %v4583
    %v4585 = vsel %vm1889, %v4580, %v4584
    %v4586 = vrot.slane %v3600, 1
    %v4587 = vrot.slane %v3596, 2
    %v4588 = vor.u32 %v4586, %v4587
    %v4589 = vsel %vm1889, %v4584, %v4588
    %v4590 = vrot.slane %v3608, 1
    %v4591 = vrot.slane %v3604, 2
    %v4592 = vor.u32 %v4590, %v4591
    %v4593 = vsel %vm1889, %v4588, %v4592
    %v4594 = vrot.slane %v3616, 1
    %v4595 = vrot.slane %v3612, 2
    %v4596 = vor.u32 %v4594, %v4595
    %v4597 = vsel %vm1889, %v4592, %v4596
    %v4621 = vunpack.c.l.b16 %v4555
    %v4622 = vunpack.c.l.b16 %v4556
    %v4623 = vunpack.c.l.b16 %v4557
    %v4624 = vunpack.c.l.b16 %v4558
    %v4625 = vunpack.c.l.b16 %v4559
    %v4626 = vunpack.c.l.b16 %v4560
    %v4627 = vunpack.c.l.b16 %v4561
    %v4628 = vunpack.c.l.b16 %v4562
    %v4629 = vunpack.c.l.b16 %v4563
    %v4630 = vunpack.c.l.b16 %v4564
    %v4631 = vunpack.c.l.b16 %v4565
    %v4632 = vunpack.c.l.b16 %v4566
    %v4633 = vunpack.c.l.b16 %v4567
    %v4634 = vunpack.c.l.b16 %v4568
    %v4635 = vunpack.c.l.b16 %v4569
    %v4636 = vunpack.c.l.b16 %v4570
    %v4637 = vpack.c.b16 %v4622, %v4621
    %v4638 = vpack.c.b16 %v4624, %v4623
    %v4639 = vpack.c.b16 %v4626, %v4625
    %v4640 = vpack.c.b16 %v4628, %v4627
    %v4641 = vpack.c.b16 %v4630, %v4629
    %v4642 = vpack.c.b16 %v4632, %v4631
    %v4643 = vpack.c.b16 %v4634, %v4633
    %v4644 = vpack.c.b16 %v4636, %v4635
    %4653 = vmatprep.subr.bf16.mxu0 0
    %4654 = vmatpush1.bf16.msra.mxu0 %v4637
    %4655 = vmatprep.subr.bf16.mxu0 0
    %4656 = vmatpush1.bf16.msra.mxu0 %v4638
    %4657 = vmatprep.subr.bf16.mxu0 0
    %4658 = vmatpush1.bf16.msra.mxu0 %v4639
    %4659 = vmatprep.subr.bf16.mxu0 0
    %4660 = vmatpush1.bf16.msra.mxu0 %v4640
    %4661 = vmatprep.subr.bf16.mxu0 0
    %4662 = vmatpush1.bf16.msra.mxu0 %v4641
    %4663 = vmatprep.subr.bf16.mxu0 0
    %4664 = vmatpush1.bf16.msra.mxu0 %v4642
    %4665 = vmatprep.subr.bf16.mxu0 0
    %4666 = vmatpush1.bf16.msra.mxu0 %v4643
    %4667 = vmatprep.subr.bf16.mxu0 0
    %4668 = vmatpush1.bf16.msra.mxu0 %v4644
    %4669 = vmatprep.subr.bf16.mxu0 0
    %4670 = vmatpush1.bf16.msra.mxu0 0
    %4671 = vmatprep.subr.bf16.mxu0 0
    %4672 = vmatpush1.bf16.msra.mxu0 0
    %4673 = vmatprep.subr.bf16.mxu0 0
    %4674 = vmatpush1.bf16.msra.mxu0 0
    %4675 = vmatprep.subr.bf16.mxu0 0
    %4676 = vmatpush1.bf16.msra.mxu0 0
    %4677 = vmatprep.subr.bf16.mxu0 0
    %4678 = vmatpush1.bf16.msra.mxu0 0
    %4679 = vmatprep.subr.bf16.mxu0 0
    %4680 = vmatpush1.bf16.msra.mxu0 0
    %4681 = vmatprep.subr.bf16.mxu0 0
    %4682 = vmatpush1.bf16.msra.mxu0 0
    %4683 = vmatprep.subr.bf16.mxu0 0
    %4684 = vmatpush1.bf16.msra.mxu0 0
    %4685 = vmatprep.mubr.bf16.mxu0 0
    %4686 = vmatmul.mubr.bf16.gmra.mrb[0].mxu0 %v4577
    %v4687 = vpop.f32.mrb[0].mxu0
    %v4688 = vadd.f32 0.0, %v4687
    %v4689 = vpop.f32.mrb[0].mxu0
    %v4690 = vpop.f32.mrb[0].mxu0
    %v4691 = vadd.f32 0.0, %v4690
    %v4692 = vpop.f32.mrb[0].mxu0
    %4693 = vmatprep.mubr.bf16.mxu0 0
    %4694 = vmatmul.mubr.bf16.gmra.mrb[0].mxu0 %v4581
    %v4695 = vpop.f32.mrb[0].mxu0
    %v4696 = vadd.f32 0.0, %v4695
    %v4697 = vpop.f32.mrb[0].mxu0
    %v4698 = vpop.f32.mrb[0].mxu0
    %v4699 = vadd.f32 0.0, %v4698
    %v4700 = vpop.f32.mrb[0].mxu0
    %4701 = vmatprep.mubr.bf16.mxu0 0
    %4702 = vmatmul.mubr.bf16.gmra.mrb[0].mxu0 %v4585
    %v4703 = vpop.f32.mrb[0].mxu0
    %v4704 = vadd.f32 0.0, %v4703
    %v4705 = vpop.f32.mrb[0].mxu0
    %v4706 = vpop.f32.mrb[0].mxu0
    %v4707 = vadd.f32 0.0, %v4706
    %v4708 = vpop.f32.mrb[0].mxu0
    %4709 = vmatprep.mubr.bf16.mxu0 0
    %4710 = vmatmul.mubr.bf16.gmra.mrb[0].mxu0 %v4589
    %v4711 = vpop.f32.mrb[0].mxu0
    %v4712 = vadd.f32 0.0, %v4711
    %v4713 = vpop.f32.mrb[0].mxu0
    %v4714 = vpop.f32.mrb[0].mxu0
    %v4715 = vadd.f32 0.0, %v4714
    %v4716 = vpop.f32.mrb[0].mxu0
    %4717 = vmatprep.mubr.bf16.mxu0 0
    %4718 = vmatmul.mubr.bf16.gmra.mrb[0].mxu0 %v4593
    %v4719 = vpop.f32.mrb[0].mxu0
    %v4720 = vadd.f32 0.0, %v4719
    %v4721 = vpop.f32.mrb[0].mxu0
    %v4722 = vpop.f32.mrb[0].mxu0
    %v4723 = vadd.f32 0.0, %v4722
    %v4724 = vpop.f32.mrb[0].mxu0
    %4725 = vmatprep.mubr.bf16.mxu0 0
    %4726 = vmatmul.mubr.bf16.gmra.mrb[0].mxu0 %v4597
    %v4727 = vpop.f32.mrb[0].mxu0
    %v4728 = vadd.f32 0.0, %v4727
    %v4729 = vpop.f32.mrb[0].mxu0
    %v4730 = vpop.f32.mrb[0].mxu0
    %v4731 = vadd.f32 0.0, %v4730
    %v4732 = vpop.f32.mrb[0].mxu0
    %4733 = vmatprep.mubr.bf16.mxu0 0
    %4734 = vmatmul.mubr.bf16.gmra.mrb[0].mxu0 %v4596
    %v4735 = vpop.f32.mrb[0].mxu0
    %v4736 = vadd.f32 0.0, %v4735
    %v4737 = vpop.f32.mrb[0].mxu0
    %v4738 = vpop.f32.mrb[0].mxu0
    %v4739 = vadd.f32 0.0, %v4738
    %v4740 = vpop.f32.mrb[0].mxu0
    %4741 = vdwg.mxu0
    %v4742 = vadd.f32 %v4372, %v4688
    %v4743 = vadd.f32 %v4373, %v4691
    %v4744 = vadd.f32 %v4374, %v4696
    %v4745 = vadd.f32 %v4375, %v4699
    %v4746 = vadd.f32 %v4376, %v4704
    %v4747 = vadd.f32 %v4377, %v4707
    %v4748 = vadd.f32 %v4378, %v4712
    %v4749 = vadd.f32 %v4379, %v4715
    %v4750 = vadd.f32 %v4380, %v4720
    %v4751 = vadd.f32 %v4381, %v4723
    %v4752 = vadd.f32 %v4382, %v4728
    %v4753 = vadd.f32 %v4383, %v4731
    %v4754 = vadd.f32 %v4384, %v4736
    %v4755 = vadd.f32 %v4385, %v4739
    %s4756 = scalar_lea.vmem [#allocation6], 192
    %v4757 = vld [vmem:[%s4756] sm:$0xf]
    %v4758 = vld [vmem:[%s4756 + $0x4] sm:$0xf]
    %v4759 = vld [vmem:[%s4756 + $0x8] sm:$0xf]
    %v4760 = vld [vmem:[%s4756 + $0xc] sm:$0xf]
    %v4761 = vld [vmem:[%s4756 + $0x10] sm:$0xf]
    %v4762 = vld [vmem:[%s4756 + $0x14] sm:$0xf]
    %v4763 = vld [vmem:[%s4756 + $0x18] sm:$0xf]
    %v4764 = vld [vmem:[%s4756 + $0x1c] sm:$0xf]
    %v4765 = vld [vmem:[%s4756 + $0x20] sm:$0xf]
    %v4766 = vld [vmem:[%s4756 + $0x24] sm:$0xf]
    %v4767 = vld [vmem:[%s4756 + $0x28] sm:$0xf]
    %v4768 = vld [vmem:[%s4756 + $0x2c] sm:$0xf]
    %v4769 = vld [vmem:[%s4756 + $0x30] sm:$0xf]
    %v4770 = vld [vmem:[%s4756 + $0x34] sm:$0xf]
    %v4771 = vld [vmem:[%s4756 + $0x38] sm:$0xf]
    %v4772 = vld [vmem:[%s4756 + $0x3c] sm:$0xf]
    %v4789 = vunpack.c.l.b16 %v4757
    %v4790 = vunpack.c.l.b16 %v4758
    %v4791 = vunpack.c.l.b16 %v4759
    %v4792 = vunpack.c.l.b16 %v4760
    %v4793 = vunpack.c.l.b16 %v4761
    %v4794 = vunpack.c.l.b16 %v4762
    %v4795 = vunpack.c.l.b16 %v4763
    %v4796 = vunpack.c.l.b16 %v4764
    %v4797 = vunpack.c.l.b16 %v4765
    %v4798 = vunpack.c.l.b16 %v4766
    %v4799 = vunpack.c.l.b16 %v4767
    %v4800 = vunpack.c.l.b16 %v4768
    %v4801 = vunpack.c.l.b16 %v4769
    %v4802 = vunpack.c.l.b16 %v4770
    %v4803 = vunpack.c.l.b16 %v4771
    %v4804 = vunpack.c.l.b16 %v4772
    %v4805 = vpack.c.b16 %v4790, %v4789
    %v4806 = vpack.c.b16 %v4792, %v4791
    %v4807 = vpack.c.b16 %v4794, %v4793
    %v4808 = vpack.c.b16 %v4796, %v4795
    %v4809 = vpack.c.b16 %v4798, %v4797
    %v4810 = vpack.c.b16 %v4800, %v4799
    %v4811 = vpack.c.b16 %v4802, %v4801
    %v4812 = vpack.c.b16 %v4804, %v4803
    %4821 = vmatprep.subr.bf16.mxu0 0
    %4822 = vmatpush1.bf16.msra.mxu0 %v4805
    %4823 = vmatprep.subr.bf16.mxu0 0
    %4824 = vmatpush1.bf16.msra.mxu0 %v4806
    %4825 = vmatprep.subr.bf16.mxu0 0
    %4826 = vmatpush1.bf16.msra.mxu0 %v4807
    %4827 = vmatprep.subr.bf16.mxu0 0
    %4828 = vmatpush1.bf16.msra.mxu0 %v4808
    %4829 = vmatprep.subr.bf16.mxu0 0
    %4830 = vmatpush1.bf16.msra.mxu0 %v4809
    %4831 = vmatprep.subr.bf16.mxu0 0
    %4832 = vmatpush1.bf16.msra.mxu0 %v4810
    %4833 = vmatprep.subr.bf16.mxu0 0
    %4834 = vmatpush1.bf16.msra.mxu0 %v4811
    %4835 = vmatprep.subr.bf16.mxu0 0
    %4836 = vmatpush1.bf16.msra.mxu0 %v4812
    %4837 = vmatprep.subr.bf16.mxu0 0
    %4838 = vmatpush1.bf16.msra.mxu0 0
    %4839 = vmatprep.subr.bf16.mxu0 0
    %4840 = vmatpush1.bf16.msra.mxu0 0
    %4841 = vmatprep.subr.bf16.mxu0 0
    %4842 = vmatpush1.bf16.msra.mxu0 0
    %4843 = vmatprep.subr.bf16.mxu0 0
    %4844 = vmatpush1.bf16.msra.mxu0 0
    %4845 = vmatprep.subr.bf16.mxu0 0
    %4846 = vmatpush1.bf16.msra.mxu0 0
    %4847 = vmatprep.subr.bf16.mxu0 0
    %4848 = vmatpush1.bf16.msra.mxu0 0
    %4849 = vmatprep.subr.bf16.mxu0 0
    %4850 = vmatpush1.bf16.msra.mxu0 0
    %4851 = vmatprep.subr.bf16.mxu0 0
    %4852 = vmatpush1.bf16.msra.mxu0 0
    %4853 = vmatprep.mubr.bf16.mxu0 0
    %4854 = vmatmul.mubr.bf16.gmra.mrb[0].mxu0 %v4577
    %v4855 = vpop.f32.mrb[0].mxu0
    %v4856 = vadd.f32 0.0, %v4855
    %v4857 = vpop.f32.mrb[0].mxu0
    %v4858 = vpop.f32.mrb[0].mxu0
    %v4859 = vadd.f32 0.0, %v4858
    %v4860 = vpop.f32.mrb[0].mxu0
    %4861 = vmatprep.mubr.bf16.mxu0 0
    %4862 = vmatmul.mubr.bf16.gmra.mrb[0].mxu0 %v4581
    %v4863 = vpop.f32.mrb[0].mxu0
    %v4864 = vadd.f32 0.0, %v4863
    %v4865 = vpop.f32.mrb[0].mxu0
    %v4866 = vpop.f32.mrb[0].mxu0
    %v4867 = vadd.f32 0.0, %v4866
    %v4868 = vpop.f32.mrb[0].mxu0
    %4869 = vmatprep.mubr.bf16.mxu0 0
    %4870 = vmatmul.mubr.bf16.gmra.mrb[0].mxu0 %v4585
    %v4871 = vpop.f32.mrb[0].mxu0
    %v4872 = vadd.f32 0.0, %v4871
    %v4873 = vpop.f32.mrb[0].mxu0
    %v4874 = vpop.f32.mrb[0].mxu0
    %v4875 = vadd.f32 0.0, %v4874
    %v4876 = vpop.f32.mrb[0].mxu0
    %4877 = vmatprep.mubr.bf16.mxu0 0
    %4878 = vmatmul.mubr.bf16.gmra.mrb[0].mxu0 %v4589
    %v4879 = vpop.f32.mrb[0].mxu0
    %v4880 = vadd.f32 0.0, %v4879
    %v4881 = vpop.f32.mrb[0].mxu0
    %v4882 = vpop.f32.mrb[0].mxu0
    %v4883 = vadd.f32 0.0, %v4882
    %v4884 = vpop.f32.mrb[0].mxu0
    %4885 = vmatprep.mubr.bf16.mxu0 0
    %4886 = vmatmul.mubr.bf16.gmra.mrb[0].mxu0 %v4593
    %v4887 = vpop.f32.mrb[0].mxu0
    %v4888 = vadd.f32 0.0, %v4887
    %v4889 = vpop.f32.mrb[0].mxu0
    %v4890 = vpop.f32.mrb[0].mxu0
    %v4891 = vadd.f32 0.0, %v4890
    %v4892 = vpop.f32.mrb[0].mxu0
    %4893 = vmatprep.mubr.bf16.mxu0 0
    %4894 = vmatmul.mubr.bf16.gmra.mrb[0].mxu0 %v4597
    %v4895 = vpop.f32.mrb[0].mxu0
    %v4896 = vadd.f32 0.0, %v4895
    %v4897 = vpop.f32.mrb[0].mxu0
    %v4898 = vpop.f32.mrb[0].mxu0
    %v4899 = vadd.f32 0.0, %v4898
    %v4900 = vpop.f32.mrb[0].mxu0
    %4901 = vmatprep.mubr.bf16.mxu0 0
    %4902 = vmatmul.mubr.bf16.gmra.mrb[0].mxu0 %v4596
    %v4903 = vpop.f32.mrb[0].mxu0
    %v4904 = vadd.f32 0.0, %v4903
    %v4905 = vpop.f32.mrb[0].mxu0
    %v4906 = vpop.f32.mrb[0].mxu0
    %v4907 = vadd.f32 0.0, %v4906
    %v4908 = vpop.f32.mrb[0].mxu0
    %4909 = vdwg.mxu0
    %v4910 = vadd.f32 %v4540, %v4856
    %v4911 = vadd.f32 %v4541, %v4859
    %v4912 = vadd.f32 %v4542, %v4864
    %v4913 = vadd.f32 %v4543, %v4867
    %v4914 = vadd.f32 %v4544, %v4872
    %v4915 = vadd.f32 %v4545, %v4875
    %v4916 = vadd.f32 %v4546, %v4880
    %v4917 = vadd.f32 %v4547, %v4883
    %v4918 = vadd.f32 %v4548, %v4888
    %v4919 = vadd.f32 %v4549, %v4891
    %v4920 = vadd.f32 %v4550, %v4896
    %v4921 = vadd.f32 %v4551, %v4899
    %v4922 = vadd.f32 %v4552, %v4904
    %v4923 = vadd.f32 %v4553, %v4907
    %s4924 = scalar_lea.vmem %s6, 256
    %v4925 = vld [vmem:[%s4924] sm:$0xf]
    %v4926 = vld [vmem:[%s4924 + $0x4] sm:$0xf]
    %v4927 = vld [vmem:[%s4924 + $0x8] sm:$0xf]
    %v4928 = vld [vmem:[%s4924 + $0xc] sm:$0xf]
    %v4929 = vld [vmem:[%s4924 + $0x10] sm:$0xf]
    %v4930 = vld [vmem:[%s4924 + $0x14] sm:$0xf]
    %v4931 = vld [vmem:[%s4924 + $0x18] sm:$0xf]
    %v4932 = vld [vmem:[%s4924 + $0x1c] sm:$0xf]
    %v4933 = vld [vmem:[%s4924 + $0x20] sm:$0xf]
    %v4934 = vld [vmem:[%s4924 + $0x24] sm:$0xf]
    %v4935 = vld [vmem:[%s4924 + $0x28] sm:$0xf]
    %v4936 = vld [vmem:[%s4924 + $0x2c] sm:$0xf]
    %v4937 = vld [vmem:[%s4924 + $0x30] sm:$0xf]
    %v4938 = vld [vmem:[%s4924 + $0x34] sm:$0xf]
    %v4939 = vld [vmem:[%s4924 + $0x38] sm:$0xf]
    %v4940 = vld [vmem:[%s4924 + $0x3c] sm:$0xf]
    %v4941 = vrot.slane %v3508, 2
    %v4942 = vrot.slane %v3509, 2
    %v4943 = vsel %vm2485, %v4941, %v4942
    %v4944 = vrot.slane %v3510, 2
    %v4945 = vsel %vm2485, %v4942, %v4944
    %v4946 = vrot.slane %v3511, 2
    %v4947 = vsel %vm2485, %v4944, %v4946
    %v4948 = vrot.slane %v3512, 2
    %v4949 = vsel %vm2485, %v4946, %v4948
    %v4950 = vrot.slane %v3513, 2
    %v4951 = vsel %vm2485, %v4948, %v4950
    %v4952 = vrot.slane %v3514, 2
    %v4953 = vsel %vm2485, %v4950, %v4952
    %v4977 = vunpack.c.l.b16 %v4925
    %v4978 = vunpack.c.l.b16 %v4926
    %v4979 = vunpack.c.l.b16 %v4927
    %v4980 = vunpack.c.l.b16 %v4928
    %v4981 = vunpack.c.l.b16 %v4929
    %v4982 = vunpack.c.l.b16 %v4930
    %v4983 = vunpack.c.l.b16 %v4931
    %v4984 = vunpack.c.l.b16 %v4932
    %v4985 = vunpack.c.l.b16 %v4933
    %v4986 = vunpack.c.l.b16 %v4934
    %v4987 = vunpack.c.l.b16 %v4935
    %v4988 = vunpack.c.l.b16 %v4936
    %v4989 = vunpack.c.l.b16 %v4937
    %v4990 = vunpack.c.l.b16 %v4938
    %v4991 = vunpack.c.l.b16 %v4939
    %v4992 = vunpack.c.l.b16 %v4940
    %v4993 = vpack.c.b16 %v4978, %v4977
    %v4994 = vpack.c.b16 %v4980, %v4979
    %v4995 = vpack.c.b16 %v4982, %v4981
    %v4996 = vpack.c.b16 %v4984, %v4983
    %v4997 = vpack.c.b16 %v4986, %v4985
    %v4998 = vpack.c.b16 %v4988, %v4987
    %v4999 = vpack.c.b16 %v4990, %v4989
    %v5000 = vpack.c.b16 %v4992, %v4991
    %5009 = vmatprep.subr.bf16.mxu0 0
    %5010 = vmatpush1.bf16.msra.mxu0 %v4993
    %5011 = vmatprep.subr.bf16.mxu0 0
    %5012 = vmatpush1.bf16.msra.mxu0 %v4994
    %5013 = vmatprep.subr.bf16.mxu0 0
    %5014 = vmatpush1.bf16.msra.mxu0 %v4995
    %5015 = vmatprep.subr.bf16.mxu0 0
    %5016 = vmatpush1.bf16.msra.mxu0 %v4996
    %5017 = vmatprep.subr.bf16.mxu0 0
    %5018 = vmatpush1.bf16.msra.mxu0 %v4997
    %5019 = vmatprep.subr.bf16.mxu0 0
    %5020 = vmatpush1.bf16.msra.mxu0 %v4998
    %5021 = vmatprep.subr.bf16.mxu0 0
    %5022 = vmatpush1.bf16.msra.mxu0 %v4999
    %5023 = vmatprep.subr.bf16.mxu0 0
    %5024 = vmatpush1.bf16.msra.mxu0 %v5000
    %5025 = vmatprep.subr.bf16.mxu0 0
    %5026 = vmatpush1.bf16.msra.mxu0 0
    %5027 = vmatprep.subr.bf16.mxu0 0
    %5028 = vmatpush1.bf16.msra.mxu0 0
    %5029 = vmatprep.subr.bf16.mxu0 0
    %5030 = vmatpush1.bf16.msra.mxu0 0
    %5031 = vmatprep.subr.bf16.mxu0 0
    %5032 = vmatpush1.bf16.msra.mxu0 0
    %5033 = vmatprep.subr.bf16.mxu0 0
    %5034 = vmatpush1.bf16.msra.mxu0 0
    %5035 = vmatprep.subr.bf16.mxu0 0
    %5036 = vmatpush1.bf16.msra.mxu0 0
    %5037 = vmatprep.subr.bf16.mxu0 0
    %5038 = vmatpush1.bf16.msra.mxu0 0
    %5039 = vmatprep.subr.bf16.mxu0 0
    %5040 = vmatpush1.bf16.msra.mxu0 0
    %5041 = vmatprep.mubr.bf16.mxu0 0
    %5042 = vmatmul.mubr.bf16.gmra.mrb[0].mxu0 %v4943
    %v5043 = vpop.f32.mrb[0].mxu0
    %v5044 = vadd.f32 0.0, %v5043
    %v5045 = vpop.f32.mrb[0].mxu0
    %v5046 = vpop.f32.mrb[0].mxu0
    %v5047 = vadd.f32 0.0, %v5046
    %v5048 = vpop.f32.mrb[0].mxu0
    %5049 = vmatprep.mubr.bf16.mxu0 0
    %5050 = vmatmul.mubr.bf16.gmra.mrb[0].mxu0 %v4945
    %v5051 = vpop.f32.mrb[0].mxu0
    %v5052 = vadd.f32 0.0, %v5051
    %v5053 = vpop.f32.mrb[0].mxu0
    %v5054 = vpop.f32.mrb[0].mxu0
    %v5055 = vadd.f32 0.0, %v5054
    %v5056 = vpop.f32.mrb[0].mxu0
    %5057 = vmatprep.mubr.bf16.mxu0 0
    %5058 = vmatmul.mubr.bf16.gmra.mrb[0].mxu0 %v4947
    %v5059 = vpop.f32.mrb[0].mxu0
    %v5060 = vadd.f32 0.0, %v5059
    %v5061 = vpop.f32.mrb[0].mxu0
    %v5062 = vpop.f32.mrb[0].mxu0
    %v5063 = vadd.f32 0.0, %v5062
    %v5064 = vpop.f32.mrb[0].mxu0
    %5065 = vmatprep.mubr.bf16.mxu0 0
    %5066 = vmatmul.mubr.bf16.gmra.mrb[0].mxu0 %v4949
    %v5067 = vpop.f32.mrb[0].mxu0
    %v5068 = vadd.f32 0.0, %v5067
    %v5069 = vpop.f32.mrb[0].mxu0
    %v5070 = vpop.f32.mrb[0].mxu0
    %v5071 = vadd.f32 0.0, %v5070
    %v5072 = vpop.f32.mrb[0].mxu0
    %5073 = vmatprep.mubr.bf16.mxu0 0
    %5074 = vmatmul.mubr.bf16.gmra.mrb[0].mxu0 %v4951
    %v5075 = vpop.f32.mrb[0].mxu0
    %v5076 = vadd.f32 0.0, %v5075
    %v5077 = vpop.f32.mrb[0].mxu0
    %v5078 = vpop.f32.mrb[0].mxu0
    %v5079 = vadd.f32 0.0, %v5078
    %v5080 = vpop.f32.mrb[0].mxu0
    %5081 = vmatprep.mubr.bf16.mxu0 0
    %5082 = vmatmul.mubr.bf16.gmra.mrb[0].mxu0 %v4953
    %v5083 = vpop.f32.mrb[0].mxu0
    %v5084 = vadd.f32 0.0, %v5083
    %v5085 = vpop.f32.mrb[0].mxu0
    %v5086 = vpop.f32.mrb[0].mxu0
    %v5087 = vadd.f32 0.0, %v5086
    %v5088 = vpop.f32.mrb[0].mxu0
    %5089 = vmatprep.mubr.bf16.mxu0 0
    %5090 = vmatmul.mubr.bf16.gmra.mrb[0].mxu0 %v4952
    %v5091 = vpop.f32.mrb[0].mxu0
    %v5092 = vadd.f32 0.0, %v5091
    %v5093 = vpop.f32.mrb[0].mxu0
    %v5094 = vpop.f32.mrb[0].mxu0
    %v5095 = vadd.f32 0.0, %v5094
    %v5096 = vpop.f32.mrb[0].mxu0
    %5097 = vdwg.mxu0
    %v5098 = vadd.f32 %v4742, %v5044
    %v5099 = vadd.f32 %v4743, %v5047
    %v5100 = vadd.f32 %v4744, %v5052
    %v5101 = vadd.f32 %v4745, %v5055
    %v5102 = vadd.f32 %v4746, %v5060
    %v5103 = vadd.f32 %v4747, %v5063
    %v5104 = vadd.f32 %v4748, %v5068
    %v5105 = vadd.f32 %v4749, %v5071
    %v5106 = vadd.f32 %v4750, %v5076
    %v5107 = vadd.f32 %v4751, %v5079
    %v5108 = vadd.f32 %v4752, %v5084
    %v5109 = vadd.f32 %v4753, %v5087
    %v5110 = vadd.f32 %v4754, %v5092
    %v5111 = vadd.f32 %v4755, %v5095
    %s5112 = scalar_lea.vmem [#allocation6], 256
    %v5113 = vld [vmem:[%s5112] sm:$0xf]
    %v5114 = vld [vmem:[%s5112 + $0x4] sm:$0xf]
    %v5115 = vld [vmem:[%s5112 + $0x8] sm:$0xf]
    %v5116 = vld [vmem:[%s5112 + $0xc] sm:$0xf]
    %v5117 = vld [vmem:[%s5112 + $0x10] sm:$0xf]
    %v5118 = vld [vmem:[%s5112 + $0x14] sm:$0xf]
    %v5119 = vld [vmem:[%s5112 + $0x18] sm:$0xf]
    %v5120 = vld [vmem:[%s5112 + $0x1c] sm:$0xf]
    %v5121 = vld [vmem:[%s5112 + $0x20] sm:$0xf]
    %v5122 = vld [vmem:[%s5112 + $0x24] sm:$0xf]
    %v5123 = vld [vmem:[%s5112 + $0x28] sm:$0xf]
    %v5124 = vld [vmem:[%s5112 + $0x2c] sm:$0xf]
    %v5125 = vld [vmem:[%s5112 + $0x30] sm:$0xf]
    %v5126 = vld [vmem:[%s5112 + $0x34] sm:$0xf]
    %v5127 = vld [vmem:[%s5112 + $0x38] sm:$0xf]
    %v5128 = vld [vmem:[%s5112 + $0x3c] sm:$0xf]
    %v5145 = vunpack.c.l.b16 %v5113
    %v5146 = vunpack.c.l.b16 %v5114
    %v5147 = vunpack.c.l.b16 %v5115
    %v5148 = vunpack.c.l.b16 %v5116
    %v5149 = vunpack.c.l.b16 %v5117
    %v5150 = vunpack.c.l.b16 %v5118
    %v5151 = vunpack.c.l.b16 %v5119
    %v5152 = vunpack.c.l.b16 %v5120
    %v5153 = vunpack.c.l.b16 %v5121
    %v5154 = vunpack.c.l.b16 %v5122
    %v5155 = vunpack.c.l.b16 %v5123
    %v5156 = vunpack.c.l.b16 %v5124
    %v5157 = vunpack.c.l.b16 %v5125
    %v5158 = vunpack.c.l.b16 %v5126
    %v5159 = vunpack.c.l.b16 %v5127
    %v5160 = vunpack.c.l.b16 %v5128
    %v5161 = vpack.c.b16 %v5146, %v5145
    %v5162 = vpack.c.b16 %v5148, %v5147
    %v5163 = vpack.c.b16 %v5150, %v5149
    %v5164 = vpack.c.b16 %v5152, %v5151
    %v5165 = vpack.c.b16 %v5154, %v5153
    %v5166 = vpack.c.b16 %v5156, %v5155
    %v5167 = vpack.c.b16 %v5158, %v5157
    %v5168 = vpack.c.b16 %v5160, %v5159
    %5177 = vmatprep.subr.bf16.mxu0 0
    %5178 = vmatpush1.bf16.msra.mxu0 %v5161
    %5179 = vmatprep.subr.bf16.mxu0 0
    %5180 = vmatpush1.bf16.msra.mxu0 %v5162
    %5181 = vmatprep.subr.bf16.mxu0 0
    %5182 = vmatpush1.bf16.msra.mxu0 %v5163
    %5183 = vmatprep.subr.bf16.mxu0 0
    %5184 = vmatpush1.bf16.msra.mxu0 %v5164
    %5185 = vmatprep.subr.bf16.mxu0 0
    %5186 = vmatpush1.bf16.msra.mxu0 %v5165
    %5187 = vmatprep.subr.bf16.mxu0 0
    %5188 = vmatpush1.bf16.msra.mxu0 %v5166
    %5189 = vmatprep.subr.bf16.mxu0 0
    %5190 = vmatpush1.bf16.msra.mxu0 %v5167
    %5191 = vmatprep.subr.bf16.mxu0 0
    %5192 = vmatpush1.bf16.msra.mxu0 %v5168
    %5193 = vmatprep.subr.bf16.mxu0 0
    %5194 = vmatpush1.bf16.msra.mxu0 0
    %5195 = vmatprep.subr.bf16.mxu0 0
    %5196 = vmatpush1.bf16.msra.mxu0 0
    %5197 = vmatprep.subr.bf16.mxu0 0
    %5198 = vmatpush1.bf16.msra.mxu0 0
    %5199 = vmatprep.subr.bf16.mxu0 0
    %5200 = vmatpush1.bf16.msra.mxu0 0
    %5201 = vmatprep.subr.bf16.mxu0 0
    %5202 = vmatpush1.bf16.msra.mxu0 0
    %5203 = vmatprep.subr.bf16.mxu0 0
    %5204 = vmatpush1.bf16.msra.mxu0 0
    %5205 = vmatprep.subr.bf16.mxu0 0
    %5206 = vmatpush1.bf16.msra.mxu0 0
    %5207 = vmatprep.subr.bf16.mxu0 0
    %5208 = vmatpush1.bf16.msra.mxu0 0
    %5209 = vmatprep.mubr.bf16.mxu0 0
    %5210 = vmatmul.mubr.bf16.gmra.mrb[0].mxu0 %v4943
    %v5211 = vpop.f32.mrb[0].mxu0
    %v5212 = vadd.f32 0.0, %v5211
    %v5213 = vpop.f32.mrb[0].mxu0
    %v5214 = vpop.f32.mrb[0].mxu0
    %v5215 = vadd.f32 0.0, %v5214
    %v5216 = vpop.f32.mrb[0].mxu0
    %5217 = vmatprep.mubr.bf16.mxu0 0
    %5218 = vmatmul.mubr.bf16.gmra.mrb[0].mxu0 %v4945
    %v5219 = vpop.f32.mrb[0].mxu0
    %v5220 = vadd.f32 0.0, %v5219
    %v5221 = vpop.f32.mrb[0].mxu0
    %v5222 = vpop.f32.mrb[0].mxu0
    %v5223 = vadd.f32 0.0, %v5222
    %v5224 = vpop.f32.mrb[0].mxu0
    %5225 = vmatprep.mubr.bf16.mxu0 0
    %5226 = vmatmul.mubr.bf16.gmra.mrb[0].mxu0 %v4947
    %v5227 = vpop.f32.mrb[0].mxu0
    %v5228 = vadd.f32 0.0, %v5227
    %v5229 = vpop.f32.mrb[0].mxu0
    %v5230 = vpop.f32.mrb[0].mxu0
    %v5231 = vadd.f32 0.0, %v5230
    %v5232 = vpop.f32.mrb[0].mxu0
    %5233 = vmatprep.mubr.bf16.mxu0 0
    %5234 = vmatmul.mubr.bf16.gmra.mrb[0].mxu0 %v4949
    %v5235 = vpop.f32.mrb[0].mxu0
    %v5236 = vadd.f32 0.0, %v5235
    %v5237 = vpop.f32.mrb[0].mxu0
    %v5238 = vpop.f32.mrb[0].mxu0
    %v5239 = vadd.f32 0.0, %v5238
    %v5240 = vpop.f32.mrb[0].mxu0
    %5241 = vmatprep.mubr.bf16.mxu0 0
    %5242 = vmatmul.mubr.bf16.gmra.mrb[0].mxu0 %v4951
    %v5243 = vpop.f32.mrb[0].mxu0
    %v5244 = vadd.f32 0.0, %v5243
    %v5245 = vpop.f32.mrb[0].mxu0
    %v5246 = vpop.f32.mrb[0].mxu0
    %v5247 = vadd.f32 0.0, %v5246
    %v5248 = vpop.f32.mrb[0].mxu0
    %5249 = vmatprep.mubr.bf16.mxu0 0
    %5250 = vmatmul.mubr.bf16.gmra.mrb[0].mxu0 %v4953
    %v5251 = vpop.f32.mrb[0].mxu0
    %v5252 = vadd.f32 0.0, %v5251
    %v5253 = vpop.f32.mrb[0].mxu0
    %v5254 = vpop.f32.mrb[0].mxu0
    %v5255 = vadd.f32 0.0, %v5254
    %v5256 = vpop.f32.mrb[0].mxu0
    %5257 = vmatprep.mubr.bf16.mxu0 0
    %5258 = vmatmul.mubr.bf16.gmra.mrb[0].mxu0 %v4952
    %v5259 = vpop.f32.mrb[0].mxu0
    %v5260 = vadd.f32 0.0, %v5259
    %v5261 = vpop.f32.mrb[0].mxu0
    %v5262 = vpop.f32.mrb[0].mxu0
    %v5263 = vadd.f32 0.0, %v5262
    %v5264 = vpop.f32.mrb[0].mxu0
    %5265 = vdwg.mxu0
    %v5266 = vadd.f32 %v4910, %v5212
    %v5267 = vadd.f32 %v4911, %v5215
    %v5268 = vadd.f32 %v4912, %v5220
    %v5269 = vadd.f32 %v4913, %v5223
    %v5270 = vadd.f32 %v4914, %v5228
    %v5271 = vadd.f32 %v4915, %v5231
    %v5272 = vadd.f32 %v4916, %v5236
    %v5273 = vadd.f32 %v4917, %v5239
    %v5274 = vadd.f32 %v4918, %v5244
    %v5275 = vadd.f32 %v4919, %v5247
    %v5276 = vadd.f32 %v4920, %v5252
    %v5277 = vadd.f32 %v4921, %v5255
    %v5278 = vadd.f32 %v4922, %v5260
    %v5279 = vadd.f32 %v4923, %v5263
    %v5280 = vmax.f32 %v5098, %v5266
    %v5281 = vmax.f32 %v5099, %v5267
    %v5282 = vmax.f32 %v5100, %v5268
    %v5283 = vmax.f32 %v5101, %v5269
    %v5284 = vmax.f32 %v5102, %v5270
    %v5285 = vmax.f32 %v5103, %v5271
    %v5286 = vmax.f32 %v5104, %v5272
    %v5287 = vmax.f32 %v5105, %v5273
    %v5288 = vmax.f32 %v5106, %v5274
    %v5289 = vmax.f32 %v5107, %v5275
    %v5290 = vmax.f32 %v5108, %v5276
    %v5291 = vmax.f32 %v5109, %v5277
    %v5292 = vmax.f32 %v5110, %v5278
    %v5293 = vmax.f32 %v5111, %v5279
    %v5294 = vpack.c.bf16 %v5281, %v5280
    %v5295 = vpack.c.bf16 %v5283, %v5282
    %v5296 = vpack.c.bf16 %v5285, %v5284
    %v5297 = vpack.c.bf16 %v5287, %v5286
    %v5298 = vpack.c.bf16 %v5289, %v5288
    %v5299 = vpack.c.bf16 %v5291, %v5290
    %v5300 = vpack.c.bf16 %v5293, %v5292
    %v5301 = vld [vmem:[#allocation7] sm:$0xf]
    %v5302 = vld [vmem:[#allocation7 + $0x4] sm:$0xf]
    %v5303 = vld [vmem:[#allocation7 + $0x8] sm:$0xf]
    %v5304 = vld [vmem:[#allocation7 + $0xc] sm:$0xf]
    %v5305 = vld [vmem:[#allocation7 + $0x10] sm:$0xf]
    %v5311 = vunpack.c.l.b16 %v5301
    %v5312 = vunpack.c.l.b16 %v5302
    %v5313 = vunpack.c.l.b16 %v5303
    %v5314 = vunpack.c.l.b16 %v5304
    %v5315 = vunpack.c.l.b16 %v5305
    %v5316 = vpack.c.b16 %v5312, %v5311
    %v5317 = vpack.c.b16 %v5314, %v5313
    %v5318 = vpack.c.b16 %v5315, %v5315
    %vm5319 = vcmask 883712
    %v5321 = vsel %vm5319, %v5316, 0
    %v5324 = vsel %vm5319, %v5317, 0
    %v5327 = vsel %vm5319, %v5318, 0
    %v5330 = vsel %vm3179, %v5300, 0
    %5332 = vmatprep.subr.bf16.mxu0 0
    %5333 = vmatpush1.bf16.msra.mxu0 %v5294
    %5334 = vmatprep.subr.bf16.mxu0 0
    %5335 = vmatpush1.bf16.msra.mxu0 %v5295
    %5336 = vmatprep.subr.bf16.mxu0 0
    %5337 = vmatpush1.bf16.msra.mxu0 %v5296
    %5338 = vmatprep.subr.bf16.mxu0 0
    %5339 = vmatpush1.bf16.msra.mxu0 %v5297
    %5340 = vmatprep.subr.bf16.mxu0 0
    %5341 = vmatpush1.bf16.msra.mxu0 %v5298
    %5342 = vmatprep.subr.bf16.mxu0 0
    %5343 = vmatpush1.bf16.msra.mxu0 %v5299
    %5344 = vmatprep.subr.bf16.mxu0 0
    %5345 = vmatpush1.bf16.msra.mxu0 %v5330
    %5346 = vmatprep.subr.bf16.mxu0 0
    %5347 = vmatpush1.bf16.msra.mxu0 0
    %5348 = vmatprep.subr.bf16.mxu0 0
    %5349 = vmatpush1.bf16.msra.mxu0 0
    %5350 = vmatprep.subr.bf16.mxu0 0
    %5351 = vmatpush1.bf16.msra.mxu0 0
    %5352 = vmatprep.subr.bf16.mxu0 0
    %5353 = vmatpush1.bf16.msra.mxu0 0
    %5354 = vmatprep.subr.bf16.mxu0 0
    %5355 = vmatpush1.bf16.msra.mxu0 0
    %5356 = vmatprep.subr.bf16.mxu0 0
    %5357 = vmatpush1.bf16.msra.mxu0 0
    %5358 = vmatprep.subr.bf16.mxu0 0
    %5359 = vmatpush1.bf16.msra.mxu0 0
    %5360 = vmatprep.subr.bf16.mxu0 0
    %5361 = vmatpush1.bf16.msra.mxu0 0
    %5362 = vmatprep.subr.bf16.mxu0 0
    %5363 = vmatpush1.bf16.msra.mxu0 0
    %5364 = vmatprep.mubr.bf16.mxu0 0
    %5365 = vmatmul.mubr.bf16.gmra.mrb[0].mxu0 %v5321
    %v5366 = vpop.f32.mrb[0].mxu0
    %v5367 = vadd.f32 0.0, %v5366
    %v5368 = vpop.f32.mrb[0].mxu0
    %v5369 = vpop.f32.mrb[0].mxu0
    %v5370 = vadd.f32 0.0, %v5369
    %v5371 = vpop.f32.mrb[0].mxu0
    %5372 = vmatprep.mubr.bf16.mxu0 0
    %5373 = vmatmul.mubr.bf16.gmra.mrb[0].mxu0 %v5324
    %v5374 = vpop.f32.mrb[0].mxu0
    %v5375 = vadd.f32 0.0, %v5374
    %v5376 = vpop.f32.mrb[0].mxu0
    %v5377 = vpop.f32.mrb[0].mxu0
    %v5378 = vadd.f32 0.0, %v5377
    %v5379 = vpop.f32.mrb[0].mxu0
    %5380 = vmatprep.mubr.bf16.mxu0 0
    %5381 = vmatmul.mubr.bf16.gmra.mrb[0].mxu0 %v5327
    %v5382 = vpop.f32.mrb[0].mxu0
    %v5383 = vadd.f32 0.0, %v5382
    %v5384 = vpop.f32.mrb[0].mxu0
    %v5385 = vpop.f32.mrb[0].mxu0
    %v5386 = vpop.f32.mrb[0].mxu0
    %5387 = vdwg.mxu0
    %v5388 = vld [vmem:[#allocation9] sm:$0xf]
    %v5389 = vld [vmem:[#allocation9 + $0x4] sm:$0xf]
    %v5390 = vld [vmem:[#allocation9 + $0x8] sm:$0xf]
    %v5391 = vld [vmem:[#allocation9 + $0xc] sm:$0xf]
    %v5392 = vld [vmem:[#allocation9 + $0x10] sm:$0xf]
    %v5398 = vunpack.c.l.b16 %v5388
    %v5399 = vunpack.c.l.b16 %v5389
    %v5400 = vunpack.c.l.b16 %v5390
    %v5401 = vunpack.c.l.b16 %v5391
    %v5402 = vunpack.c.l.b16 %v5392
    %v5403 = vpack.c.b16 %v5399, %v5398
    %v5404 = vpack.c.b16 %v5401, %v5400
    %v5405 = vpack.c.b16 %v5402, %v5402
    %v5407 = vsel %vm5319, %v5403, 0
    %v5410 = vsel %vm5319, %v5404, 0
    %v5413 = vsel %vm5319, %v5405, 0
    %5415 = vmatprep.subr.bf16.mxu0 0
    %5416 = vmatpush1.bf16.msra.mxu0 %v5294
    %5417 = vmatprep.subr.bf16.mxu0 0
    %5418 = vmatpush1.bf16.msra.mxu0 %v5295
    %5419 = vmatprep.subr.bf16.mxu0 0
    %5420 = vmatpush1.bf16.msra.mxu0 %v5296
    %5421 = vmatprep.subr.bf16.mxu0 0
    %5422 = vmatpush1.bf16.msra.mxu0 %v5297
    %5423 = vmatprep.subr.bf16.mxu0 0
    %5424 = vmatpush1.bf16.msra.mxu0 %v5298
    %5425 = vmatprep.subr.bf16.mxu0 0
    %5426 = vmatpush1.bf16.msra.mxu0 %v5299
    %5427 = vmatprep.subr.bf16.mxu0 0
    %5428 = vmatpush1.bf16.msra.mxu0 %v5330
    %5429 = vmatprep.subr.bf16.mxu0 0
    %5430 = vmatpush1.bf16.msra.mxu0 0
    %5431 = vmatprep.subr.bf16.mxu0 0
    %5432 = vmatpush1.bf16.msra.mxu0 0
    %5433 = vmatprep.subr.bf16.mxu0 0
    %5434 = vmatpush1.bf16.msra.mxu0 0
    %5435 = vmatprep.subr.bf16.mxu0 0
    %5436 = vmatpush1.bf16.msra.mxu0 0
    %5437 = vmatprep.subr.bf16.mxu0 0
    %5438 = vmatpush1.bf16.msra.mxu0 0
    %5439 = vmatprep.subr.bf16.mxu0 0
    %5440 = vmatpush1.bf16.msra.mxu0 0
    %5441 = vmatprep.subr.bf16.mxu0 0
    %5442 = vmatpush1.bf16.msra.mxu0 0
    %5443 = vmatprep.subr.bf16.mxu0 0
    %5444 = vmatpush1.bf16.msra.mxu0 0
    %5445 = vmatprep.subr.bf16.mxu0 0
    %5446 = vmatpush1.bf16.msra.mxu0 0
    %5447 = vmatprep.mubr.bf16.mxu0 0
    %5448 = vmatmul.mubr.bf16.gmra.mrb[0].mxu0 %v5407
    %v5449 = vpop.f32.mrb[0].mxu0
    %v5450 = vadd.f32 0.0, %v5449
    %v5451 = vpop.f32.mrb[0].mxu0
    %v5452 = vpop.f32.mrb[0].mxu0
    %v5453 = vadd.f32 0.0, %v5452
    %v5454 = vpop.f32.mrb[0].mxu0
    %5455 = vmatprep.mubr.bf16.mxu0 0
    %5456 = vmatmul.mubr.bf16.gmra.mrb[0].mxu0 %v5410
    %v5457 = vpop.f32.mrb[0].mxu0
    %v5458 = vadd.f32 0.0, %v5457
    %v5459 = vpop.f32.mrb[0].mxu0
    %v5460 = vpop.f32.mrb[0].mxu0
    %v5461 = vadd.f32 0.0, %v5460
    %v5462 = vpop.f32.mrb[0].mxu0
    %5463 = vmatprep.mubr.bf16.mxu0 0
    %5464 = vmatmul.mubr.bf16.gmra.mrb[0].mxu0 %v5413
    %v5465 = vpop.f32.mrb[0].mxu0
    %v5466 = vadd.f32 0.0, %v5465
    %v5467 = vpop.f32.mrb[0].mxu0
    %v5468 = vpop.f32.mrb[0].mxu0
    %v5469 = vpop.f32.mrb[0].mxu0
    %5470 = vdwg.mxu0
    %v5471 = vmax.f32 %v5367, %v5450
    %v5472 = vmax.f32 %v5370, %v5453
    %v5473 = vmax.f32 %v5375, %v5458
    %v5474 = vmax.f32 %v5378, %v5461
    %v5475 = vmax.f32 %v5383, %v5466
    %v5476 = vld [vmem:[#allocation10] sm:$0x1]
    %v5478 = vlaneseq
    %v5479 = vshrl.u32 %v5478, 7
    %v5480 = vsub.s32 0, %v5479
    %v5481 = vrot.slane %v5476, %v5480
    %v5483 = vadd.f32 %v5471, %v5481
    %v5484 = vadd.f32 %v5472, %v5481
    %v5485 = vadd.f32 %v5473, %v5481
    %v5486 = vadd.f32 %v5474, %v5481
    %v5487 = vadd.f32 %v5475, %v5481
    %v5488 = vmax.f32 %v5483, 0.0
    %v5489 = vmax.f32 %v5484, 0.0
    %v5490 = vmax.f32 %v5485, 0.0
    %v5491 = vmax.f32 %v5486, 0.0
    %v5492 = vmax.f32 %v5487, 0.0
    %v5493 = vpack.c.bf16 %v5489, %v5488
    %v5494 = vpack.c.bf16 %v5491, %v5490
    %v5495 = vpack.c.bf16 %v5492, %v5492
    %v5496 = vld [vmem:[#allocation12] sm:$0xf]
    %v5497 = vld [vmem:[#allocation12 + $0x4] sm:$0xf]
    %v5498 = vld [vmem:[#allocation12 + $0x8] sm:$0xf]
    %v5499 = vld [vmem:[#allocation12 + $0xc] sm:$0xf]
    %v5500 = vld [vmem:[#allocation12 + $0x10] sm:$0xf]
    %v5501 = vld [vmem:[#allocation12 + $0x14] sm:$0xf]
    %v5502 = vld [vmem:[#allocation12 + $0x18] sm:$0xf]
    %v5503 = vld [vmem:[#allocation12 + $0x1c] sm:$0xf]
    %v5504 = vld [vmem:[#allocation12 + $0x20] sm:$0xf]
    %v5505 = vld [vmem:[#allocation12 + $0x24] sm:$0xf]
    %v5506 = vld [vmem:[#allocation12 + $0x28] sm:$0xf]
    %v5507 = vld [vmem:[#allocation12 + $0x2c] sm:$0xf]
    %v5508 = vld [vmem:[#allocation12 + $0x30] sm:$0xf]
    %v5509 = vld [vmem:[#allocation12 + $0x34] sm:$0xf]
    %v5510 = vld [vmem:[#allocation12 + $0x38] sm:$0xf]
    %v5511 = vld [vmem:[#allocation12 + $0x3c] sm:$0xf]
    %s5512 = scalar_lea.vmem [#allocation12], 64
    %v5513 = vld [vmem:[%s5512] sm:$0xf]
    %v5514 = vld [vmem:[%s5512 + $0x4] sm:$0xf]
    %v5515 = vld [vmem:[%s5512 + $0x8] sm:$0xf]
    %v5516 = vld [vmem:[%s5512 + $0xc] sm:$0xf]
    %v5517 = vld [vmem:[%s5512 + $0x10] sm:$0xf]
    %v5518 = vld [vmem:[%s5512 + $0x14] sm:$0xf]
    %v5519 = vld [vmem:[%s5512 + $0x18] sm:$0xf]
    %v5520 = vld [vmem:[%s5512 + $0x1c] sm:$0xf]
    %v5521 = vld [vmem:[%s5512 + $0x20] sm:$0xf]
    %v5522 = vld [vmem:[%s5512 + $0x24] sm:$0xf]
    %v5523 = vld [vmem:[%s5512 + $0x28] sm:$0xf]
    %v5524 = vld [vmem:[%s5512 + $0x2c] sm:$0xf]
    %v5525 = vld [vmem:[%s5512 + $0x30] sm:$0xf]
    %v5526 = vld [vmem:[%s5512 + $0x34] sm:$0xf]
    %v5527 = vld [vmem:[%s5512 + $0x38] sm:$0xf]
    %v5528 = vld [vmem:[%s5512 + $0x3c] sm:$0xf]
    %v5530 = vrot.slane %v5493, 4
    %v5548 = vunpack.c.l.b16 %v5513
    %v5549 = vunpack.c.l.b16 %v5514
    %v5550 = vunpack.c.l.b16 %v5515
    %v5551 = vunpack.c.l.b16 %v5516
    %v5552 = vunpack.c.l.b16 %v5517
    %v5553 = vunpack.c.l.b16 %v5518
    %v5554 = vunpack.c.l.b16 %v5519
    %v5555 = vunpack.c.l.b16 %v5520
    %v5556 = vunpack.c.l.b16 %v5521
    %v5557 = vunpack.c.l.b16 %v5522
    %v5558 = vunpack.c.l.b16 %v5523
    %v5559 = vunpack.c.l.b16 %v5524
    %v5560 = vunpack.c.l.b16 %v5525
    %v5561 = vunpack.c.l.b16 %v5526
    %v5562 = vunpack.c.l.b16 %v5527
    %v5563 = vunpack.c.l.b16 %v5528
    %v5564 = vpack.c.b16 %v5549, %v5548
    %v5565 = vpack.c.b16 %v5551, %v5550
    %v5566 = vpack.c.b16 %v5553, %v5552
    %v5567 = vpack.c.b16 %v5555, %v5554
    %v5568 = vpack.c.b16 %v5557, %v5556
    %v5569 = vpack.c.b16 %v5559, %v5558
    %v5570 = vpack.c.b16 %v5561, %v5560
    %v5571 = vpack.c.b16 %v5563, %v5562
    %5580 = vmatprep.subr.bf16.mxu0 0
    %5581 = vmatpush1.bf16.msra.mxu0 %v5564
    %5582 = vmatprep.subr.bf16.mxu0 0
    %5583 = vmatpush1.bf16.msra.mxu0 %v5565
    %5584 = vmatprep.subr.bf16.mxu0 0
    %5585 = vmatpush1.bf16.msra.mxu0 %v5566
    %5586 = vmatprep.subr.bf16.mxu0 0
    %5587 = vmatpush1.bf16.msra.mxu0 %v5567
    %5588 = vmatprep.subr.bf16.mxu0 0
    %5589 = vmatpush1.bf16.msra.mxu0 %v5568
    %5590 = vmatprep.subr.bf16.mxu0 0
    %5591 = vmatpush1.bf16.msra.mxu0 %v5569
    %5592 = vmatprep.subr.bf16.mxu0 0
    %5593 = vmatpush1.bf16.msra.mxu0 %v5570
    %5594 = vmatprep.subr.bf16.mxu0 0
    %5595 = vmatpush1.bf16.msra.mxu0 %v5571
    %5596 = vmatprep.subr.bf16.mxu0 0
    %5597 = vmatpush1.bf16.msra.mxu0 0
    %5598 = vmatprep.subr.bf16.mxu0 0
    %5599 = vmatpush1.bf16.msra.mxu0 0
    %5600 = vmatprep.subr.bf16.mxu0 0
    %5601 = vmatpush1.bf16.msra.mxu0 0
    %5602 = vmatprep.subr.bf16.mxu0 0
    %5603 = vmatpush1.bf16.msra.mxu0 0
    %5604 = vmatprep.subr.bf16.mxu0 0
    %5605 = vmatpush1.bf16.msra.mxu0 0
    %5606 = vmatprep.subr.bf16.mxu0 0
    %5607 = vmatpush1.bf16.msra.mxu0 0
    %5608 = vmatprep.subr.bf16.mxu0 0
    %5609 = vmatpush1.bf16.msra.mxu0 0
    %5610 = vmatprep.subr.bf16.mxu0 0
    %5611 = vmatpush1.bf16.msra.mxu0 0
    %5612 = vmatprep.mubr.bf16.mxu0 0
    %5613 = vmatmul.mubr.bf16.gmra.mrb[0].mxu0 %v5530
    %v5614 = vpop.f32.mrb[0].mxu0
    %v5615 = vadd.f32 0.0, %v5614
    %v5616 = vpop.f32.mrb[0].mxu0
    %v5617 = vpop.f32.mrb[0].mxu0
    %v5618 = vpop.f32.mrb[0].mxu0
    %5619 = vdwg.mxu0
    %v5636 = vunpack.c.l.b16 %v5496
    %v5637 = vunpack.c.l.b16 %v5497
    %v5638 = vunpack.c.l.b16 %v5498
    %v5639 = vunpack.c.l.b16 %v5499
    %v5640 = vunpack.c.l.b16 %v5500
    %v5641 = vunpack.c.l.b16 %v5501
    %v5642 = vunpack.c.l.b16 %v5502
    %v5643 = vunpack.c.l.b16 %v5503
    %v5644 = vunpack.c.l.b16 %v5504
    %v5645 = vunpack.c.l.b16 %v5505
    %v5646 = vunpack.c.l.b16 %v5506
    %v5647 = vunpack.c.l.b16 %v5507
    %v5648 = vunpack.c.l.b16 %v5508
    %v5649 = vunpack.c.l.b16 %v5509
    %v5650 = vunpack.c.l.b16 %v5510
    %v5651 = vunpack.c.l.b16 %v5511
    %v5652 = vpack.c.b16 %v5637, %v5636
    %v5653 = vpack.c.b16 %v5639, %v5638
    %v5654 = vpack.c.b16 %v5641, %v5640
    %v5655 = vpack.c.b16 %v5643, %v5642
    %v5656 = vpack.c.b16 %v5645, %v5644
    %v5657 = vpack.c.b16 %v5647, %v5646
    %v5658 = vpack.c.b16 %v5649, %v5648
    %v5659 = vpack.c.b16 %v5651, %v5650
    %5668 = vmatprep.subr.bf16.mxu0 0
    %5669 = vmatpush1.bf16.msra.mxu0 %v5652
    %5670 = vmatprep.subr.bf16.mxu0 0
    %5671 = vmatpush1.bf16.msra.mxu0 %v5653
    %5672 = vmatprep.subr.bf16.mxu0 0
    %5673 = vmatpush1.bf16.msra.mxu0 %v5654
    %5674 = vmatprep.subr.bf16.mxu0 0
    %5675 = vmatpush1.bf16.msra.mxu0 %v5655
    %5676 = vmatprep.subr.bf16.mxu0 0
    %5677 = vmatpush1.bf16.msra.mxu0 %v5656
    %5678 = vmatprep.subr.bf16.mxu0 0
    %5679 = vmatpush1.bf16.msra.mxu0 %v5657
    %5680 = vmatprep.subr.bf16.mxu0 0
    %5681 = vmatpush1.bf16.msra.mxu0 %v5658
    %5682 = vmatprep.subr.bf16.mxu0 0
    %5683 = vmatpush1.bf16.msra.mxu0 %v5659
    %5684 = vmatprep.subr.bf16.mxu0 0
    %5685 = vmatpush1.bf16.msra.mxu0 0
    %5686 = vmatprep.subr.bf16.mxu0 0
    %5687 = vmatpush1.bf16.msra.mxu0 0
    %5688 = vmatprep.subr.bf16.mxu0 0
    %5689 = vmatpush1.bf16.msra.mxu0 0
    %5690 = vmatprep.subr.bf16.mxu0 0
    %5691 = vmatpush1.bf16.msra.mxu0 0
    %5692 = vmatprep.subr.bf16.mxu0 0
    %5693 = vmatpush1.bf16.msra.mxu0 0
    %5694 = vmatprep.subr.bf16.mxu0 0
    %5695 = vmatpush1.bf16.msra.mxu0 0
    %5696 = vmatprep.subr.bf16.mxu0 0
    %5697 = vmatpush1.bf16.msra.mxu0 0
    %5698 = vmatprep.subr.bf16.mxu0 0
    %5699 = vmatpush1.bf16.msra.mxu0 0
    %5700 = vmatprep.mubr.bf16.mxu0 0
    %5701 = vmatmul.mubr.bf16.gmra.mrb[0].mxu0 %v5493
    %v5702 = vpop.f32.mrb[0].mxu0
    %v5703 = vadd.f32 %v5615, %v5702
    %v5704 = vpop.f32.mrb[0].mxu0
    %v5705 = vpop.f32.mrb[0].mxu0
    %v5706 = vpop.f32.mrb[0].mxu0
    %5707 = vdwg.mxu0
    %s5708 = scalar_lea.vmem [#allocation12], 128
    %v5709 = vld [vmem:[%s5708] sm:$0xf]
    %v5710 = vld [vmem:[%s5708 + $0x4] sm:$0xf]
    %v5711 = vld [vmem:[%s5708 + $0x8] sm:$0xf]
    %v5712 = vld [vmem:[%s5708 + $0xc] sm:$0xf]
    %v5713 = vld [vmem:[%s5708 + $0x10] sm:$0xf]
    %v5714 = vld [vmem:[%s5708 + $0x14] sm:$0xf]
    %v5715 = vld [vmem:[%s5708 + $0x18] sm:$0xf]
    %v5716 = vld [vmem:[%s5708 + $0x1c] sm:$0xf]
    %v5717 = vld [vmem:[%s5708 + $0x20] sm:$0xf]
    %v5718 = vld [vmem:[%s5708 + $0x24] sm:$0xf]
    %v5719 = vld [vmem:[%s5708 + $0x28] sm:$0xf]
    %v5720 = vld [vmem:[%s5708 + $0x2c] sm:$0xf]
    %v5721 = vld [vmem:[%s5708 + $0x30] sm:$0xf]
    %v5722 = vld [vmem:[%s5708 + $0x34] sm:$0xf]
    %v5723 = vld [vmem:[%s5708 + $0x38] sm:$0xf]
    %v5724 = vld [vmem:[%s5708 + $0x3c] sm:$0xf]
    %v5741 = vunpack.c.l.b16 %v5709
    %v5742 = vunpack.c.l.b16 %v5710
    %v5743 = vunpack.c.l.b16 %v5711
    %v5744 = vunpack.c.l.b16 %v5712
    %v5745 = vunpack.c.l.b16 %v5713
    %v5746 = vunpack.c.l.b16 %v5714
    %v5747 = vunpack.c.l.b16 %v5715
    %v5748 = vunpack.c.l.b16 %v5716
    %v5749 = vunpack.c.l.b16 %v5717
    %v5750 = vunpack.c.l.b16 %v5718
    %v5751 = vunpack.c.l.b16 %v5719
    %v5752 = vunpack.c.l.b16 %v5720
    %v5753 = vunpack.c.l.b16 %v5721
    %v5754 = vunpack.c.l.b16 %v5722
    %v5755 = vunpack.c.l.b16 %v5723
    %v5756 = vunpack.c.l.b16 %v5724
    %v5757 = vpack.c.b16 %v5742, %v5741
    %v5758 = vpack.c.b16 %v5744, %v5743
    %v5759 = vpack.c.b16 %v5746, %v5745
    %v5760 = vpack.c.b16 %v5748, %v5747
    %v5761 = vpack.c.b16 %v5750, %v5749
    %v5762 = vpack.c.b16 %v5752, %v5751
    %v5763 = vpack.c.b16 %v5754, %v5753
    %v5764 = vpack.c.b16 %v5756, %v5755
    %5773 = vmatprep.subr.bf16.mxu0 0
    %5774 = vmatpush1.bf16.msra.mxu0 %v5757
    %5775 = vmatprep.subr.bf16.mxu0 0
    %5776 = vmatpush1.bf16.msra.mxu0 %v5758
    %5777 = vmatprep.subr.bf16.mxu0 0
    %5778 = vmatpush1.bf16.msra.mxu0 %v5759
    %5779 = vmatprep.subr.bf16.mxu0 0
    %5780 = vmatpush1.bf16.msra.mxu0 %v5760
    %5781 = vmatprep.subr.bf16.mxu0 0
    %5782 = vmatpush1.bf16.msra.mxu0 %v5761
    %5783 = vmatprep.subr.bf16.mxu0 0
    %5784 = vmatpush1.bf16.msra.mxu0 %v5762
    %5785 = vmatprep.subr.bf16.mxu0 0
    %5786 = vmatpush1.bf16.msra.mxu0 %v5763
    %5787 = vmatprep.subr.bf16.mxu0 0
    %5788 = vmatpush1.bf16.msra.mxu0 %v5764
    %5789 = vmatprep.subr.bf16.mxu0 0
    %5790 = vmatpush1.bf16.msra.mxu0 0
    %5791 = vmatprep.subr.bf16.mxu0 0
    %5792 = vmatpush1.bf16.msra.mxu0 0
    %5793 = vmatprep.subr.bf16.mxu0 0
    %5794 = vmatpush1.bf16.msra.mxu0 0
    %5795 = vmatprep.subr.bf16.mxu0 0
    %5796 = vmatpush1.bf16.msra.mxu0 0
    %5797 = vmatprep.subr.bf16.mxu0 0
    %5798 = vmatpush1.bf16.msra.mxu0 0
    %5799 = vmatprep.subr.bf16.mxu0 0
    %5800 = vmatpush1.bf16.msra.mxu0 0
    %5801 = vmatprep.subr.bf16.mxu0 0
    %5802 = vmatpush1.bf16.msra.mxu0 0
    %5803 = vmatprep.subr.bf16.mxu0 0
    %5804 = vmatpush1.bf16.msra.mxu0 0
    %5805 = vmatprep.mubr.bf16.mxu0 0
    %5806 = vmatmul.mubr.bf16.gmra.mrb[0].mxu0 %v5494
    %v5807 = vpop.f32.mrb[0].mxu0
    %v5808 = vadd.f32 0.0, %v5807
    %v5809 = vpop.f32.mrb[0].mxu0
    %v5810 = vpop.f32.mrb[0].mxu0
    %v5811 = vpop.f32.mrb[0].mxu0
    %5812 = vdwg.mxu0
    %v5813 = vadd.f32 %v5703, %v5808
    %s5814 = scalar_lea.vmem [#allocation12], 192
    %v5815 = vld [vmem:[%s5814] sm:$0xf]
    %v5816 = vld [vmem:[%s5814 + $0x4] sm:$0xf]
    %v5817 = vld [vmem:[%s5814 + $0x8] sm:$0xf]
    %v5818 = vld [vmem:[%s5814 + $0xc] sm:$0xf]
    %v5819 = vld [vmem:[%s5814 + $0x10] sm:$0xf]
    %v5820 = vld [vmem:[%s5814 + $0x14] sm:$0xf]
    %v5821 = vld [vmem:[%s5814 + $0x18] sm:$0xf]
    %v5822 = vld [vmem:[%s5814 + $0x1c] sm:$0xf]
    %v5823 = vld [vmem:[%s5814 + $0x20] sm:$0xf]
    %v5824 = vld [vmem:[%s5814 + $0x24] sm:$0xf]
    %v5825 = vld [vmem:[%s5814 + $0x28] sm:$0xf]
    %v5826 = vld [vmem:[%s5814 + $0x2c] sm:$0xf]
    %v5827 = vld [vmem:[%s5814 + $0x30] sm:$0xf]
    %v5828 = vld [vmem:[%s5814 + $0x34] sm:$0xf]
    %v5829 = vld [vmem:[%s5814 + $0x38] sm:$0xf]
    %v5830 = vld [vmem:[%s5814 + $0x3c] sm:$0xf]
    %v5832 = vrot.slane %v5494, 4
    %v5850 = vunpack.c.l.b16 %v5815
    %v5851 = vunpack.c.l.b16 %v5816
    %v5852 = vunpack.c.l.b16 %v5817
    %v5853 = vunpack.c.l.b16 %v5818
    %v5854 = vunpack.c.l.b16 %v5819
    %v5855 = vunpack.c.l.b16 %v5820
    %v5856 = vunpack.c.l.b16 %v5821
    %v5857 = vunpack.c.l.b16 %v5822
    %v5858 = vunpack.c.l.b16 %v5823
    %v5859 = vunpack.c.l.b16 %v5824
    %v5860 = vunpack.c.l.b16 %v5825
    %v5861 = vunpack.c.l.b16 %v5826
    %v5862 = vunpack.c.l.b16 %v5827
    %v5863 = vunpack.c.l.b16 %v5828
    %v5864 = vunpack.c.l.b16 %v5829
    %v5865 = vunpack.c.l.b16 %v5830
    %v5866 = vpack.c.b16 %v5851, %v5850
    %v5867 = vpack.c.b16 %v5853, %v5852
    %v5868 = vpack.c.b16 %v5855, %v5854
    %v5869 = vpack.c.b16 %v5857, %v5856
    %v5870 = vpack.c.b16 %v5859, %v5858
    %v5871 = vpack.c.b16 %v5861, %v5860
    %v5872 = vpack.c.b16 %v5863, %v5862
    %v5873 = vpack.c.b16 %v5865, %v5864
    %5882 = vmatprep.subr.bf16.mxu0 0
    %5883 = vmatpush1.bf16.msra.mxu0 %v5866
    %5884 = vmatprep.subr.bf16.mxu0 0
    %5885 = vmatpush1.bf16.msra.mxu0 %v5867
    %5886 = vmatprep.subr.bf16.mxu0 0
    %5887 = vmatpush1.bf16.msra.mxu0 %v5868
    %5888 = vmatprep.subr.bf16.mxu0 0
    %5889 = vmatpush1.bf16.msra.mxu0 %v5869
    %5890 = vmatprep.subr.bf16.mxu0 0
    %5891 = vmatpush1.bf16.msra.mxu0 %v5870
    %5892 = vmatprep.subr.bf16.mxu0 0
    %5893 = vmatpush1.bf16.msra.mxu0 %v5871
    %5894 = vmatprep.subr.bf16.mxu0 0
    %5895 = vmatpush1.bf16.msra.mxu0 %v5872
    %5896 = vmatprep.subr.bf16.mxu0 0
    %5897 = vmatpush1.bf16.msra.mxu0 %v5873
    %5898 = vmatprep.subr.bf16.mxu0 0
    %5899 = vmatpush1.bf16.msra.mxu0 0
    %5900 = vmatprep.subr.bf16.mxu0 0
    %5901 = vmatpush1.bf16.msra.mxu0 0
    %5902 = vmatprep.subr.bf16.mxu0 0
    %5903 = vmatpush1.bf16.msra.mxu0 0
    %5904 = vmatprep.subr.bf16.mxu0 0
    %5905 = vmatpush1.bf16.msra.mxu0 0
    %5906 = vmatprep.subr.bf16.mxu0 0
    %5907 = vmatpush1.bf16.msra.mxu0 0
    %5908 = vmatprep.subr.bf16.mxu0 0
    %5909 = vmatpush1.bf16.msra.mxu0 0
    %5910 = vmatprep.subr.bf16.mxu0 0
    %5911 = vmatpush1.bf16.msra.mxu0 0
    %5912 = vmatprep.subr.bf16.mxu0 0
    %5913 = vmatpush1.bf16.msra.mxu0 0
    %5914 = vmatprep.mubr.bf16.mxu0 0
    %5915 = vmatmul.mubr.bf16.gmra.mrb[0].mxu0 %v5832
    %v5916 = vpop.f32.mrb[0].mxu0
    %v5917 = vadd.f32 0.0, %v5916
    %v5918 = vpop.f32.mrb[0].mxu0
    %v5919 = vpop.f32.mrb[0].mxu0
    %v5920 = vpop.f32.mrb[0].mxu0
    %5921 = vdwg.mxu0
    %v5922 = vadd.f32 %v5813, %v5917
    %s5923 = scalar_lea.vmem [#allocation12], 256
    %v5924 = vld [vmem:[%s5923] sm:$0xf]
    %v5925 = vld [vmem:[%s5923 + $0x4] sm:$0xf]
    %v5926 = vld [vmem:[%s5923 + $0x8] sm:$0xf]
    %v5927 = vld [vmem:[%s5923 + $0xc] sm:$0xf]
    %v5928 = vld [vmem:[%s5923 + $0x10] sm:$0xf]
    %v5929 = vld [vmem:[%s5923 + $0x14] sm:$0xf]
    %v5930 = vld [vmem:[%s5923 + $0x18] sm:$0xf]
    %v5931 = vld [vmem:[%s5923 + $0x1c] sm:$0xf]
    %v5932 = vld [vmem:[%s5923 + $0x20] sm:$0xf]
    %v5933 = vld [vmem:[%s5923 + $0x24] sm:$0xf]
    %v5934 = vld [vmem:[%s5923 + $0x28] sm:$0xf]
    %v5935 = vld [vmem:[%s5923 + $0x2c] sm:$0xf]
    %v5936 = vld [vmem:[%s5923 + $0x30] sm:$0xf]
    %v5937 = vld [vmem:[%s5923 + $0x34] sm:$0xf]
    %v5938 = vld [vmem:[%s5923 + $0x38] sm:$0xf]
    %v5939 = vld [vmem:[%s5923 + $0x3c] sm:$0xf]
    %v5956 = vunpack.c.l.b16 %v5924
    %v5957 = vunpack.c.l.b16 %v5925
    %v5958 = vunpack.c.l.b16 %v5926
    %v5959 = vunpack.c.l.b16 %v5927
    %v5960 = vunpack.c.l.b16 %v5928
    %v5961 = vunpack.c.l.b16 %v5929
    %v5962 = vunpack.c.l.b16 %v5930
    %v5963 = vunpack.c.l.b16 %v5931
    %v5964 = vunpack.c.l.b16 %v5932
    %v5965 = vunpack.c.l.b16 %v5933
    %v5966 = vunpack.c.l.b16 %v5934
    %v5967 = vunpack.c.l.b16 %v5935
    %v5968 = vunpack.c.l.b16 %v5936
    %v5969 = vunpack.c.l.b16 %v5937
    %v5970 = vunpack.c.l.b16 %v5938
    %v5971 = vunpack.c.l.b16 %v5939
    %v5972 = vpack.c.b16 %v5957, %v5956
    %v5973 = vpack.c.b16 %v5959, %v5958
    %v5974 = vpack.c.b16 %v5961, %v5960
    %v5975 = vpack.c.b16 %v5963, %v5962
    %v5976 = vpack.c.b16 %v5965, %v5964
    %v5977 = vpack.c.b16 %v5967, %v5966
    %v5978 = vpack.c.b16 %v5969, %v5968
    %v5979 = vpack.c.b16 %v5971, %v5970
    %5988 = vmatprep.subr.bf16.mxu0 0
    %5989 = vmatpush1.bf16.msra.mxu0 %v5972
    %5990 = vmatprep.subr.bf16.mxu0 0
    %5991 = vmatpush1.bf16.msra.mxu0 %v5973
    %5992 = vmatprep.subr.bf16.mxu0 0
    %5993 = vmatpush1.bf16.msra.mxu0 %v5974
    %5994 = vmatprep.subr.bf16.mxu0 0
    %5995 = vmatpush1.bf16.msra.mxu0 %v5975
    %5996 = vmatprep.subr.bf16.mxu0 0
    %5997 = vmatpush1.bf16.msra.mxu0 %v5976
    %5998 = vmatprep.subr.bf16.mxu0 0
    %5999 = vmatpush1.bf16.msra.mxu0 %v5977
    %6000 = vmatprep.subr.bf16.mxu0 0
    %6001 = vmatpush1.bf16.msra.mxu0 %v5978
    %6002 = vmatprep.subr.bf16.mxu0 0
    %6003 = vmatpush1.bf16.msra.mxu0 %v5979
    %6004 = vmatprep.subr.bf16.mxu0 0
    %6005 = vmatpush1.bf16.msra.mxu0 0
    %6006 = vmatprep.subr.bf16.mxu0 0
    %6007 = vmatpush1.bf16.msra.mxu0 0
    %6008 = vmatprep.subr.bf16.mxu0 0
    %6009 = vmatpush1.bf16.msra.mxu0 0
    %6010 = vmatprep.subr.bf16.mxu0 0
    %6011 = vmatpush1.bf16.msra.mxu0 0
    %6012 = vmatprep.subr.bf16.mxu0 0
    %6013 = vmatpush1.bf16.msra.mxu0 0
    %6014 = vmatprep.subr.bf16.mxu0 0
    %6015 = vmatpush1.bf16.msra.mxu0 0
    %6016 = vmatprep.subr.bf16.mxu0 0
    %6017 = vmatpush1.bf16.msra.mxu0 0
    %6018 = vmatprep.subr.bf16.mxu0 0
    %6019 = vmatpush1.bf16.msra.mxu0 0
    %6020 = vmatprep.mubr.bf16.mxu0 0
    %6021 = vmatmul.mubr.bf16.gmra.mrb[0].mxu0 %v5495
    %v6022 = vpop.f32.mrb[0].mxu0
    %v6023 = vadd.f32 0.0, %v6022
    %v6024 = vpop.f32.mrb[0].mxu0
    %v6025 = vpop.f32.mrb[0].mxu0
    %v6026 = vpop.f32.mrb[0].mxu0
    %6027 = vdwg.mxu0
    %v6028 = vadd.f32 %v5922, %v6023
    %v6029 = vld [vmem:[#allocation13] sm:$0x1]
    %v6031 = vlaneseq
    %v6032 = vshrl.u32 %v6031, 7
    %v6033 = vsub.s32 0, %v6032
    %v6034 = vrot.slane %v6029, %v6033
    %v6036 = vadd.f32 %v6028, %v6034
    %v6037 = vmax.f32 %v6036, 0.0
    %v6038 = vpack.c.bf16 %v6037, %v6037
    %v6039 = vld [vmem:[%s13] sm:$0xf]
    %v6040 = vld [vmem:[%s13 + $0x4] sm:$0xf]
    %v6041 = vld [vmem:[%s13 + $0x8] sm:$0xf]
    %v6042 = vld [vmem:[%s13 + $0xc] sm:$0xf]
    %v6043 = vld [vmem:[%s13 + $0x10] sm:$0xf]
    %v6044 = vld [vmem:[%s13 + $0x14] sm:$0xf]
    %v6045 = vld [vmem:[%s13 + $0x18] sm:$0xf]
    %v6046 = vld [vmem:[%s13 + $0x1c] sm:$0xf]
    %v6047 = vld [vmem:[%s13 + $0x20] sm:$0xf]
    %v6048 = vld [vmem:[%s13 + $0x24] sm:$0xf]
    %v6049 = vld [vmem:[%s13 + $0x28] sm:$0xf]
    %v6050 = vld [vmem:[%s13 + $0x2c] sm:$0xf]
    %v6051 = vld [vmem:[%s13 + $0x30] sm:$0xf]
    %v6052 = vld [vmem:[%s13 + $0x34] sm:$0xf]
    %v6053 = vld [vmem:[%s13 + $0x38] sm:$0xf]
    %v6054 = vld [vmem:[%s13 + $0x3c] sm:$0xf]
    %v6055 = vld [vmem:[#allocation15] sm:$0x1]
    %v6057 = vlaneseq
    %v6058 = vshrl.u32 %v6057, 7
    %v6059 = vsub.s32 0, %v6058
    %v6060 = vrot.slane %v6055, %v6059
    %v6078 = vunpack.c.l.b16 %v6039
    %v6079 = vunpack.c.l.b16 %v6040
    %v6080 = vunpack.c.l.b16 %v6041
    %v6081 = vunpack.c.l.b16 %v6042
    %v6082 = vunpack.c.l.b16 %v6043
    %v6083 = vunpack.c.l.b16 %v6044
    %v6084 = vunpack.c.l.b16 %v6045
    %v6085 = vunpack.c.l.b16 %v6046
    %v6086 = vunpack.c.l.b16 %v6047
    %v6087 = vunpack.c.l.b16 %v6048
    %v6088 = vunpack.c.l.b16 %v6049
    %v6089 = vunpack.c.l.b16 %v6050
    %v6090 = vunpack.c.l.b16 %v6051
    %v6091 = vunpack.c.l.b16 %v6052
    %v6092 = vunpack.c.l.b16 %v6053
    %v6093 = vunpack.c.l.b16 %v6054
    %v6094 = vpack.c.b16 %v6079, %v6078
    %v6095 = vpack.c.b16 %v6081, %v6080
    %v6096 = vpack.c.b16 %v6083, %v6082
    %v6097 = vpack.c.b16 %v6085, %v6084
    %v6098 = vpack.c.b16 %v6087, %v6086
    %v6099 = vpack.c.b16 %v6089, %v6088
    %v6100 = vpack.c.b16 %v6091, %v6090
    %v6101 = vpack.c.b16 %v6093, %v6092
    %6110 = vmatprep.subr.bf16.mxu0 0
    %6111 = vmatpush1.bf16.msra.mxu0 %v6094
    %6112 = vmatprep.subr.bf16.mxu0 0
    %6113 = vmatpush1.bf16.msra.mxu0 %v6095
    %6114 = vmatprep.subr.bf16.mxu0 0
    %6115 = vmatpush1.bf16.msra.mxu0 %v6096
    %6116 = vmatprep.subr.bf16.mxu0 0
    %6117 = vmatpush1.bf16.msra.mxu0 %v6097
    %6118 = vmatprep.subr.bf16.mxu0 0
    %6119 = vmatpush1.bf16.msra.mxu0 %v6098
    %6120 = vmatprep.subr.bf16.mxu0 0
    %6121 = vmatpush1.bf16.msra.mxu0 %v6099
    %6122 = vmatprep.subr.bf16.mxu0 0
    %6123 = vmatpush1.bf16.msra.mxu0 %v6100
    %6124 = vmatprep.subr.bf16.mxu0 0
    %6125 = vmatpush1.bf16.msra.mxu0 %v6101
    %6126 = vmatprep.subr.bf16.mxu0 0
    %6127 = vmatpush1.bf16.msra.mxu0 0
    %6128 = vmatprep.subr.bf16.mxu0 0
    %6129 = vmatpush1.bf16.msra.mxu0 0
    %6130 = vmatprep.subr.bf16.mxu0 0
    %6131 = vmatpush1.bf16.msra.mxu0 0
    %6132 = vmatprep.subr.bf16.mxu0 0
    %6133 = vmatpush1.bf16.msra.mxu0 0
    %6134 = vmatprep.subr.bf16.mxu0 0
    %6135 = vmatpush1.bf16.msra.mxu0 0
    %6136 = vmatprep.subr.bf16.mxu0 0
    %6137 = vmatpush1.bf16.msra.mxu0 0
    %6138 = vmatprep.subr.bf16.mxu0 0
    %6139 = vmatpush1.bf16.msra.mxu0 0
    %6140 = vmatprep.subr.bf16.mxu0 0
    %6141 = vmatpush1.bf16.msra.mxu0 0
    %6142 = vmatprep.mubr.bf16.mxu0 0
    %6143 = vmatmul.mubr.bf16.gmra.mrb[0].mxu0 %v6038
    %v6144 = vpop.f32.mrb[0].mxu0
    %v6145 = vadd.f32 %v6060, %v6144
    %v6146 = vpop.f32.mrb[0].mxu0
    %v6147 = vpop.f32.mrb[0].mxu0
    %v6148 = vpop.f32.mrb[0].mxu0
    %6149 = vdwg.mxu0
    %v6150 = vmax.f32 %v6145, 0.0
    %v6151 = vpack.c.bf16 %v6150, %v6150
    %v6152 = vld [vmem:[#allocation16] sm:$0xf]
    %v6153 = vld [vmem:[#allocation16 + $0x4] sm:$0xf]
    %v6154 = vld [vmem:[#allocation16 + $0x8] sm:$0xf]
    %v6155 = vld [vmem:[#allocation16 + $0xc] sm:$0xf]
    %v6156 = vld [vmem:[#allocation16 + $0x10] sm:$0xf]
    %v6157 = vld [vmem:[#allocation16 + $0x14] sm:$0xf]
    %v6158 = vld [vmem:[#allocation16 + $0x18] sm:$0xf]
    %v6159 = vld [vmem:[#allocation16 + $0x1c] sm:$0xf]
    %v6160 = vld [vmem:[#allocation16 + $0x20] sm:$0xf]
    %v6161 = vld [vmem:[#allocation16 + $0x24] sm:$0xf]
    %v6162 = vld [vmem:[#allocation16 + $0x28] sm:$0xf]
    %v6163 = vld [vmem:[#allocation16 + $0x2c] sm:$0xf]
    %v6164 = vld [vmem:[#allocation16 + $0x30] sm:$0xf]
    %v6165 = vld [vmem:[#allocation16 + $0x34] sm:$0xf]
    %v6166 = vld [vmem:[#allocation16 + $0x38] sm:$0xf]
    %v6167 = vld [vmem:[#allocation16 + $0x3c] sm:$0xf]
    %v6168 = vld [vmem:[#allocation18] sm:$0x1]
    %v6170 = vlaneseq
    %v6171 = vshrl.u32 %v6170, 7
    %v6172 = vsub.s32 0, %v6171
    %v6173 = vrot.slane %v6168, %v6172
    %v6191 = vunpack.c.l.b16 %v6152
    %v6192 = vunpack.c.l.b16 %v6153
    %v6193 = vunpack.c.l.b16 %v6154
    %v6194 = vunpack.c.l.b16 %v6155
    %v6195 = vunpack.c.l.b16 %v6156
    %v6196 = vunpack.c.l.b16 %v6157
    %v6197 = vunpack.c.l.b16 %v6158
    %v6198 = vunpack.c.l.b16 %v6159
    %v6199 = vunpack.c.l.b16 %v6160
    %v6200 = vunpack.c.l.b16 %v6161
    %v6201 = vunpack.c.l.b16 %v6162
    %v6202 = vunpack.c.l.b16 %v6163
    %v6203 = vunpack.c.l.b16 %v6164
    %v6204 = vunpack.c.l.b16 %v6165
    %v6205 = vunpack.c.l.b16 %v6166
    %v6206 = vunpack.c.l.b16 %v6167
    %v6207 = vpack.c.b16 %v6192, %v6191
    %v6208 = vpack.c.b16 %v6194, %v6193
    %v6209 = vpack.c.b16 %v6196, %v6195
    %v6210 = vpack.c.b16 %v6198, %v6197
    %v6211 = vpack.c.b16 %v6200, %v6199
    %v6212 = vpack.c.b16 %v6202, %v6201
    %v6213 = vpack.c.b16 %v6204, %v6203
    %v6214 = vpack.c.b16 %v6206, %v6205
    %6223 = vmatprep.subr.bf16.mxu0 0
    %6224 = vmatpush1.bf16.msra.mxu0 %v6207
    %6225 = vmatprep.subr.bf16.mxu0 0
    %6226 = vmatpush1.bf16.msra.mxu0 %v6208
    %6227 = vmatprep.subr.bf16.mxu0 0
    %6228 = vmatpush1.bf16.msra.mxu0 %v6209
    %6229 = vmatprep.subr.bf16.mxu0 0
    %6230 = vmatpush1.bf16.msra.mxu0 %v6210
    %6231 = vmatprep.subr.bf16.mxu0 0
    %6232 = vmatpush1.bf16.msra.mxu0 %v6211
    %6233 = vmatprep.subr.bf16.mxu0 0
    %6234 = vmatpush1.bf16.msra.mxu0 %v6212
    %6235 = vmatprep.subr.bf16.mxu0 0
    %6236 = vmatpush1.bf16.msra.mxu0 %v6213
    %6237 = vmatprep.subr.bf16.mxu0 0
    %6238 = vmatpush1.bf16.msra.mxu0 %v6214
    %6239 = vmatprep.subr.bf16.mxu0 0
    %6240 = vmatpush1.bf16.msra.mxu0 0
    %6241 = vmatprep.subr.bf16.mxu0 0
    %6242 = vmatpush1.bf16.msra.mxu0 0
    %6243 = vmatprep.subr.bf16.mxu0 0
    %6244 = vmatpush1.bf16.msra.mxu0 0
    %6245 = vmatprep.subr.bf16.mxu0 0
    %6246 = vmatpush1.bf16.msra.mxu0 0
    %6247 = vmatprep.subr.bf16.mxu0 0
    %6248 = vmatpush1.bf16.msra.mxu0 0
    %6249 = vmatprep.subr.bf16.mxu0 0
    %6250 = vmatpush1.bf16.msra.mxu0 0
    %6251 = vmatprep.subr.bf16.mxu0 0
    %6252 = vmatpush1.bf16.msra.mxu0 0
    %6253 = vmatprep.subr.bf16.mxu0 0
    %6254 = vmatpush1.bf16.msra.mxu0 0
    %6255 = vmatprep.mubr.bf16.mxu0 0
    %6256 = vmatmul.mubr.bf16.gmra.mrb[0].mxu0 %v6151
    %v6257 = vpop.f32.mrb[0].mxu0
    %v6258 = vadd.f32 %v6173, %v6257
    %v6259 = vpop.f32.mrb[0].mxu0
    %v6260 = vpop.f32.mrb[0].mxu0
    %v6261 = vpop.f32.mrb[0].mxu0
    %6262 = vdwg.mxu0
    %6263 = vst [vmem:[%s17] sm:$0xff] %v6258
    // Predicated region
    $region114: #{net_forward.1} parent=1 // pred_check
      _
    $region115: #{net_forward.1} parent=1 // pred_check_branch
      %6265 = sbr.rel (0) target = $region117
    $region116: #{net_forward.1} parent=1 // pred_region
      _
    $region117: #{net_forward.1} parent=1 // pred_fallthru
      _
    // Predicated region
    $region118: #{net_forward.1} parent=1 // pred_check
      _
    $region119: #{net_forward.1} parent=1 // pred_check_branch
      %6267 = sbr.rel (0) target = $region121
    $region120: #{net_forward.1} parent=1 // pred_region
      _
    $region121: #{net_forward.1} parent=1 // pred_fallthru
      _
    %6268 = vsyncpa [#allocation3], 1
    %6269 = vsyncpa [#allocation5], 1
    %6270 = vsyncpa [#allocation8], 1
    %6271 = vsyncpa [#allocation11], 1
    %6272 = vsyncpa [#allocation14], 1
    %6273 = vsyncpa [#allocation17], 1

</llo_original>
